<compile_context>
chip_gen: v5e
topology: v5e:2x2
jax: 0.10.0
libtpu: 0.0.40
codegen_flags: <defaults>
</compile_context>

<pallas_src>
import math

import jax
import jax.numpy as jnp
from jax.experimental import pallas as pl
from jax.experimental.pallas import tpu as pltpu

_SQRT1_2 = 1.0 / math.sqrt(2.0)
_MIB = 1024 * 1024


def _gelu_exact(x):
    """Exact (erf-based) GELU as in torch.nn.GELU().

    erf is evaluated with the Abramowitz & Stegun 7.1.26 polynomial
    (max abs error ~1.5e-7), built only from exp / mul / add / where so the
    kernel lowers cleanly on Mosaic; the exp lands on the EUP slot.
    """
    z = x * _SQRT1_2
    az = jnp.abs(z)
    t = 1.0 / (1.0 + 0.3275911 * az)
    poly = ((((1.061405429 * t - 1.453152027) * t + 1.421413741) * t
             - 0.284496736) * t + 0.254829592) * t
    erf_abs = 1.0 - poly * jnp.exp(-(az * az))
    erf_z = jnp.where(z >= 0.0, erf_abs, -erf_abs)
    return 0.5 * x * (1.0 + erf_z)


# --------------------------- kernels ---------------------------------------


def _mlp_kernel_fused(x_ref, w1_ref, b1_ref, w2_ref, b2_ref, o_ref, acc_ref):
    """Primary kernel.  Grid (m_tiles, h_tiles); hidden axis = reduction.

    x_ref : (tm, Cin)     token tile (constant across h)
    w1_ref: (Cin, th)     fc1 weight slab for this hidden block
    b1_ref: (1, th)
    w2_ref: (th, Cout)    fc2 weight slab (full output extent)
    b2_ref: (1, Cout)
    o_ref : (tm, Cout)
    acc_ref: (tm, Cout) f32 scratch accumulator, resident across the h axis.

    Full Cout in one block => fc1 + GELU are computed exactly once per
    (token tile, hidden block) and w1 is streamed once per token tile.
    """
    h_idx = pl.program_id(1)

    @pl.when(h_idx == 0)
    def _init():
        acc_ref[...] = jnp.zeros_like(acc_ref)

    # fc1 partial for this hidden block: native dtype into the MXU, f32 accum.
    h = jnp.dot(x_ref[...], w1_ref[...], preferred_element_type=jnp.float32)
    h = _gelu_exact(h + b1_ref[...].astype(jnp.float32))
    # TODO(synk): dropout is identity here (drop=0.0 / eval); a stochastic
    # version would use pltpu.prng_seed + pltpu.prng_random_bits.

    # fc2 partial contribution of this hidden block.
    acc_ref[...] += jnp.dot(h.astype(w2_ref.dtype), w2_ref[...],
                            preferred_element_type=jnp.float32)

    @pl.when(h_idx == pl.num_programs(1) - 1)
    def _finalize():
        o_ref[...] = (acc_ref[...]
                      + b2_ref[...].astype(jnp.float32)).astype(o_ref.dtype)


def _mlp_kernel_ntiled(x_ref, w1_ref, b1_ref, w2_ref, b2_ref, o_ref, acc_ref):
    """Fallback kernel for very large Cout.  Grid (m_tiles, n_tiles, h_tiles).

    Recomputes fc1 + GELU per output tile (Cout/tn redundancy); only used
    when a full-Cout output block cannot fit the VMEM budget.
    """
    h_idx = pl.program_id(2)

    @pl.when(h_idx == 0)
    def _init():
        acc_ref[...] = jnp.zeros_like(acc_ref)

    h = jnp.dot(x_ref[...], w1_ref[...], preferred_element_type=jnp.float32)
    h = _gelu_exact(h + b1_ref[...].astype(jnp.float32))
    acc_ref[...] += jnp.dot(h.astype(w2_ref.dtype), w2_ref[...],
                            preferred_element_type=jnp.float32)

    @pl.when(h_idx == pl.num_programs(2) - 1)
    def _finalize():
        o_ref[...] = (acc_ref[...]
                      + b2_ref[...].astype(jnp.float32)).astype(o_ref.dtype)


# ----------------------- tiling / budget helpers ---------------------------


def _vmem_budget_bytes():
    """Generation-aware VMEM budget with headroom for compiler internals.

    ~3/4 of per-core VMEM, clamped to [32 MiB, 100 MiB]:
      v5e/v6e (128 MiB)  -> 96 MiB
      v7x     (64 MiB)   -> 48 MiB
      unknown            -> 48 MiB (safe everywhere)
    """
    cap = 64 * _MIB
    try:
        cap = int(pltpu.get_tpu_info().vmem_capacity_bytes)
    except Exception:
        pass
    return max(32 * _MIB, min((cap * 3) // 4, 100 * _MIB))


def _pad_to(dim, tile):
    return ((dim + tile - 1) // tile) * tile


_TM_CANDS = (1024, 512, 256, 128, 64, 32, 16, 8)   # sublane dim: mult of 8
_TL_CANDS = (512, 256, 128)                        # lane dim: mult of 128


def _dim_options(dim, cands, full_cap):
    """Tile options for `dim`: full extent first (no padding) if small,
    then progressively smaller aligned candidates."""
    opts = [dim] if dim <= full_cap else []
    opts += [t for t in cands if t < dim]
    return opts


def _fused_bytes(tm, th, cin, cout, xb, wb, ob):
    # double-buffered in/out blocks + resident f32 accumulator
    return (2 * tm * cin * xb + 2 * cin * th * wb + 2 * th * wb
            + 2 * th * cout * wb + 2 * cout * wb
            + 2 * tm * cout * ob + tm * cout * 4)


def _ntiled_bytes(tm, th, tn, cin, xb, wb, ob):
    return (2 * tm * cin * xb + 2 * cin * th * wb + 2 * th * wb
            + 2 * th * tn * wb + 2 * tn * wb
            + 2 * tm * tn * ob + tm * tn * 4)


def _select_fused_tiles(m, cin, hid, cout, xb, wb, ob, budget):
    # Prefer large tm (amortizes weight streaming); shrink th before tm.
    for tm in _dim_options(m, _TM_CANDS, 1024):
        for th in _dim_options(hid, _TL_CANDS, 512):
            if _fused_bytes(tm, th, cin, cout, xb, wb, ob) <= budget:
                return tm, th
    return None


def _select_ntiled_tiles(m, cin, hid, cout, xb, wb, ob, budget):
    for tm in _dim_options(m, _TM_CANDS, 512):
        for tn in _dim_options(cout, _TL_CANDS, 512):
            for th in _dim_options(hid, _TL_CANDS, 512):
                if _ntiled_bytes(tm, th, tn, cin, xb, wb, ob) <= budget:
                    return tm, th, tn
    return None


# ------------------------------ wrapper -------------------------------------


def mlp_pallas(x, w1, b1, w2, b2, *, tm=None, th=None, tn=None,
               vmem_budget_bytes=None, force_out_tiling=False):
    """Fused fc1 -> exact GELU -> fc2.  x: (..., Cin) -> (..., Cout)."""
    orig_shape = x.shape
    cin = orig_shape[-1]
    hid = w1.shape[1]
    cout = w2.shape[1]
    assert w1.shape == (cin, hid)
    assert b1.shape == (hid,)
    assert w2.shape == (hid, cout)
    assert b2.shape == (cout,)

    x2d = x.reshape(-1, cin)
    m = x2d.shape[0]

    budget = (int(vmem_budget_bytes) if vmem_budget_bytes is not None
              else _vmem_budget_bytes())
    xb, wb, ob = x.dtype.itemsize, w1.dtype.itemsize, x.dtype.itemsize

    use_fused = not force_out_tiling
    sel = None
    if use_fused:
        if tm is not None and th is not None:
            sel = (int(tm), int(th))
        else:
            sel = _select_fused_tiles(m, cin, hid, cout, xb, wb, ob, budget)
        use_fused = sel is not None

    if use_fused:
        tm_, th_ = sel
        m_pad = _pad_to(m, tm_)
        hid_pad = _pad_to(hid, th_)

        if m_pad != m:
            x2d = jnp.pad(x2d, ((0, m_pad - m), (0, 0)))
        w1p, b1p, w2p = w1, b1, w2
        if hid_pad != hid:
            # Zero-padded hidden columns are neutral: GELU(0)=0 times zero
            # rows of w2.
            w1p = jnp.pad(w1, ((0, 0), (0, hid_pad - hid)))
            b1p = jnp.pad(b1, ((0, hid_pad - hid),))
            w2p = jnp.pad(w2, ((0, hid_pad - hid), (0, 0)))
        b1_2d = b1p.reshape(1, hid_pad)
        b2_2d = b2.reshape(1, cout)

        grid = (m_pad // tm_, hid_pad // th_)
        out = pl.pallas_call(
            _mlp_kernel_fused,
            out_shape=jax.ShapeDtypeStruct((m_pad, cout), x.dtype),
            grid_spec=pltpu.PrefetchScalarGridSpec(
                num_scalar_prefetch=0,
                grid=grid,
                in_specs=[
                    pl.BlockSpec((tm_, cin), lambda i, h: (i, 0)),    # x
                    pl.BlockSpec((cin, th_), lambda i, h: (0, h)),    # w1
                    pl.BlockSpec((1, th_), lambda i, h: (0, h)),      # b1
                    pl.BlockSpec((th_, cout), lambda i, h: (h, 0)),   # w2
                    pl.BlockSpec((1, cout), lambda i, h: (0, 0)),     # b2
                ],
                out_specs=pl.BlockSpec((tm_, cout), lambda i, h: (i, 0)),
                scratch_shapes=[pltpu.VMEM((tm_, cout), jnp.float32)],
            ),
            compiler_params=pltpu.CompilerParams(
                dimension_semantics=("parallel", "arbitrary"),
                vmem_limit_bytes=budget,
            ),
        )(x2d, w1p, b1_2d, w2p, b2_2d)
        out = out[:m]
        return out.reshape(orig_shape[:-1] + (cout,))

    # ---- Fallback: N-tiled Cout (only when full-Cout blocks can't fit). ----
    # TODO(synk): for extreme Cin where even minimal x/w1 blocks exceed the
    # budget, an inner Cin reduction (emit_pipeline) would be needed.
    if tm is not None and th is not None and tn is not None:
        sel3 = (int(tm), int(th), int(tn))
    else:
        sel3 = _select_ntiled_tiles(m, cin, hid, cout, xb, wb, ob, budget)
    if sel3 is None:
        raise ValueError("MLP shapes too large for the VMEM budget.")
    tm_, th_, tn_ = sel3
    m_pad = _pad_to(m, tm_)
    hid_pad = _pad_to(hid, th_)
    cout_pad = _pad_to(cout, tn_)

    if m_pad != m:
        x2d = jnp.pad(x2d, ((0, m_pad - m), (0, 0)))
    w1p, b1p, w2p, b2p = w1, b1, w2, b2
    if hid_pad != hid:
        w1p = jnp.pad(w1p, ((0, 0), (0, hid_pad - hid)))
        b1p = jnp.pad(b1p, ((0, hid_pad - hid),))
        w2p = jnp.pad(w2p, ((0, hid_pad - hid), (0, 0)))
    if cout_pad != cout:
        w2p = jnp.pad(w2p, ((0, 0), (0, cout_pad - cout)))
        b2p = jnp.pad(b2p, ((0, cout_pad - cout),))
    b1_2d = b1p.reshape(1, hid_pad)
    b2_2d = b2p.reshape(1, cout_pad)

    grid = (m_pad // tm_, cout_pad // tn_, hid_pad // th_)
    out = pl.pallas_call(
        _mlp_kernel_ntiled,
        out_shape=jax.ShapeDtypeStruct((m_pad, cout_pad), x.dtype),
        grid_spec=pltpu.PrefetchScalarGridSpec(
            num_scalar_prefetch=0,
            grid=grid,
            in_specs=[
                pl.BlockSpec((tm_, cin), lambda i, n, h: (i, 0)),   # x
                pl.BlockSpec((cin, th_), lambda i, n, h: (0, h)),   # w1
                pl.BlockSpec((1, th_), lambda i, n, h: (0, h)),     # b1
                pl.BlockSpec((th_, tn_), lambda i, n, h: (h, n)),   # w2
                pl.BlockSpec((1, tn_), lambda i, n, h: (0, n)),     # b2
            ],
            out_specs=pl.BlockSpec((tm_, tn_), lambda i, n, h: (i, n)),
            scratch_shapes=[pltpu.VMEM((tm_, tn_), jnp.float32)],
        ),
        compiler_params=pltpu.CompilerParams(
            dimension_semantics=("parallel", "parallel", "arbitrary"),
            vmem_limit_bytes=budget,
        ),
    )(x2d, w1p, b1_2d, w2p, b2_2d)
    out = out[:m, :cout]
    return out.reshape(orig_shape[:-1] + (cout,))


# -------------------------- params / reference ------------------------------


def init_mlp_params(key, in_features, hidden_features, out_features,
                    dtype=jnp.float32):
    """Deterministic init mirroring nn.Linear's uniform bounds.  Weights are
    stored transposed (in, out) so the kernel does x @ W."""
    k1, k2, k3, k4 = jax.random.split(key, 4)
    bound1 = 1.0 / math.sqrt(in_features)
    bound2 = 1.0 / math.sqrt(hidden_features)
    w1 = jax.random.uniform(k1, (in_features, hidden_features), dtype,
                            minval=-bound1, maxval=bound1)
    b1 = jax.random.uniform(k2, (hidden_features,), dtype,
                            minval=-bound1, maxval=bound1)
    w2 = jax.random.uniform(k3, (hidden_features, out_features), dtype,
                            minval=-bound2, maxval=bound2)
    b2 = jax.random.uniform(k4, (out_features,), dtype,
                            minval=-bound2, maxval=bound2)
    return w1, b1, w2, b2


def mlp_reference(x, w1, b1, w2, b2):
    h = jnp.dot(x, w1, preferred_element_type=jnp.float32) + b1
    h = jax.nn.gelu(h, approximate=False)          # exact erf GELU
    y = jnp.dot(h.astype(w2.dtype), w2, preferred_element_type=jnp.float32) + b2
    return y.astype(x.dtype)


if __name__ == "__main__":
    key = jax.random.PRNGKey(0)
    kx1, kp1, kx2, kp2 = jax.random.split(key, 4)

    # Tolerance note: XLA (reference) and Mosaic (kernel) may use different
    # reduced-precision MXU pass counts for f32 matmuls, so small numeric
    # divergence (<~1e-2) is expected; real bugs produce O(0.1-1) errors.
    TOL = 2e-2

    # --- Test 1: module-default shapes (NHWC tokens), auto tile selection. ---
    B, H, W, Cin = 2, 16, 16, 16
    hidden = 32
    Cout = Cin                      # out_features defaults to in_features
    x = jax.random.normal(kx1, (B, H, W, Cin), dtype=jnp.float32)
    w1, b1, w2, b2 = init_mlp_params(kp1, Cin, hidden, Cout)
    y = jax.block_until_ready(mlp_pallas(x, w1, b1, w2, b2))
    y_ref = mlp_reference(x, w1, b1, w2, b2)
    assert y.shape == (B, H, W, Cout)
    err1 = float(jnp.max(jnp.abs(y - y_ref)))
    assert err1 < TOL, f"test1 max err {err1}"

    # --- Test 2: hidden (reduction) tiling + M padding on the fused path. ---
    B2, H2, W2, Cin2 = 2, 10, 10, 32   # M = 200 -> padded to 256 with tm=128
    hidden2, Cout2 = 384, 256          # 3 hidden tiles @128
    x2 = jax.random.normal(kx2, (B2, H2, W2, Cin2), dtype=jnp.float32)
    p2 = init_mlp_params(kp2, Cin2, hidden2, Cout2)
    y2 = jax.block_until_ready(mlp_pallas(x2, *p2, tm=128, th=128))
    y2_ref = mlp_reference(x2, *p2)
    assert y2.shape == (B2, H2, W2, Cout2)
    err2 = float(jnp.max(jnp.abs(y2 - y2_ref)))
    assert err2 < TOL, f"test2 max err {err2}"

    # --- Test 3: exercise the large-Cout fallback (N-tiled) path. ---
    y3 = jax.block_until_ready(
        mlp_pallas(x2, *p2, tm=128, th=128, tn=128, force_out_tiling=True))
    err3 = float(jnp.max(jnp.abs(y3 - y2_ref)))
    assert err3 < TOL, f"test3 max err {err3}"

    print("KERNEL_OK")
</pallas_src>

<mosaic_0001>
module attributes {stable_mosaic.version = 11 : i64} {
  func.func @_mlp_kernel_fused(%arg0: i32, %arg1: i32, %arg2: memref<512x16xf32, #tpu.memory_space<vmem>>, %arg3: memref<16x32xf32, #tpu.memory_space<vmem>>, %arg4: memref<1x32xf32, #tpu.memory_space<vmem>>, %arg5: memref<32x16xf32, #tpu.memory_space<vmem>>, %arg6: memref<1x16xf32, #tpu.memory_space<vmem>>, %arg7: memref<512x16xf32, #tpu.memory_space<vmem>>, %arg8: memref<512x16xf32, #tpu.memory_space<vmem>>) attributes {dimension_semantics = [#tpu.dimension_semantics<parallel>, #tpu.dimension_semantics<arbitrary>], iteration_bounds = array<i64: 1, 1>, scalar_prefetch = 0 : i64, scratch_operands = 1 : i64, tpu.core_type = #tpu.core_type<tc>, window_params = [{transform_indices = @transform_0, window_bounds = array<i64: 512, 16>}, {transform_indices = @transform_1, window_bounds = array<i64: 16, 32>}, {transform_indices = @transform_2, window_bounds = array<i64: 1, 32>}, {transform_indices = @transform_3, window_bounds = array<i64: 32, 16>}, {pipeline_mode = #tpu.pipeline_mode<synchronous>, transform_indices = @transform_4, window_bounds = array<i64: 1, 16>}, {transform_indices = @transform_5, window_bounds = array<i64: 512, 16>}]} {
    %c0_i32 = arith.constant 0 : i32
    %0 = arith.cmpi eq, %arg1, %c0_i32 : i32
    %1 = arith.extui %0 : i1 to i32
    %c0_i32_0 = arith.constant 0 : i32
    %2 = arith.cmpi ne, %1, %c0_i32_0 : i32
    scf.if %2 {
      %cst_30 = arith.constant 0.000000e+00 : f32
      %57 = vector.broadcast %cst_30 : f32 to vector<512x16xf32>
      %c0_31 = arith.constant 0 : index
      %c0_32 = arith.constant 0 : index
      %58 = vector.load %arg8[%c0_31, %c0_32] : memref<512x16xf32, #tpu.memory_space<vmem>>, vector<512x16xf32>
      tpu.vector_store %arg8[%c0_31, %c0_32], %57 {strides = array<i32>} : memref<512x16xf32, #tpu.memory_space<vmem>>, vector<512x16xf32>,
    } else {
    }
    %c0 = arith.constant 0 : index
    %c0_1 = arith.constant 0 : index
    %3 = vector.load %arg2[%c0, %c0_1] : memref<512x16xf32, #tpu.memory_space<vmem>>, vector<512x16xf32>
    %c0_2 = arith.constant 0 : index
    %c0_3 = arith.constant 0 : index
    %4 = vector.load %arg3[%c0_2, %c0_3] : memref<16x32xf32, #tpu.memory_space<vmem>>, vector<16x32xf32>
    %cst = arith.constant dense<0.000000e+00> : vector<512x32xf32>
    %5 = tpu.matmul %3, %4, %cst {dimension_numbers = #tpu.dot_dimension_numbers<[1], [0], [0], [1], [0, 0, 1, 1], [], []>} : vector<512x16xf32>, vector<16x32xf32>, vector<512x32xf32> -> vector<512x32xf32>
    %c0_4 = arith.constant 0 : index
    %c0_5 = arith.constant 0 : index
    %6 = vector.load %arg4[%c0_4, %c0_5] : memref<1x32xf32, #tpu.memory_space<vmem>>, vector<1x32xf32>
    %7 = vector.broadcast %6 : vector<1x32xf32> to vector<512x32xf32>
    %8 = arith.addf %5, %7 : vector<512x32xf32>
    %cst_6 = arith.constant 0.707106769 : f32
    %9 = vector.broadcast %cst_6 : f32 to vector<512x32xf32>
    %10 = arith.mulf %8, %9 : vector<512x32xf32>
    %11 = math.absf %10 : vector<512x32xf32>
    %cst_7 = arith.constant 0.327591091 : f32
    %12 = vector.broadcast %cst_7 : f32 to vector<512x32xf32>
    %13 = arith.mulf %12, %11 : vector<512x32xf32>
    %cst_8 = arith.constant 1.000000e+00 : f32
    %14 = vector.broadcast %cst_8 : f32 to vector<512x32xf32>
    %15 = arith.addf %14, %13 : vector<512x32xf32>
    %cst_9 = arith.constant 1.000000e+00 : f32
    %16 = vector.broadcast %cst_9 : f32 to vector<512x32xf32>
    %17 = arith.divf %16, %15 : vector<512x32xf32>
    %cst_10 = arith.constant 1.06140542 : f32
    %18 = vector.broadcast %cst_10 : f32 to vector<512x32xf32>
    %19 = arith.mulf %18, %17 : vector<512x32xf32>
    %cst_11 = arith.constant 1.45315206 : f32
    %20 = vector.broadcast %cst_11 : f32 to vector<512x32xf32>
    %21 = arith.subf %19, %20 : vector<512x32xf32>
    %22 = arith.mulf %21, %17 : vector<512x32xf32>
    %cst_12 = arith.constant 1.42141378 : f32
    %23 = vector.broadcast %cst_12 : f32 to vector<512x32xf32>
    %24 = arith.addf %22, %23 : vector<512x32xf32>
    %25 = arith.mulf %24, %17 : vector<512x32xf32>
    %cst_13 = arith.constant 0.284496725 : f32
    %26 = vector.broadcast %cst_13 : f32 to vector<512x32xf32>
    %27 = arith.subf %25, %26 : vector<512x32xf32>
    %28 = arith.mulf %27, %17 : vector<512x32xf32>
    %cst_14 = arith.constant 0.254829586 : f32
    %29 = vector.broadcast %cst_14 : f32 to vector<512x32xf32>
    %30 = arith.addf %28, %29 : vector<512x32xf32>
    %31 = arith.mulf %30, %17 : vector<512x32xf32>
    %32 = arith.mulf %11, %11 : vector<512x32xf32>
    %cst_15 = arith.constant 0.000000e+00 : f32
    %33 = vector.broadcast %cst_15 : f32 to vector<512x32xf32>
    %34 = arith.subf %33, %32 : vector<512x32xf32>
    %35 = math.exp %34 : vector<512x32xf32>
    %36 = arith.mulf %31, %35 : vector<512x32xf32>
    %cst_16 = arith.constant 1.000000e+00 : f32
    %37 = vector.broadcast %cst_16 : f32 to vector<512x32xf32>
    %38 = arith.subf %37, %36 : vector<512x32xf32>
    %cst_17 = arith.constant 0.000000e+00 : f32
    %39 = vector.broadcast %cst_17 : f32 to vector<512x32xf32>
    %40 = arith.cmpf oge, %10, %39 : vector<512x32xf32>
    %cst_18 = arith.constant 0.000000e+00 : f32
    %41 = vector.broadcast %cst_18 : f32 to vector<512x32xf32>
    %42 = arith.subf %41, %38 : vector<512x32xf32>
    %43 = arith.select %40, %38, %42 : vector<512x32xi1>, vector<512x32xf32>
    %cst_19 = arith.constant 5.000000e-01 : f32
    %44 = vector.broadcast %cst_19 : f32 to vector<512x32xf32>
    %45 = arith.mulf %44, %8 : vector<512x32xf32>
    %cst_20 = arith.constant 1.000000e+00 : f32
    %46 = vector.broadcast %cst_20 : f32 to vector<512x32xf32>
    %47 = arith.addf %46, %43 : vector<512x32xf32>
    %48 = arith.mulf %45, %47 : vector<512x32xf32>
    %c0_21 = arith.constant 0 : index
    %c0_22 = arith.constant 0 : index
    %49 = vector.load %arg8[%c0_21, %c0_22] : memref<512x16xf32, #tpu.memory_space<vmem>>, vector<512x16xf32>
    %c0_23 = arith.constant 0 : index
    %c0_24 = arith.constant 0 : index
    %50 = vector.load %arg5[%c0_23, %c0_24] : memref<32x16xf32, #tpu.memory_space<vmem>>, vector<32x16xf32>
    %cst_25 = arith.constant dense<0.000000e+00> : vector<512x16xf32>
    %51 = tpu.matmul %48, %50, %cst_25 {dimension_numbers = #tpu.dot_dimension_numbers<[1], [0], [0], [1], [0, 0, 1, 1], [], []>} : vector<512x32xf32>, vector<32x16xf32>, vector<512x16xf32> -> vector<512x16xf32>
    %52 = arith.addf %49, %51 : vector<512x16xf32>
    %c0_26 = arith.constant 0 : index
    %c0_27 = arith.constant 0 : index
    %53 = vector.load %arg8[%c0_26, %c0_27] : memref<512x16xf32, #tpu.memory_space<vmem>>, vector<512x16xf32>
    tpu.vector_store %arg8[%c0_26, %c0_27], %52 {strides = array<i32>} : memref<512x16xf32, #tpu.memory_space<vmem>>, vector<512x16xf32>,
    %c0_i32_28 = arith.constant 0 : i32
    %54 = arith.cmpi eq, %arg1, %c0_i32_28 : i32
    %55 = arith.extui %54 : i1 to i32
    %c0_i32_29 = arith.constant 0 : i32
    %56 = arith.cmpi ne, %55, %c0_i32_29 : i32
    scf.if %56 {
      %c0_30 = arith.constant 0 : index
      %c0_31 = arith.constant 0 : index
      %57 = vector.load %arg8[%c0_30, %c0_31] : memref<512x16xf32, #tpu.memory_space<vmem>>, vector<512x16xf32>
      %c0_32 = arith.constant 0 : index
      %c0_33 = arith.constant 0 : index
      %58 = vector.load %arg6[%c0_32, %c0_33] : memref<1x16xf32, #tpu.memory_space<vmem>>, vector<1x16xf32>
      %59 = vector.broadcast %58 : vector<1x16xf32> to vector<512x16xf32>
      %60 = arith.addf %57, %59 : vector<512x16xf32>
      %c0_34 = arith.constant 0 : index
      %c0_35 = arith.constant 0 : index
      %61 = vector.load %arg7[%c0_34, %c0_35] : memref<512x16xf32, #tpu.memory_space<vmem>>, vector<512x16xf32>
      tpu.vector_store %arg7[%c0_34, %c0_35], %60 {strides = array<i32>} : memref<512x16xf32, #tpu.memory_space<vmem>>, vector<512x16xf32>,
    } else {
    }
    return
  }
  func.func @transform_0(%arg0: i32, %arg1: i32) -> (i32, i32) {
    %c0_i32 = arith.constant 0 : i32
    %c0_i32_0 = arith.constant 0 : i32
    return %arg0, %c0_i32 : i32, i32
  }
  func.func @transform_1(%arg0: i32, %arg1: i32) -> (i32, i32) {
    %c0_i32 = arith.constant 0 : i32
    %c0_i32_0 = arith.constant 0 : i32
    return %c0_i32, %arg1 : i32, i32
  }
  func.func @transform_2(%arg0: i32, %arg1: i32) -> (i32, i32) {
    %c0_i32 = arith.constant 0 : i32
    %c0_i32_0 = arith.constant 0 : i32
    return %c0_i32, %arg1 : i32, i32
  }
  func.func @transform_3(%arg0: i32, %arg1: i32) -> (i32, i32) {
    %c0_i32 = arith.constant 0 : i32
    %c0_i32_0 = arith.constant 0 : i32
    return %arg1, %c0_i32 : i32, i32
  }
  func.func @transform_4(%arg0: i32, %arg1: i32) -> (i32, i32) {
    %c0_i32 = arith.constant 0 : i32
    %c0_i32_0 = arith.constant 0 : i32
    %c0_i32_1 = arith.constant 0 : i32
    return %c0_i32, %c0_i32_0 : i32, i32
  }
  func.func @transform_5(%arg0: i32, %arg1: i32) -> (i32, i32) {
    %c0_i32 = arith.constant 0 : i32
    %c0_i32_0 = arith.constant 0 : i32
    return %arg0, %c0_i32 : i32, i32
  }
}

</mosaic_0001>

<llo_original>
// kernel: tpu_custom_call.1
$region0: #{tpu_custom_call.1}
  #allocation0 [shape = 'u32[]', space=smem, size = 0x4, offset = 0x4, fixed_abs, tag = 'smem constant byte address 0x4 - core index']
  #allocation1 [shape = 'u32[72,128]{1,0:T(1,128)}', space=vmem, size = 0x9000, scoped, tag = 'internal scratch']
  #allocation2 [shape = 'f32[512,16]{1,0:T(8,128)}', space=vmem, size = 0x40000, scoped, tag = 'scratch operand']
  %s0 = inlined_call_operand.vmem [shape: f32[512,16], index: 0, kind: input, shape index: {}]
  %s1 = inlined_call_operand.vmem [shape: f32[16,32], index: 1, kind: input, shape index: {}]
  %s2 = inlined_call_operand.vmem [shape: f32[1,32], index: 2, kind: input, shape index: {}]
  %s3 = inlined_call_operand.vmem [shape: f32[32,16], index: 3, kind: input, shape index: {}]
  %s4 = inlined_call_operand.vmem [shape: f32[1,16], index: 4, kind: input, shape index: {}]
  %s5 = inlined_call_operand.vmem [shape: f32[512,16], index: 5, kind: output, shape index: {}]
  %s6 = sld [smem:[#allocation0]]
  $region38: #{tpu_custom_call.1} parent=0
    _
  %s8 = ssub.s32 1, %s6
  %s9 = scalar_select 0, %s8, %s6
  // Predicated region
  $region2: #{tpu_custom_call.1} parent=0 // pred_check
    _
  $region3: #{tpu_custom_call.1} parent=0 // pred_check_branch
    %11 = sbr.rel (0) target = $region5
  $region4: #{tpu_custom_call.1} parent=0 // pred_region
    _
  $region5: #{tpu_custom_call.1} parent=0 // pred_fallthru
    _
  // Predicated region
  $region6: #{tpu_custom_call.1} parent=0 // pred_check
    _
  $region7: #{tpu_custom_call.1} parent=0 // pred_check_branch
    %13 = sbr.rel (0) target = $region9
  $region8: #{tpu_custom_call.1} parent=0 // pred_region
    _
  $region9: #{tpu_custom_call.1} parent=0 // pred_fallthru
    _
  // Predicated region
  $region10: #{tpu_custom_call.1} parent=0 // pred_check
    _
  $region11: #{tpu_custom_call.1} parent=0 // pred_check_branch
    %15 = sbr.rel (0) target = $region13
  $region12: #{tpu_custom_call.1} parent=0 // pred_region
    _
  $region13: #{tpu_custom_call.1} parent=0 // pred_fallthru
    _
  // Predicated region
  $region14: #{tpu_custom_call.1} parent=0 // pred_check
    _
  $region15: #{tpu_custom_call.1} parent=0 // pred_check_branch
    %17 = sbr.rel (0) target = $region17
  $region16: #{tpu_custom_call.1} parent=0 // pred_region
    _
  $region17: #{tpu_custom_call.1} parent=0 // pred_fallthru
    _
  // Predicated region
  $region18: #{tpu_custom_call.1} parent=0 // pred_check
    _
  $region19: #{tpu_custom_call.1} parent=0 // pred_check_branch
    %19 = sbr.rel (0) target = $region21
  $region20: #{tpu_custom_call.1} parent=0 // pred_region
    _
  $region21: #{tpu_custom_call.1} parent=0 // pred_fallthru
    _
  %p20 = scmp.eq.s32.totalorder 0, 0
  // Predicated region
  $region22: #{tpu_custom_call.1} parent=0 // pred_check
    %p21 = pneg %p20
  $region23: #{tpu_custom_call.1} parent=0 // pred_check_branch
    %23 = sbr.rel (%p21) target = $region25
  $region24: #{tpu_custom_call.1} parent=0 // pred_region
    %vm24 = vcmask 130048
    %25 = vst.msk [vmem:[#allocation2] sm:$0xff] %vm24, 0.0
    %26 = vst.msk [vmem:[#allocation2 + $0x8] sm:$0xff] %vm24, 0.0
    %27 = vst.msk [vmem:[#allocation2 + $0x10] sm:$0xff] %vm24, 0.0
    %28 = vst.msk [vmem:[#allocation2 + $0x18] sm:$0xff] %vm24, 0.0
    %29 = vst.msk [vmem:[#allocation2 + $0x20] sm:$0xff] %vm24, 0.0
    %30 = vst.msk [vmem:[#allocation2 + $0x28] sm:$0xff] %vm24, 0.0
    %31 = vst.msk [vmem:[#allocation2 + $0x30] sm:$0xff] %vm24, 0.0
    %32 = vst.msk [vmem:[#allocation2 + $0x38] sm:$0xff] %vm24, 0.0
    %33 = vst.msk [vmem:[#allocation2 + $0x40] sm:$0xff] %vm24, 0.0
    %34 = vst.msk [vmem:[#allocation2 + $0x48] sm:$0xff] %vm24, 0.0
    %35 = vst.msk [vmem:[#allocation2 + $0x50] sm:$0xff] %vm24, 0.0
    %36 = vst.msk [vmem:[#allocation2 + $0x58] sm:$0xff] %vm24, 0.0
    %37 = vst.msk [vmem:[#allocation2 + $0x60] sm:$0xff] %vm24, 0.0
    %38 = vst.msk [vmem:[#allocation2 + $0x68] sm:$0xff] %vm24, 0.0
    %39 = vst.msk [vmem:[#allocation2 + $0x70] sm:$0xff] %vm24, 0.0
    %40 = vst.msk [vmem:[#allocation2 + $0x78] sm:$0xff] %vm24, 0.0
    %41 = vst.msk [vmem:[#allocation2 + $0x80] sm:$0xff] %vm24, 0.0
    %42 = vst.msk [vmem:[#allocation2 + $0x88] sm:$0xff] %vm24, 0.0
    %43 = vst.msk [vmem:[#allocation2 + $0x90] sm:$0xff] %vm24, 0.0
    %44 = vst.msk [vmem:[#allocation2 + $0x98] sm:$0xff] %vm24, 0.0
    %45 = vst.msk [vmem:[#allocation2 + $0xa0] sm:$0xff] %vm24, 0.0
    %46 = vst.msk [vmem:[#allocation2 + $0xa8] sm:$0xff] %vm24, 0.0
    %47 = vst.msk [vmem:[#allocation2 + $0xb0] sm:$0xff] %vm24, 0.0
    %48 = vst.msk [vmem:[#allocation2 + $0xb8] sm:$0xff] %vm24, 0.0
    %49 = vst.msk [vmem:[#allocation2 + $0xc0] sm:$0xff] %vm24, 0.0
    %50 = vst.msk [vmem:[#allocation2 + $0xc8] sm:$0xff] %vm24, 0.0
    %51 = vst.msk [vmem:[#allocation2 + $0xd0] sm:$0xff] %vm24, 0.0
    %52 = vst.msk [vmem:[#allocation2 + $0xd8] sm:$0xff] %vm24, 0.0
    %53 = vst.msk [vmem:[#allocation2 + $0xe0] sm:$0xff] %vm24, 0.0
    %54 = vst.msk [vmem:[#allocation2 + $0xe8] sm:$0xff] %vm24, 0.0
    %55 = vst.msk [vmem:[#allocation2 + $0xf0] sm:$0xff] %vm24, 0.0
    %56 = vst.msk [vmem:[#allocation2 + $0xf8] sm:$0xff] %vm24, 0.0
    %57 = vst.msk [vmem:[#allocation2 + $0x100] sm:$0xff] %vm24, 0.0
    %58 = vst.msk [vmem:[#allocation2 + $0x108] sm:$0xff] %vm24, 0.0
    %59 = vst.msk [vmem:[#allocation2 + $0x110] sm:$0xff] %vm24, 0.0
    %60 = vst.msk [vmem:[#allocation2 + $0x118] sm:$0xff] %vm24, 0.0
    %61 = vst.msk [vmem:[#allocation2 + $0x120] sm:$0xff] %vm24, 0.0
    %62 = vst.msk [vmem:[#allocation2 + $0x128] sm:$0xff] %vm24, 0.0
    %63 = vst.msk [vmem:[#allocation2 + $0x130] sm:$0xff] %vm24, 0.0
    %64 = vst.msk [vmem:[#allocation2 + $0x138] sm:$0xff] %vm24, 0.0
    %65 = vst.msk [vmem:[#allocation2 + $0x140] sm:$0xff] %vm24, 0.0
    %66 = vst.msk [vmem:[#allocation2 + $0x148] sm:$0xff] %vm24, 0.0
    %67 = vst.msk [vmem:[#allocation2 + $0x150] sm:$0xff] %vm24, 0.0
    %68 = vst.msk [vmem:[#allocation2 + $0x158] sm:$0xff] %vm24, 0.0
    %69 = vst.msk [vmem:[#allocation2 + $0x160] sm:$0xff] %vm24, 0.0
    %70 = vst.msk [vmem:[#allocation2 + $0x168] sm:$0xff] %vm24, 0.0
    %71 = vst.msk [vmem:[#allocation2 + $0x170] sm:$0xff] %vm24, 0.0
    %72 = vst.msk [vmem:[#allocation2 + $0x178] sm:$0xff] %vm24, 0.0
    %73 = vst.msk [vmem:[#allocation2 + $0x180] sm:$0xff] %vm24, 0.0
    %74 = vst.msk [vmem:[#allocation2 + $0x188] sm:$0xff] %vm24, 0.0
    %75 = vst.msk [vmem:[#allocation2 + $0x190] sm:$0xff] %vm24, 0.0
    %76 = vst.msk [vmem:[#allocation2 + $0x198] sm:$0xff] %vm24, 0.0
    %77 = vst.msk [vmem:[#allocation2 + $0x1a0] sm:$0xff] %vm24, 0.0
    %78 = vst.msk [vmem:[#allocation2 + $0x1a8] sm:$0xff] %vm24, 0.0
    %79 = vst.msk [vmem:[#allocation2 + $0x1b0] sm:$0xff] %vm24, 0.0
    %80 = vst.msk [vmem:[#allocation2 + $0x1b8] sm:$0xff] %vm24, 0.0
    %81 = vst.msk [vmem:[#allocation2 + $0x1c0] sm:$0xff] %vm24, 0.0
    %82 = vst.msk [vmem:[#allocation2 + $0x1c8] sm:$0xff] %vm24, 0.0
    %83 = vst.msk [vmem:[#allocation2 + $0x1d0] sm:$0xff] %vm24, 0.0
    %84 = vst.msk [vmem:[#allocation2 + $0x1d8] sm:$0xff] %vm24, 0.0
    %85 = vst.msk [vmem:[#allocation2 + $0x1e0] sm:$0xff] %vm24, 0.0
    %86 = vst.msk [vmem:[#allocation2 + $0x1e8] sm:$0xff] %vm24, 0.0
    %87 = vst.msk [vmem:[#allocation2 + $0x1f0] sm:$0xff] %vm24, 0.0
    %88 = vst.msk [vmem:[#allocation2 + $0x1f8] sm:$0xff] %vm24, 0.0
  $region25: #{tpu_custom_call.1} parent=0 // pred_fallthru
    _
  %v89 = vld [vmem:[%s0] sm:$0xff]
  %v90 = vld [vmem:[%s0 + $0x8] sm:$0xff]
  %v91 = vld [vmem:[%s0 + $0x10] sm:$0xff]
  %v92 = vld [vmem:[%s0 + $0x18] sm:$0xff]
  %v93 = vld [vmem:[%s0 + $0x20] sm:$0xff]
  %v94 = vld [vmem:[%s0 + $0x28] sm:$0xff]
  %v95 = vld [vmem:[%s0 + $0x30] sm:$0xff]
  %v96 = vld [vmem:[%s0 + $0x38] sm:$0xff]
  %v97 = vld [vmem:[%s0 + $0x40] sm:$0xff]
  %v98 = vld [vmem:[%s0 + $0x48] sm:$0xff]
  %v99 = vld [vmem:[%s0 + $0x50] sm:$0xff]
  %v100 = vld [vmem:[%s0 + $0x58] sm:$0xff]
  %v101 = vld [vmem:[%s0 + $0x60] sm:$0xff]
  %v102 = vld [vmem:[%s0 + $0x68] sm:$0xff]
  %v103 = vld [vmem:[%s0 + $0x70] sm:$0xff]
  %v104 = vld [vmem:[%s0 + $0x78] sm:$0xff]
  %v105 = vld [vmem:[%s0 + $0x80] sm:$0xff]
  %v106 = vld [vmem:[%s0 + $0x88] sm:$0xff]
  %v107 = vld [vmem:[%s0 + $0x90] sm:$0xff]
  %v108 = vld [vmem:[%s0 + $0x98] sm:$0xff]
  %v109 = vld [vmem:[%s0 + $0xa0] sm:$0xff]
  %v110 = vld [vmem:[%s0 + $0xa8] sm:$0xff]
  %v111 = vld [vmem:[%s0 + $0xb0] sm:$0xff]
  %v112 = vld [vmem:[%s0 + $0xb8] sm:$0xff]
  %v113 = vld [vmem:[%s0 + $0xc0] sm:$0xff]
  %v114 = vld [vmem:[%s0 + $0xc8] sm:$0xff]
  %v115 = vld [vmem:[%s0 + $0xd0] sm:$0xff]
  %v116 = vld [vmem:[%s0 + $0xd8] sm:$0xff]
  %v117 = vld [vmem:[%s0 + $0xe0] sm:$0xff]
  %v118 = vld [vmem:[%s0 + $0xe8] sm:$0xff]
  %v119 = vld [vmem:[%s0 + $0xf0] sm:$0xff]
  %v120 = vld [vmem:[%s0 + $0xf8] sm:$0xff]
  %v121 = vld [vmem:[%s0 + $0x100] sm:$0xff]
  %v122 = vld [vmem:[%s0 + $0x108] sm:$0xff]
  %v123 = vld [vmem:[%s0 + $0x110] sm:$0xff]
  %v124 = vld [vmem:[%s0 + $0x118] sm:$0xff]
  %v125 = vld [vmem:[%s0 + $0x120] sm:$0xff]
  %v126 = vld [vmem:[%s0 + $0x128] sm:$0xff]
  %v127 = vld [vmem:[%s0 + $0x130] sm:$0xff]
  %v128 = vld [vmem:[%s0 + $0x138] sm:$0xff]
  %v129 = vld [vmem:[%s0 + $0x140] sm:$0xff]
  %v130 = vld [vmem:[%s0 + $0x148] sm:$0xff]
  %v131 = vld [vmem:[%s0 + $0x150] sm:$0xff]
  %v132 = vld [vmem:[%s0 + $0x158] sm:$0xff]
  %v133 = vld [vmem:[%s0 + $0x160] sm:$0xff]
  %v134 = vld [vmem:[%s0 + $0x168] sm:$0xff]
  %v135 = vld [vmem:[%s0 + $0x170] sm:$0xff]
  %v136 = vld [vmem:[%s0 + $0x178] sm:$0xff]
  %v137 = vld [vmem:[%s0 + $0x180] sm:$0xff]
  %v138 = vld [vmem:[%s0 + $0x188] sm:$0xff]
  %v139 = vld [vmem:[%s0 + $0x190] sm:$0xff]
  %v140 = vld [vmem:[%s0 + $0x198] sm:$0xff]
  %v141 = vld [vmem:[%s0 + $0x1a0] sm:$0xff]
  %v142 = vld [vmem:[%s0 + $0x1a8] sm:$0xff]
  %v143 = vld [vmem:[%s0 + $0x1b0] sm:$0xff]
  %v144 = vld [vmem:[%s0 + $0x1b8] sm:$0xff]
  %v145 = vld [vmem:[%s0 + $0x1c0] sm:$0xff]
  %v146 = vld [vmem:[%s0 + $0x1c8] sm:$0xff]
  %v147 = vld [vmem:[%s0 + $0x1d0] sm:$0xff]
  %v148 = vld [vmem:[%s0 + $0x1d8] sm:$0xff]
  %v149 = vld [vmem:[%s0 + $0x1e0] sm:$0xff]
  %v150 = vld [vmem:[%s0 + $0x1e8] sm:$0xff]
  %v151 = vld [vmem:[%s0 + $0x1f0] sm:$0xff]
  %v152 = vld [vmem:[%s0 + $0x1f8] sm:$0xff]
  %v153 = vld [vmem:[%s1] sm:$0xff]
  %v154 = vld [vmem:[%s1 + $0x8] sm:$0xff]
  %v155 = vld [vmem:[%s2] sm:$0x1]
  %v157 = vperm.slane %v155, 0
  %vm159 = vcmask 130048
  %v161 = vsel %vm159, %v89, 0
  %v164 = vsel %vm159, %v90, 0
  %v167 = vsel %vm159, %v91, 0
  %v170 = vsel %vm159, %v92, 0
  %v173 = vsel %vm159, %v93, 0
  %v176 = vsel %vm159, %v94, 0
  %v179 = vsel %vm159, %v95, 0
  %v182 = vsel %vm159, %v96, 0
  %v185 = vsel %vm159, %v97, 0
  %v188 = vsel %vm159, %v98, 0
  %v191 = vsel %vm159, %v99, 0
  %v194 = vsel %vm159, %v100, 0
  %v197 = vsel %vm159, %v101, 0
  %v200 = vsel %vm159, %v102, 0
  %v203 = vsel %vm159, %v103, 0
  %v206 = vsel %vm159, %v104, 0
  %v209 = vsel %vm159, %v105, 0
  %v212 = vsel %vm159, %v106, 0
  %v215 = vsel %vm159, %v107, 0
  %v218 = vsel %vm159, %v108, 0
  %v221 = vsel %vm159, %v109, 0
  %v224 = vsel %vm159, %v110, 0
  %v227 = vsel %vm159, %v111, 0
  %v230 = vsel %vm159, %v112, 0
  %v233 = vsel %vm159, %v113, 0
  %v236 = vsel %vm159, %v114, 0
  %v239 = vsel %vm159, %v115, 0
  %v242 = vsel %vm159, %v116, 0
  %v245 = vsel %vm159, %v117, 0
  %v248 = vsel %vm159, %v118, 0
  %v251 = vsel %vm159, %v119, 0
  %v254 = vsel %vm159, %v120, 0
  %v257 = vsel %vm159, %v121, 0
  %v260 = vsel %vm159, %v122, 0
  %v263 = vsel %vm159, %v123, 0
  %v266 = vsel %vm159, %v124, 0
  %v269 = vsel %vm159, %v125, 0
  %v272 = vsel %vm159, %v126, 0
  %v275 = vsel %vm159, %v127, 0
  %v278 = vsel %vm159, %v128, 0
  %v281 = vsel %vm159, %v129, 0
  %v284 = vsel %vm159, %v130, 0
  %v287 = vsel %vm159, %v131, 0
  %v290 = vsel %vm159, %v132, 0
  %v293 = vsel %vm159, %v133, 0
  %v296 = vsel %vm159, %v134, 0
  %v299 = vsel %vm159, %v135, 0
  %v302 = vsel %vm159, %v136, 0
  %v305 = vsel %vm159, %v137, 0
  %v308 = vsel %vm159, %v138, 0
  %v311 = vsel %vm159, %v139, 0
  %v314 = vsel %vm159, %v140, 0
  %v317 = vsel %vm159, %v141, 0
  %v320 = vsel %vm159, %v142, 0
  %v323 = vsel %vm159, %v143, 0
  %v326 = vsel %vm159, %v144, 0
  %v329 = vsel %vm159, %v145, 0
  %v332 = vsel %vm159, %v146, 0
  %v335 = vsel %vm159, %v147, 0
  %v338 = vsel %vm159, %v148, 0
  %v341 = vsel %vm159, %v149, 0
  %v344 = vsel %vm159, %v150, 0
  %v347 = vsel %vm159, %v151, 0
  %v350 = vsel %vm159, %v152, 0
  %352 = vmatpush.msra.mxu0 0.0
  %353 = vmatpush.msra.mxu0 0.0
  %354 = vmatpush.msra.mxu0 0.0
  %355 = vmatpush.msra.mxu0 0.0
  %356 = vmatpush.msra.mxu0 0.0
  %357 = vmatpush.msra.mxu0 0.0
  %358 = vmatpush.msra.mxu0 0.0
  %359 = vmatpush.msra.mxu0 0.0
  %360 = vmatpush.msra.mxu0 0.0
  %361 = vmatpush.msra.mxu0 0.0
  %362 = vmatpush.msra.mxu0 0.0
  %363 = vmatpush.msra.mxu0 0.0
  %364 = vmatpush.msra.mxu0 0.0
  %365 = vmatpush.msra.mxu0 0.0
  %366 = vmatpush.msra.mxu0 %v154
  %367 = vmatpush.msra.mxu0 %v153
  %368 = vmatmul.f32.gmra.mxu0 %v161
  %v369 = vpop.f32.mrf.mxu0
  %v370 = vadd.f32 %v157, %v369
  %371 = vmatmul.f32.gmra.mxu0 %v164
  %v372 = vpop.f32.mrf.mxu0
  %v373 = vadd.f32 %v157, %v372
  %374 = vmatmul.f32.gmra.mxu0 %v167
  %v375 = vpop.f32.mrf.mxu0
  %v376 = vadd.f32 %v157, %v375
  %377 = vmatmul.f32.gmra.mxu0 %v170
  %v378 = vpop.f32.mrf.mxu0
  %v379 = vadd.f32 %v157, %v378
  %380 = vmatmul.f32.gmra.mxu0 %v173
  %v381 = vpop.f32.mrf.mxu0
  %v382 = vadd.f32 %v157, %v381
  %383 = vmatmul.f32.gmra.mxu0 %v176
  %v384 = vpop.f32.mrf.mxu0
  %v385 = vadd.f32 %v157, %v384
  %386 = vmatmul.f32.gmra.mxu0 %v179
  %v387 = vpop.f32.mrf.mxu0
  %v388 = vadd.f32 %v157, %v387
  %389 = vmatmul.f32.gmra.mxu0 %v182
  %v390 = vpop.f32.mrf.mxu0
  %v391 = vadd.f32 %v157, %v390
  %392 = vmatmul.f32.gmra.mxu0 %v185
  %v393 = vpop.f32.mrf.mxu0
  %v394 = vadd.f32 %v157, %v393
  %395 = vmatmul.f32.gmra.mxu0 %v188
  %v396 = vpop.f32.mrf.mxu0
  %v397 = vadd.f32 %v157, %v396
  %398 = vmatmul.f32.gmra.mxu0 %v191
  %v399 = vpop.f32.mrf.mxu0
  %v400 = vadd.f32 %v157, %v399
  %401 = vmatmul.f32.gmra.mxu0 %v194
  %v402 = vpop.f32.mrf.mxu0
  %v403 = vadd.f32 %v157, %v402
  %404 = vmatmul.f32.gmra.mxu0 %v197
  %v405 = vpop.f32.mrf.mxu0
  %v406 = vadd.f32 %v157, %v405
  %407 = vmatmul.f32.gmra.mxu0 %v200
  %v408 = vpop.f32.mrf.mxu0
  %v409 = vadd.f32 %v157, %v408
  %410 = vmatmul.f32.gmra.mxu0 %v203
  %v411 = vpop.f32.mrf.mxu0
  %v412 = vadd.f32 %v157, %v411
  %413 = vmatmul.f32.gmra.mxu0 %v206
  %v414 = vpop.f32.mrf.mxu0
  %v415 = vadd.f32 %v157, %v414
  %416 = vmatmul.f32.gmra.mxu0 %v209
  %v417 = vpop.f32.mrf.mxu0
  %v418 = vadd.f32 %v157, %v417
  %419 = vmatmul.f32.gmra.mxu0 %v212
  %v420 = vpop.f32.mrf.mxu0
  %v421 = vadd.f32 %v157, %v420
  %422 = vmatmul.f32.gmra.mxu0 %v215
  %v423 = vpop.f32.mrf.mxu0
  %v424 = vadd.f32 %v157, %v423
  %425 = vmatmul.f32.gmra.mxu0 %v218
  %v426 = vpop.f32.mrf.mxu0
  %v427 = vadd.f32 %v157, %v426
  %428 = vmatmul.f32.gmra.mxu0 %v221
  %v429 = vpop.f32.mrf.mxu0
  %v430 = vadd.f32 %v157, %v429
  %431 = vmatmul.f32.gmra.mxu0 %v224
  %v432 = vpop.f32.mrf.mxu0
  %v433 = vadd.f32 %v157, %v432
  %434 = vmatmul.f32.gmra.mxu0 %v227
  %v435 = vpop.f32.mrf.mxu0
  %v436 = vadd.f32 %v157, %v435
  %437 = vmatmul.f32.gmra.mxu0 %v230
  %v438 = vpop.f32.mrf.mxu0
  %v439 = vadd.f32 %v157, %v438
  %440 = vmatmul.f32.gmra.mxu0 %v233
  %v441 = vpop.f32.mrf.mxu0
  %v442 = vadd.f32 %v157, %v441
  %443 = vmatmul.f32.gmra.mxu0 %v236
  %v444 = vpop.f32.mrf.mxu0
  %v445 = vadd.f32 %v157, %v444
  %446 = vmatmul.f32.gmra.mxu0 %v239
  %v447 = vpop.f32.mrf.mxu0
  %v448 = vadd.f32 %v157, %v447
  %449 = vmatmul.f32.gmra.mxu0 %v242
  %v450 = vpop.f32.mrf.mxu0
  %v451 = vadd.f32 %v157, %v450
  %452 = vmatmul.f32.gmra.mxu0 %v245
  %v453 = vpop.f32.mrf.mxu0
  %v454 = vadd.f32 %v157, %v453
  %455 = vmatmul.f32.gmra.mxu0 %v248
  %v456 = vpop.f32.mrf.mxu0
  %v457 = vadd.f32 %v157, %v456
  %458 = vmatmul.f32.gmra.mxu0 %v251
  %v459 = vpop.f32.mrf.mxu0
  %v460 = vadd.f32 %v157, %v459
  %461 = vmatmul.f32.gmra.mxu0 %v254
  %v462 = vpop.f32.mrf.mxu0
  %v463 = vadd.f32 %v157, %v462
  %464 = vmatmul.f32.gmra.mxu0 %v257
  %v465 = vpop.f32.mrf.mxu0
  %v466 = vadd.f32 %v157, %v465
  %467 = vmatmul.f32.gmra.mxu0 %v260
  %v468 = vpop.f32.mrf.mxu0
  %v469 = vadd.f32 %v157, %v468
  %470 = vmatmul.f32.gmra.mxu0 %v263
  %v471 = vpop.f32.mrf.mxu0
  %v472 = vadd.f32 %v157, %v471
  %473 = vmatmul.f32.gmra.mxu0 %v266
  %v474 = vpop.f32.mrf.mxu0
  %v475 = vadd.f32 %v157, %v474
  %476 = vmatmul.f32.gmra.mxu0 %v269
  %v477 = vpop.f32.mrf.mxu0
  %v478 = vadd.f32 %v157, %v477
  %479 = vmatmul.f32.gmra.mxu0 %v272
  %v480 = vpop.f32.mrf.mxu0
  %v481 = vadd.f32 %v157, %v480
  %482 = vmatmul.f32.gmra.mxu0 %v275
  %v483 = vpop.f32.mrf.mxu0
  %v484 = vadd.f32 %v157, %v483
  %485 = vmatmul.f32.gmra.mxu0 %v278
  %v486 = vpop.f32.mrf.mxu0
  %v487 = vadd.f32 %v157, %v486
  %488 = vmatmul.f32.gmra.mxu0 %v281
  %v489 = vpop.f32.mrf.mxu0
  %v490 = vadd.f32 %v157, %v489
  %491 = vmatmul.f32.gmra.mxu0 %v284
  %v492 = vpop.f32.mrf.mxu0
  %v493 = vadd.f32 %v157, %v492
  %494 = vmatmul.f32.gmra.mxu0 %v287
  %v495 = vpop.f32.mrf.mxu0
  %v496 = vadd.f32 %v157, %v495
  %497 = vmatmul.f32.gmra.mxu0 %v290
  %v498 = vpop.f32.mrf.mxu0
  %v499 = vadd.f32 %v157, %v498
  %500 = vmatmul.f32.gmra.mxu0 %v293
  %v501 = vpop.f32.mrf.mxu0
  %v502 = vadd.f32 %v157, %v501
  %503 = vmatmul.f32.gmra.mxu0 %v296
  %v504 = vpop.f32.mrf.mxu0
  %v505 = vadd.f32 %v157, %v504
  %506 = vmatmul.f32.gmra.mxu0 %v299
  %v507 = vpop.f32.mrf.mxu0
  %v508 = vadd.f32 %v157, %v507
  %509 = vmatmul.f32.gmra.mxu0 %v302
  %v510 = vpop.f32.mrf.mxu0
  %v511 = vadd.f32 %v157, %v510
  %512 = vmatmul.f32.gmra.mxu0 %v305
  %v513 = vpop.f32.mrf.mxu0
  %v514 = vadd.f32 %v157, %v513
  %515 = vmatmul.f32.gmra.mxu0 %v308
  %v516 = vpop.f32.mrf.mxu0
  %v517 = vadd.f32 %v157, %v516
  %518 = vmatmul.f32.gmra.mxu0 %v311
  %v519 = vpop.f32.mrf.mxu0
  %v520 = vadd.f32 %v157, %v519
  %521 = vmatmul.f32.gmra.mxu0 %v314
  %v522 = vpop.f32.mrf.mxu0
  %v523 = vadd.f32 %v157, %v522
  %524 = vmatmul.f32.gmra.mxu0 %v317
  %v525 = vpop.f32.mrf.mxu0
  %v526 = vadd.f32 %v157, %v525
  %527 = vmatmul.f32.gmra.mxu0 %v320
  %v528 = vpop.f32.mrf.mxu0
  %v529 = vadd.f32 %v157, %v528
  %530 = vmatmul.f32.gmra.mxu0 %v323
  %v531 = vpop.f32.mrf.mxu0
  %v532 = vadd.f32 %v157, %v531
  %533 = vmatmul.f32.gmra.mxu0 %v326
  %v534 = vpop.f32.mrf.mxu0
  %v535 = vadd.f32 %v157, %v534
  %536 = vmatmul.f32.gmra.mxu0 %v329
  %v537 = vpop.f32.mrf.mxu0
  %v538 = vadd.f32 %v157, %v537
  %539 = vmatmul.f32.gmra.mxu0 %v332
  %v540 = vpop.f32.mrf.mxu0
  %v541 = vadd.f32 %v157, %v540
  %542 = vmatmul.f32.gmra.mxu0 %v335
  %v543 = vpop.f32.mrf.mxu0
  %v544 = vadd.f32 %v157, %v543
  %545 = vmatmul.f32.gmra.mxu0 %v338
  %v546 = vpop.f32.mrf.mxu0
  %v547 = vadd.f32 %v157, %v546
  %548 = vmatmul.f32.gmra.mxu0 %v341
  %v549 = vpop.f32.mrf.mxu0
  %v550 = vadd.f32 %v157, %v549
  %551 = vmatmul.f32.gmra.mxu0 %v344
  %v552 = vpop.f32.mrf.mxu0
  %v553 = vadd.f32 %v157, %v552
  %554 = vmatmul.f32.gmra.mxu0 %v347
  %v555 = vpop.f32.mrf.mxu0
  %v556 = vadd.f32 %v157, %v555
  %557 = vmatmul.f32.gmra.mxu0 %v350
  %v558 = vpop.f32.mrf.mxu0
  %v559 = vadd.f32 %v157, %v558
  %560 = vdwg.mxu0
  %v561 = vmul.f32 %v370, 0.70710677
  %v562 = vmul.f32 %v373, 0.70710677
  %v563 = vmul.f32 %v376, 0.70710677
  %v564 = vmul.f32 %v379, 0.70710677
  %v565 = vmul.f32 %v382, 0.70710677
  %v566 = vmul.f32 %v385, 0.70710677
  %v567 = vmul.f32 %v388, 0.70710677
  %v568 = vmul.f32 %v391, 0.70710677
  %v569 = vmul.f32 %v394, 0.70710677
  %v570 = vmul.f32 %v397, 0.70710677
  %v571 = vmul.f32 %v400, 0.70710677
  %v572 = vmul.f32 %v403, 0.70710677
  %v573 = vmul.f32 %v406, 0.70710677
  %v574 = vmul.f32 %v409, 0.70710677
  %v575 = vmul.f32 %v412, 0.70710677
  %v576 = vmul.f32 %v415, 0.70710677
  %v577 = vmul.f32 %v418, 0.70710677
  %v578 = vmul.f32 %v421, 0.70710677
  %v579 = vmul.f32 %v424, 0.70710677
  %v580 = vmul.f32 %v427, 0.70710677
  %v581 = vmul.f32 %v430, 0.70710677
  %v582 = vmul.f32 %v433, 0.70710677
  %v583 = vmul.f32 %v436, 0.70710677
  %v584 = vmul.f32 %v439, 0.70710677
  %v585 = vmul.f32 %v442, 0.70710677
  %v586 = vmul.f32 %v445, 0.70710677
  %v587 = vmul.f32 %v448, 0.70710677
  %v588 = vmul.f32 %v451, 0.70710677
  %v589 = vmul.f32 %v454, 0.70710677
  %v590 = vmul.f32 %v457, 0.70710677
  %v591 = vmul.f32 %v460, 0.70710677
  %v592 = vmul.f32 %v463, 0.70710677
  %v593 = vmul.f32 %v466, 0.70710677
  %v594 = vmul.f32 %v469, 0.70710677
  %v595 = vmul.f32 %v472, 0.70710677
  %v596 = vmul.f32 %v475, 0.70710677
  %v597 = vmul.f32 %v478, 0.70710677
  %v598 = vmul.f32 %v481, 0.70710677
  %v599 = vmul.f32 %v484, 0.70710677
  %v600 = vmul.f32 %v487, 0.70710677
  %v601 = vmul.f32 %v490, 0.70710677
  %v602 = vmul.f32 %v493, 0.70710677
  %v603 = vmul.f32 %v496, 0.70710677
  %v604 = vmul.f32 %v499, 0.70710677
  %v605 = vmul.f32 %v502, 0.70710677
  %v606 = vmul.f32 %v505, 0.70710677
  %v607 = vmul.f32 %v508, 0.70710677
  %v608 = vmul.f32 %v511, 0.70710677
  %v609 = vmul.f32 %v514, 0.70710677
  %v610 = vmul.f32 %v517, 0.70710677
  %v611 = vmul.f32 %v520, 0.70710677
  %v612 = vmul.f32 %v523, 0.70710677
  %v613 = vmul.f32 %v526, 0.70710677
  %v614 = vmul.f32 %v529, 0.70710677
  %v615 = vmul.f32 %v532, 0.70710677
  %v616 = vmul.f32 %v535, 0.70710677
  %v617 = vmul.f32 %v538, 0.70710677
  %v618 = vmul.f32 %v541, 0.70710677
  %v619 = vmul.f32 %v544, 0.70710677
  %v620 = vmul.f32 %v547, 0.70710677
  %v621 = vmul.f32 %v550, 0.70710677
  %v622 = vmul.f32 %v553, 0.70710677
  %v623 = vmul.f32 %v556, 0.70710677
  %v624 = vmul.f32 %v559, 0.70710677
  %v625 = vand.u32 2147483647, %v561
  %v626 = vand.u32 2147483647, %v562
  %v627 = vand.u32 2147483647, %v563
  %v628 = vand.u32 2147483647, %v564
  %v629 = vand.u32 2147483647, %v565
  %v630 = vand.u32 2147483647, %v566
  %v631 = vand.u32 2147483647, %v567
  %v632 = vand.u32 2147483647, %v568
  %v633 = vand.u32 2147483647, %v569
  %v634 = vand.u32 2147483647, %v570
  %v635 = vand.u32 2147483647, %v571
  %v636 = vand.u32 2147483647, %v572
  %v637 = vand.u32 2147483647, %v573
  %v638 = vand.u32 2147483647, %v574
  %v639 = vand.u32 2147483647, %v575
  %v640 = vand.u32 2147483647, %v576
  %v641 = vand.u32 2147483647, %v577
  %v642 = vand.u32 2147483647, %v578
  %v643 = vand.u32 2147483647, %v579
  %v644 = vand.u32 2147483647, %v580
  %v645 = vand.u32 2147483647, %v581
  %v646 = vand.u32 2147483647, %v582
  %v647 = vand.u32 2147483647, %v583
  %v648 = vand.u32 2147483647, %v584
  %v649 = vand.u32 2147483647, %v585
  %v650 = vand.u32 2147483647, %v586
  %v651 = vand.u32 2147483647, %v587
  %v652 = vand.u32 2147483647, %v588
  %v653 = vand.u32 2147483647, %v589
  %v654 = vand.u32 2147483647, %v590
  %v655 = vand.u32 2147483647, %v591
  %v656 = vand.u32 2147483647, %v592
  %v657 = vand.u32 2147483647, %v593
  %v658 = vand.u32 2147483647, %v594
  %v659 = vand.u32 2147483647, %v595
  %v660 = vand.u32 2147483647, %v596
  %v661 = vand.u32 2147483647, %v597
  %v662 = vand.u32 2147483647, %v598
  %v663 = vand.u32 2147483647, %v599
  %v664 = vand.u32 2147483647, %v600
  %v665 = vand.u32 2147483647, %v601
  %v666 = vand.u32 2147483647, %v602
  %v667 = vand.u32 2147483647, %v603
  %v668 = vand.u32 2147483647, %v604
  %v669 = vand.u32 2147483647, %v605
  %v670 = vand.u32 2147483647, %v606
  %v671 = vand.u32 2147483647, %v607
  %v672 = vand.u32 2147483647, %v608
  %v673 = vand.u32 2147483647, %v609
  %v674 = vand.u32 2147483647, %v610
  %v675 = vand.u32 2147483647, %v611
  %v676 = vand.u32 2147483647, %v612
  %v677 = vand.u32 2147483647, %v613
  %v678 = vand.u32 2147483647, %v614
  %v679 = vand.u32 2147483647, %v615
  %v680 = vand.u32 2147483647, %v616
  %v681 = vand.u32 2147483647, %v617
  %v682 = vand.u32 2147483647, %v618
  %v683 = vand.u32 2147483647, %v619
  %v684 = vand.u32 2147483647, %v620
  %v685 = vand.u32 2147483647, %v621
  %v686 = vand.u32 2147483647, %v622
  %v687 = vand.u32 2147483647, %v623
  %v688 = vand.u32 2147483647, %v624
  %v689 = vmul.f32 %v625, 0.3275911
  %v690 = vmul.f32 %v626, 0.3275911
  %v691 = vmul.f32 %v627, 0.3275911
  %v692 = vmul.f32 %v628, 0.3275911
  %v693 = vmul.f32 %v629, 0.3275911
  %v694 = vmul.f32 %v630, 0.3275911
  %v695 = vmul.f32 %v631, 0.3275911
  %v696 = vmul.f32 %v632, 0.3275911
  %v697 = vmul.f32 %v633, 0.3275911
  %v698 = vmul.f32 %v634, 0.3275911
  %v699 = vmul.f32 %v635, 0.3275911
  %v700 = vmul.f32 %v636, 0.3275911
  %v701 = vmul.f32 %v637, 0.3275911
  %v702 = vmul.f32 %v638, 0.3275911
  %v703 = vmul.f32 %v639, 0.3275911
  %v704 = vmul.f32 %v640, 0.3275911
  %v705 = vmul.f32 %v641, 0.3275911
  %v706 = vmul.f32 %v642, 0.3275911
  %v707 = vmul.f32 %v643, 0.3275911
  %v708 = vmul.f32 %v644, 0.3275911
  %v709 = vmul.f32 %v645, 0.3275911
  %v710 = vmul.f32 %v646, 0.3275911
  %v711 = vmul.f32 %v647, 0.3275911
  %v712 = vmul.f32 %v648, 0.3275911
  %v713 = vmul.f32 %v649, 0.3275911
  %v714 = vmul.f32 %v650, 0.3275911
  %v715 = vmul.f32 %v651, 0.3275911
  %v716 = vmul.f32 %v652, 0.3275911
  %v717 = vmul.f32 %v653, 0.3275911
  %v718 = vmul.f32 %v654, 0.3275911
  %v719 = vmul.f32 %v655, 0.3275911
  %v720 = vmul.f32 %v656, 0.3275911
  %v721 = vmul.f32 %v657, 0.3275911
  %v722 = vmul.f32 %v658, 0.3275911
  %v723 = vmul.f32 %v659, 0.3275911
  %v724 = vmul.f32 %v660, 0.3275911
  %v725 = vmul.f32 %v661, 0.3275911
  %v726 = vmul.f32 %v662, 0.3275911
  %v727 = vmul.f32 %v663, 0.3275911
  %v728 = vmul.f32 %v664, 0.3275911
  %v729 = vmul.f32 %v665, 0.3275911
  %v730 = vmul.f32 %v666, 0.3275911
  %v731 = vmul.f32 %v667, 0.3275911
  %v732 = vmul.f32 %v668, 0.3275911
  %v733 = vmul.f32 %v669, 0.3275911
  %v734 = vmul.f32 %v670, 0.3275911
  %v735 = vmul.f32 %v671, 0.3275911
  %v736 = vmul.f32 %v672, 0.3275911
  %v737 = vmul.f32 %v673, 0.3275911
  %v738 = vmul.f32 %v674, 0.3275911
  %v739 = vmul.f32 %v675, 0.3275911
  %v740 = vmul.f32 %v676, 0.3275911
  %v741 = vmul.f32 %v677, 0.3275911
  %v742 = vmul.f32 %v678, 0.3275911
  %v743 = vmul.f32 %v679, 0.3275911
  %v744 = vmul.f32 %v680, 0.3275911
  %v745 = vmul.f32 %v681, 0.3275911
  %v746 = vmul.f32 %v682, 0.3275911
  %v747 = vmul.f32 %v683, 0.3275911
  %v748 = vmul.f32 %v684, 0.3275911
  %v749 = vmul.f32 %v685, 0.3275911
  %v750 = vmul.f32 %v686, 0.3275911
  %v751 = vmul.f32 %v687, 0.3275911
  %v752 = vmul.f32 %v688, 0.3275911
  %v753 = vadd.f32 %v689, 1.0
  %v754 = vadd.f32 %v690, 1.0
  %v755 = vadd.f32 %v691, 1.0
  %v756 = vadd.f32 %v692, 1.0
  %v757 = vadd.f32 %v693, 1.0
  %v758 = vadd.f32 %v694, 1.0
  %v759 = vadd.f32 %v695, 1.0
  %v760 = vadd.f32 %v696, 1.0
  %v761 = vadd.f32 %v697, 1.0
  %v762 = vadd.f32 %v698, 1.0
  %v763 = vadd.f32 %v699, 1.0
  %v764 = vadd.f32 %v700, 1.0
  %v765 = vadd.f32 %v701, 1.0
  %v766 = vadd.f32 %v702, 1.0
  %v767 = vadd.f32 %v703, 1.0
  %v768 = vadd.f32 %v704, 1.0
  %v769 = vadd.f32 %v705, 1.0
  %v770 = vadd.f32 %v706, 1.0
  %v771 = vadd.f32 %v707, 1.0
  %v772 = vadd.f32 %v708, 1.0
  %v773 = vadd.f32 %v709, 1.0
  %v774 = vadd.f32 %v710, 1.0
  %v775 = vadd.f32 %v711, 1.0
  %v776 = vadd.f32 %v712, 1.0
  %v777 = vadd.f32 %v713, 1.0
  %v778 = vadd.f32 %v714, 1.0
  %v779 = vadd.f32 %v715, 1.0
  %v780 = vadd.f32 %v716, 1.0
  %v781 = vadd.f32 %v717, 1.0
  %v782 = vadd.f32 %v718, 1.0
  %v783 = vadd.f32 %v719, 1.0
  %v784 = vadd.f32 %v720, 1.0
  %v785 = vadd.f32 %v721, 1.0
  %v786 = vadd.f32 %v722, 1.0
  %v787 = vadd.f32 %v723, 1.0
  %v788 = vadd.f32 %v724, 1.0
  %v789 = vadd.f32 %v725, 1.0
  %v790 = vadd.f32 %v726, 1.0
  %v791 = vadd.f32 %v727, 1.0
  %v792 = vadd.f32 %v728, 1.0
  %v793 = vadd.f32 %v729, 1.0
  %v794 = vadd.f32 %v730, 1.0
  %v795 = vadd.f32 %v731, 1.0
  %v796 = vadd.f32 %v732, 1.0
  %v797 = vadd.f32 %v733, 1.0
  %v798 = vadd.f32 %v734, 1.0
  %v799 = vadd.f32 %v735, 1.0
  %v800 = vadd.f32 %v736, 1.0
  %v801 = vadd.f32 %v737, 1.0
  %v802 = vadd.f32 %v738, 1.0
  %v803 = vadd.f32 %v739, 1.0
  %v804 = vadd.f32 %v740, 1.0
  %v805 = vadd.f32 %v741, 1.0
  %v806 = vadd.f32 %v742, 1.0
  %v807 = vadd.f32 %v743, 1.0
  %v808 = vadd.f32 %v744, 1.0
  %v809 = vadd.f32 %v745, 1.0
  %v810 = vadd.f32 %v746, 1.0
  %v811 = vadd.f32 %v747, 1.0
  %v812 = vadd.f32 %v748, 1.0
  %v813 = vadd.f32 %v749, 1.0
  %v814 = vadd.f32 %v750, 1.0
  %v815 = vadd.f32 %v751, 1.0
  %v816 = vadd.f32 %v752, 1.0
  %v817 = vrcp.pop %v753
  %v818 = vmul.f32 %v753, %v817
  %v819 = vsub.f32 1.0, %v818
  %v820 = vmul.f32 %v817, %v819
  %v821 = vadd.f32 %v817, %v820
  %vm822 = vweird.f32 %v753
  %vm823 = vweird.f32 %v817
  %vm824 = vmor %vm822, %vm823
  %v825 = vsel %vm824, %v817, %v821
  %v826 = vand.u32 2147483647, %v753
  %vm827 = vcmp.eq.f32.partialorder %v826, 8.507059e+37
  %v828 = vand.u32 %v753, 2147483648
  %v829 = vor.u32 1.1754944e-38, %v828
  %v830 = vsel %vm827, %v829, %v825
  %v831 = vmul.f32 1.0, %v830
  %v832 = vrcp.pop %v754
  %v833 = vmul.f32 %v754, %v832
  %v834 = vsub.f32 1.0, %v833
  %v835 = vmul.f32 %v832, %v834
  %v836 = vadd.f32 %v832, %v835
  %vm837 = vweird.f32 %v754
  %vm838 = vweird.f32 %v832
  %vm839 = vmor %vm837, %vm838
  %v840 = vsel %vm839, %v832, %v836
  %v841 = vand.u32 2147483647, %v754
  %vm842 = vcmp.eq.f32.partialorder %v841, 8.507059e+37
  %v843 = vand.u32 %v754, 2147483648
  %v844 = vor.u32 1.1754944e-38, %v843
  %v845 = vsel %vm842, %v844, %v840
  %v846 = vmul.f32 1.0, %v845
  %v847 = vrcp.pop %v755
  %v848 = vmul.f32 %v755, %v847
  %v849 = vsub.f32 1.0, %v848
  %v850 = vmul.f32 %v847, %v849
  %v851 = vadd.f32 %v847, %v850
  %vm852 = vweird.f32 %v755
  %vm853 = vweird.f32 %v847
  %vm854 = vmor %vm852, %vm853
  %v855 = vsel %vm854, %v847, %v851
  %v856 = vand.u32 2147483647, %v755
  %vm857 = vcmp.eq.f32.partialorder %v856, 8.507059e+37
  %v858 = vand.u32 %v755, 2147483648
  %v859 = vor.u32 1.1754944e-38, %v858
  %v860 = vsel %vm857, %v859, %v855
  %v861 = vmul.f32 1.0, %v860
  %v862 = vrcp.pop %v756
  %v863 = vmul.f32 %v756, %v862
  %v864 = vsub.f32 1.0, %v863
  %v865 = vmul.f32 %v862, %v864
  %v866 = vadd.f32 %v862, %v865
  %vm867 = vweird.f32 %v756
  %vm868 = vweird.f32 %v862
  %vm869 = vmor %vm867, %vm868
  %v870 = vsel %vm869, %v862, %v866
  %v871 = vand.u32 2147483647, %v756
  %vm872 = vcmp.eq.f32.partialorder %v871, 8.507059e+37
  %v873 = vand.u32 %v756, 2147483648
  %v874 = vor.u32 1.1754944e-38, %v873
  %v875 = vsel %vm872, %v874, %v870
  %v876 = vmul.f32 1.0, %v875
  %v877 = vrcp.pop %v757
  %v878 = vmul.f32 %v757, %v877
  %v879 = vsub.f32 1.0, %v878
  %v880 = vmul.f32 %v877, %v879
  %v881 = vadd.f32 %v877, %v880
  %vm882 = vweird.f32 %v757
  %vm883 = vweird.f32 %v877
  %vm884 = vmor %vm882, %vm883
  %v885 = vsel %vm884, %v877, %v881
  %v886 = vand.u32 2147483647, %v757
  %vm887 = vcmp.eq.f32.partialorder %v886, 8.507059e+37
  %v888 = vand.u32 %v757, 2147483648
  %v889 = vor.u32 1.1754944e-38, %v888
  %v890 = vsel %vm887, %v889, %v885
  %v891 = vmul.f32 1.0, %v890
  %v892 = vrcp.pop %v758
  %v893 = vmul.f32 %v758, %v892
  %v894 = vsub.f32 1.0, %v893
  %v895 = vmul.f32 %v892, %v894
  %v896 = vadd.f32 %v892, %v895
  %vm897 = vweird.f32 %v758
  %vm898 = vweird.f32 %v892
  %vm899 = vmor %vm897, %vm898
  %v900 = vsel %vm899, %v892, %v896
  %v901 = vand.u32 2147483647, %v758
  %vm902 = vcmp.eq.f32.partialorder %v901, 8.507059e+37
  %v903 = vand.u32 %v758, 2147483648
  %v904 = vor.u32 1.1754944e-38, %v903
  %v905 = vsel %vm902, %v904, %v900
  %v906 = vmul.f32 1.0, %v905
  %v907 = vrcp.pop %v759
  %v908 = vmul.f32 %v759, %v907
  %v909 = vsub.f32 1.0, %v908
  %v910 = vmul.f32 %v907, %v909
  %v911 = vadd.f32 %v907, %v910
  %vm912 = vweird.f32 %v759
  %vm913 = vweird.f32 %v907
  %vm914 = vmor %vm912, %vm913
  %v915 = vsel %vm914, %v907, %v911
  %v916 = vand.u32 2147483647, %v759
  %vm917 = vcmp.eq.f32.partialorder %v916, 8.507059e+37
  %v918 = vand.u32 %v759, 2147483648
  %v919 = vor.u32 1.1754944e-38, %v918
  %v920 = vsel %vm917, %v919, %v915
  %v921 = vmul.f32 1.0, %v920
  %v922 = vrcp.pop %v760
  %v923 = vmul.f32 %v760, %v922
  %v924 = vsub.f32 1.0, %v923
  %v925 = vmul.f32 %v922, %v924
  %v926 = vadd.f32 %v922, %v925
  %vm927 = vweird.f32 %v760
  %vm928 = vweird.f32 %v922
  %vm929 = vmor %vm927, %vm928
  %v930 = vsel %vm929, %v922, %v926
  %v931 = vand.u32 2147483647, %v760
  %vm932 = vcmp.eq.f32.partialorder %v931, 8.507059e+37
  %v933 = vand.u32 %v760, 2147483648
  %v934 = vor.u32 1.1754944e-38, %v933
  %v935 = vsel %vm932, %v934, %v930
  %v936 = vmul.f32 1.0, %v935
  %v937 = vrcp.pop %v761
  %v938 = vmul.f32 %v761, %v937
  %v939 = vsub.f32 1.0, %v938
  %v940 = vmul.f32 %v937, %v939
  %v941 = vadd.f32 %v937, %v940
  %vm942 = vweird.f32 %v761
  %vm943 = vweird.f32 %v937
  %vm944 = vmor %vm942, %vm943
  %v945 = vsel %vm944, %v937, %v941
  %v946 = vand.u32 2147483647, %v761
  %vm947 = vcmp.eq.f32.partialorder %v946, 8.507059e+37
  %v948 = vand.u32 %v761, 2147483648
  %v949 = vor.u32 1.1754944e-38, %v948
  %v950 = vsel %vm947, %v949, %v945
  %v951 = vmul.f32 1.0, %v950
  %v952 = vrcp.pop %v762
  %v953 = vmul.f32 %v762, %v952
  %v954 = vsub.f32 1.0, %v953
  %v955 = vmul.f32 %v952, %v954
  %v956 = vadd.f32 %v952, %v955
  %vm957 = vweird.f32 %v762
  %vm958 = vweird.f32 %v952
  %vm959 = vmor %vm957, %vm958
  %v960 = vsel %vm959, %v952, %v956
  %v961 = vand.u32 2147483647, %v762
  %vm962 = vcmp.eq.f32.partialorder %v961, 8.507059e+37
  %v963 = vand.u32 %v762, 2147483648
  %v964 = vor.u32 1.1754944e-38, %v963
  %v965 = vsel %vm962, %v964, %v960
  %v966 = vmul.f32 1.0, %v965
  %v967 = vrcp.pop %v763
  %v968 = vmul.f32 %v763, %v967
  %v969 = vsub.f32 1.0, %v968
  %v970 = vmul.f32 %v967, %v969
  %v971 = vadd.f32 %v967, %v970
  %vm972 = vweird.f32 %v763
  %vm973 = vweird.f32 %v967
  %vm974 = vmor %vm972, %vm973
  %v975 = vsel %vm974, %v967, %v971
  %v976 = vand.u32 2147483647, %v763
  %vm977 = vcmp.eq.f32.partialorder %v976, 8.507059e+37
  %v978 = vand.u32 %v763, 2147483648
  %v979 = vor.u32 1.1754944e-38, %v978
  %v980 = vsel %vm977, %v979, %v975
  %v981 = vmul.f32 1.0, %v980
  %v982 = vrcp.pop %v764
  %v983 = vmul.f32 %v764, %v982
  %v984 = vsub.f32 1.0, %v983
  %v985 = vmul.f32 %v982, %v984
  %v986 = vadd.f32 %v982, %v985
  %vm987 = vweird.f32 %v764
  %vm988 = vweird.f32 %v982
  %vm989 = vmor %vm987, %vm988
  %v990 = vsel %vm989, %v982, %v986
  %v991 = vand.u32 2147483647, %v764
  %vm992 = vcmp.eq.f32.partialorder %v991, 8.507059e+37
  %v993 = vand.u32 %v764, 2147483648
  %v994 = vor.u32 1.1754944e-38, %v993
  %v995 = vsel %vm992, %v994, %v990
  %v996 = vmul.f32 1.0, %v995
  %v997 = vrcp.pop %v765
  %v998 = vmul.f32 %v765, %v997
  %v999 = vsub.f32 1.0, %v998
  %v1000 = vmul.f32 %v997, %v999
  %v1001 = vadd.f32 %v997, %v1000
  %vm1002 = vweird.f32 %v765
  %vm1003 = vweird.f32 %v997
  %vm1004 = vmor %vm1002, %vm1003
  %v1005 = vsel %vm1004, %v997, %v1001
  %v1006 = vand.u32 2147483647, %v765
  %vm1007 = vcmp.eq.f32.partialorder %v1006, 8.507059e+37
  %v1008 = vand.u32 %v765, 2147483648
  %v1009 = vor.u32 1.1754944e-38, %v1008
  %v1010 = vsel %vm1007, %v1009, %v1005
  %v1011 = vmul.f32 1.0, %v1010
  %v1012 = vrcp.pop %v766
  %v1013 = vmul.f32 %v766, %v1012
  %v1014 = vsub.f32 1.0, %v1013
  %v1015 = vmul.f32 %v1012, %v1014
  %v1016 = vadd.f32 %v1012, %v1015
  %vm1017 = vweird.f32 %v766
  %vm1018 = vweird.f32 %v1012
  %vm1019 = vmor %vm1017, %vm1018
  %v1020 = vsel %vm1019, %v1012, %v1016
  %v1021 = vand.u32 2147483647, %v766
  %vm1022 = vcmp.eq.f32.partialorder %v1021, 8.507059e+37
  %v1023 = vand.u32 %v766, 2147483648
  %v1024 = vor.u32 1.1754944e-38, %v1023
  %v1025 = vsel %vm1022, %v1024, %v1020
  %v1026 = vmul.f32 1.0, %v1025
  %v1027 = vrcp.pop %v767
  %v1028 = vmul.f32 %v767, %v1027
  %v1029 = vsub.f32 1.0, %v1028
  %v1030 = vmul.f32 %v1027, %v1029
  %v1031 = vadd.f32 %v1027, %v1030
  %vm1032 = vweird.f32 %v767
  %vm1033 = vweird.f32 %v1027
  %vm1034 = vmor %vm1032, %vm1033
  %v1035 = vsel %vm1034, %v1027, %v1031
  %v1036 = vand.u32 2147483647, %v767
  %vm1037 = vcmp.eq.f32.partialorder %v1036, 8.507059e+37
  %v1038 = vand.u32 %v767, 2147483648
  %v1039 = vor.u32 1.1754944e-38, %v1038
  %v1040 = vsel %vm1037, %v1039, %v1035
  %v1041 = vmul.f32 1.0, %v1040
  %v1042 = vrcp.pop %v768
  %v1043 = vmul.f32 %v768, %v1042
  %v1044 = vsub.f32 1.0, %v1043
  %v1045 = vmul.f32 %v1042, %v1044
  %v1046 = vadd.f32 %v1042, %v1045
  %vm1047 = vweird.f32 %v768
  %vm1048 = vweird.f32 %v1042
  %vm1049 = vmor %vm1047, %vm1048
  %v1050 = vsel %vm1049, %v1042, %v1046
  %v1051 = vand.u32 2147483647, %v768
  %vm1052 = vcmp.eq.f32.partialorder %v1051, 8.507059e+37
  %v1053 = vand.u32 %v768, 2147483648
  %v1054 = vor.u32 1.1754944e-38, %v1053
  %v1055 = vsel %vm1052, %v1054, %v1050
  %v1056 = vmul.f32 1.0, %v1055
  %v1057 = vrcp.pop %v769
  %v1058 = vmul.f32 %v769, %v1057
  %v1059 = vsub.f32 1.0, %v1058
  %v1060 = vmul.f32 %v1057, %v1059
  %v1061 = vadd.f32 %v1057, %v1060
  %vm1062 = vweird.f32 %v769
  %vm1063 = vweird.f32 %v1057
  %vm1064 = vmor %vm1062, %vm1063
  %v1065 = vsel %vm1064, %v1057, %v1061
  %v1066 = vand.u32 2147483647, %v769
  %vm1067 = vcmp.eq.f32.partialorder %v1066, 8.507059e+37
  %v1068 = vand.u32 %v769, 2147483648
  %v1069 = vor.u32 1.1754944e-38, %v1068
  %v1070 = vsel %vm1067, %v1069, %v1065
  %v1071 = vmul.f32 1.0, %v1070
  %v1072 = vrcp.pop %v770
  %v1073 = vmul.f32 %v770, %v1072
  %v1074 = vsub.f32 1.0, %v1073
  %v1075 = vmul.f32 %v1072, %v1074
  %v1076 = vadd.f32 %v1072, %v1075
  %vm1077 = vweird.f32 %v770
  %vm1078 = vweird.f32 %v1072
  %vm1079 = vmor %vm1077, %vm1078
  %v1080 = vsel %vm1079, %v1072, %v1076
  %v1081 = vand.u32 2147483647, %v770
  %vm1082 = vcmp.eq.f32.partialorder %v1081, 8.507059e+37
  %v1083 = vand.u32 %v770, 2147483648
  %v1084 = vor.u32 1.1754944e-38, %v1083
  %v1085 = vsel %vm1082, %v1084, %v1080
  %v1086 = vmul.f32 1.0, %v1085
  %v1087 = vrcp.pop %v771
  %v1088 = vmul.f32 %v771, %v1087
  %v1089 = vsub.f32 1.0, %v1088
  %v1090 = vmul.f32 %v1087, %v1089
  %v1091 = vadd.f32 %v1087, %v1090
  %vm1092 = vweird.f32 %v771
  %vm1093 = vweird.f32 %v1087
  %vm1094 = vmor %vm1092, %vm1093
  %v1095 = vsel %vm1094, %v1087, %v1091
  %v1096 = vand.u32 2147483647, %v771
  %vm1097 = vcmp.eq.f32.partialorder %v1096, 8.507059e+37
  %v1098 = vand.u32 %v771, 2147483648
  %v1099 = vor.u32 1.1754944e-38, %v1098
  %v1100 = vsel %vm1097, %v1099, %v1095
  %v1101 = vmul.f32 1.0, %v1100
  %v1102 = vrcp.pop %v772
  %v1103 = vmul.f32 %v772, %v1102
  %v1104 = vsub.f32 1.0, %v1103
  %v1105 = vmul.f32 %v1102, %v1104
  %v1106 = vadd.f32 %v1102, %v1105
  %vm1107 = vweird.f32 %v772
  %vm1108 = vweird.f32 %v1102
  %vm1109 = vmor %vm1107, %vm1108
  %v1110 = vsel %vm1109, %v1102, %v1106
  %v1111 = vand.u32 2147483647, %v772
  %vm1112 = vcmp.eq.f32.partialorder %v1111, 8.507059e+37
  %v1113 = vand.u32 %v772, 2147483648
  %v1114 = vor.u32 1.1754944e-38, %v1113
  %v1115 = vsel %vm1112, %v1114, %v1110
  %v1116 = vmul.f32 1.0, %v1115
  %v1117 = vrcp.pop %v773
  %v1118 = vmul.f32 %v773, %v1117
  %v1119 = vsub.f32 1.0, %v1118
  %v1120 = vmul.f32 %v1117, %v1119
  %v1121 = vadd.f32 %v1117, %v1120
  %vm1122 = vweird.f32 %v773
  %vm1123 = vweird.f32 %v1117
  %vm1124 = vmor %vm1122, %vm1123
  %v1125 = vsel %vm1124, %v1117, %v1121
  %v1126 = vand.u32 2147483647, %v773
  %vm1127 = vcmp.eq.f32.partialorder %v1126, 8.507059e+37
  %v1128 = vand.u32 %v773, 2147483648
  %v1129 = vor.u32 1.1754944e-38, %v1128
  %v1130 = vsel %vm1127, %v1129, %v1125
  %v1131 = vmul.f32 1.0, %v1130
  %v1132 = vrcp.pop %v774
  %v1133 = vmul.f32 %v774, %v1132
  %v1134 = vsub.f32 1.0, %v1133
  %v1135 = vmul.f32 %v1132, %v1134
  %v1136 = vadd.f32 %v1132, %v1135
  %vm1137 = vweird.f32 %v774
  %vm1138 = vweird.f32 %v1132
  %vm1139 = vmor %vm1137, %vm1138
  %v1140 = vsel %vm1139, %v1132, %v1136
  %v1141 = vand.u32 2147483647, %v774
  %vm1142 = vcmp.eq.f32.partialorder %v1141, 8.507059e+37
  %v1143 = vand.u32 %v774, 2147483648
  %v1144 = vor.u32 1.1754944e-38, %v1143
  %v1145 = vsel %vm1142, %v1144, %v1140
  %v1146 = vmul.f32 1.0, %v1145
  %v1147 = vrcp.pop %v775
  %v1148 = vmul.f32 %v775, %v1147
  %v1149 = vsub.f32 1.0, %v1148
  %v1150 = vmul.f32 %v1147, %v1149
  %v1151 = vadd.f32 %v1147, %v1150
  %vm1152 = vweird.f32 %v775
  %vm1153 = vweird.f32 %v1147
  %vm1154 = vmor %vm1152, %vm1153
  %v1155 = vsel %vm1154, %v1147, %v1151
  %v1156 = vand.u32 2147483647, %v775
  %vm1157 = vcmp.eq.f32.partialorder %v1156, 8.507059e+37
  %v1158 = vand.u32 %v775, 2147483648
  %v1159 = vor.u32 1.1754944e-38, %v1158
  %v1160 = vsel %vm1157, %v1159, %v1155
  %v1161 = vmul.f32 1.0, %v1160
  %v1162 = vrcp.pop %v776
  %v1163 = vmul.f32 %v776, %v1162
  %v1164 = vsub.f32 1.0, %v1163
  %v1165 = vmul.f32 %v1162, %v1164
  %v1166 = vadd.f32 %v1162, %v1165
  %vm1167 = vweird.f32 %v776
  %vm1168 = vweird.f32 %v1162
  %vm1169 = vmor %vm1167, %vm1168
  %v1170 = vsel %vm1169, %v1162, %v1166
  %v1171 = vand.u32 2147483647, %v776
  %vm1172 = vcmp.eq.f32.partialorder %v1171, 8.507059e+37
  %v1173 = vand.u32 %v776, 2147483648
  %v1174 = vor.u32 1.1754944e-38, %v1173
  %v1175 = vsel %vm1172, %v1174, %v1170
  %v1176 = vmul.f32 1.0, %v1175
  %v1177 = vrcp.pop %v777
  %v1178 = vmul.f32 %v777, %v1177
  %v1179 = vsub.f32 1.0, %v1178
  %v1180 = vmul.f32 %v1177, %v1179
  %v1181 = vadd.f32 %v1177, %v1180
  %vm1182 = vweird.f32 %v777
  %vm1183 = vweird.f32 %v1177
  %vm1184 = vmor %vm1182, %vm1183
  %v1185 = vsel %vm1184, %v1177, %v1181
  %v1186 = vand.u32 2147483647, %v777
  %vm1187 = vcmp.eq.f32.partialorder %v1186, 8.507059e+37
  %v1188 = vand.u32 %v777, 2147483648
  %v1189 = vor.u32 1.1754944e-38, %v1188
  %v1190 = vsel %vm1187, %v1189, %v1185
  %v1191 = vmul.f32 1.0, %v1190
  %v1192 = vrcp.pop %v778
  %v1193 = vmul.f32 %v778, %v1192
  %v1194 = vsub.f32 1.0, %v1193
  %v1195 = vmul.f32 %v1192, %v1194
  %v1196 = vadd.f32 %v1192, %v1195
  %vm1197 = vweird.f32 %v778
  %vm1198 = vweird.f32 %v1192
  %vm1199 = vmor %vm1197, %vm1198
  %v1200 = vsel %vm1199, %v1192, %v1196
  %v1201 = vand.u32 2147483647, %v778
  %vm1202 = vcmp.eq.f32.partialorder %v1201, 8.507059e+37
  %v1203 = vand.u32 %v778, 2147483648
  %v1204 = vor.u32 1.1754944e-38, %v1203
  %v1205 = vsel %vm1202, %v1204, %v1200
  %v1206 = vmul.f32 1.0, %v1205
  %v1207 = vrcp.pop %v779
  %v1208 = vmul.f32 %v779, %v1207
  %v1209 = vsub.f32 1.0, %v1208
  %v1210 = vmul.f32 %v1207, %v1209
  %v1211 = vadd.f32 %v1207, %v1210
  %vm1212 = vweird.f32 %v779
  %vm1213 = vweird.f32 %v1207
  %vm1214 = vmor %vm1212, %vm1213
  %v1215 = vsel %vm1214, %v1207, %v1211
  %v1216 = vand.u32 2147483647, %v779
  %vm1217 = vcmp.eq.f32.partialorder %v1216, 8.507059e+37
  %v1218 = vand.u32 %v779, 2147483648
  %v1219 = vor.u32 1.1754944e-38, %v1218
  %v1220 = vsel %vm1217, %v1219, %v1215
  %v1221 = vmul.f32 1.0, %v1220
  %v1222 = vrcp.pop %v780
  %v1223 = vmul.f32 %v780, %v1222
  %v1224 = vsub.f32 1.0, %v1223
  %v1225 = vmul.f32 %v1222, %v1224
  %v1226 = vadd.f32 %v1222, %v1225
  %vm1227 = vweird.f32 %v780
  %vm1228 = vweird.f32 %v1222
  %vm1229 = vmor %vm1227, %vm1228
  %v1230 = vsel %vm1229, %v1222, %v1226
  %v1231 = vand.u32 2147483647, %v780
  %vm1232 = vcmp.eq.f32.partialorder %v1231, 8.507059e+37
  %v1233 = vand.u32 %v780, 2147483648
  %v1234 = vor.u32 1.1754944e-38, %v1233
  %v1235 = vsel %vm1232, %v1234, %v1230
  %v1236 = vmul.f32 1.0, %v1235
  %v1237 = vrcp.pop %v781
  %v1238 = vmul.f32 %v781, %v1237
  %v1239 = vsub.f32 1.0, %v1238
  %v1240 = vmul.f32 %v1237, %v1239
  %v1241 = vadd.f32 %v1237, %v1240
  %vm1242 = vweird.f32 %v781
  %vm1243 = vweird.f32 %v1237
  %vm1244 = vmor %vm1242, %vm1243
  %v1245 = vsel %vm1244, %v1237, %v1241
  %v1246 = vand.u32 2147483647, %v781
  %vm1247 = vcmp.eq.f32.partialorder %v1246, 8.507059e+37
  %v1248 = vand.u32 %v781, 2147483648
  %v1249 = vor.u32 1.1754944e-38, %v1248
  %v1250 = vsel %vm1247, %v1249, %v1245
  %v1251 = vmul.f32 1.0, %v1250
  %v1252 = vrcp.pop %v782
  %v1253 = vmul.f32 %v782, %v1252
  %v1254 = vsub.f32 1.0, %v1253
  %v1255 = vmul.f32 %v1252, %v1254
  %v1256 = vadd.f32 %v1252, %v1255
  %vm1257 = vweird.f32 %v782
  %vm1258 = vweird.f32 %v1252
  %vm1259 = vmor %vm1257, %vm1258
  %v1260 = vsel %vm1259, %v1252, %v1256
  %v1261 = vand.u32 2147483647, %v782
  %vm1262 = vcmp.eq.f32.partialorder %v1261, 8.507059e+37
  %v1263 = vand.u32 %v782, 2147483648
  %v1264 = vor.u32 1.1754944e-38, %v1263
  %v1265 = vsel %vm1262, %v1264, %v1260
  %v1266 = vmul.f32 1.0, %v1265
  %v1267 = vrcp.pop %v783
  %v1268 = vmul.f32 %v783, %v1267
  %v1269 = vsub.f32 1.0, %v1268
  %v1270 = vmul.f32 %v1267, %v1269
  %v1271 = vadd.f32 %v1267, %v1270
  %vm1272 = vweird.f32 %v783
  %vm1273 = vweird.f32 %v1267
  %vm1274 = vmor %vm1272, %vm1273
  %v1275 = vsel %vm1274, %v1267, %v1271
  %v1276 = vand.u32 2147483647, %v783
  %vm1277 = vcmp.eq.f32.partialorder %v1276, 8.507059e+37
  %v1278 = vand.u32 %v783, 2147483648
  %v1279 = vor.u32 1.1754944e-38, %v1278
  %v1280 = vsel %vm1277, %v1279, %v1275
  %v1281 = vmul.f32 1.0, %v1280
  %v1282 = vrcp.pop %v784
  %v1283 = vmul.f32 %v784, %v1282
  %v1284 = vsub.f32 1.0, %v1283
  %v1285 = vmul.f32 %v1282, %v1284
  %v1286 = vadd.f32 %v1282, %v1285
  %vm1287 = vweird.f32 %v784
  %vm1288 = vweird.f32 %v1282
  %vm1289 = vmor %vm1287, %vm1288
  %v1290 = vsel %vm1289, %v1282, %v1286
  %v1291 = vand.u32 2147483647, %v784
  %vm1292 = vcmp.eq.f32.partialorder %v1291, 8.507059e+37
  %v1293 = vand.u32 %v784, 2147483648
  %v1294 = vor.u32 1.1754944e-38, %v1293
  %v1295 = vsel %vm1292, %v1294, %v1290
  %v1296 = vmul.f32 1.0, %v1295
  %v1297 = vrcp.pop %v785
  %v1298 = vmul.f32 %v785, %v1297
  %v1299 = vsub.f32 1.0, %v1298
  %v1300 = vmul.f32 %v1297, %v1299
  %v1301 = vadd.f32 %v1297, %v1300
  %vm1302 = vweird.f32 %v785
  %vm1303 = vweird.f32 %v1297
  %vm1304 = vmor %vm1302, %vm1303
  %v1305 = vsel %vm1304, %v1297, %v1301
  %v1306 = vand.u32 2147483647, %v785
  %vm1307 = vcmp.eq.f32.partialorder %v1306, 8.507059e+37
  %v1308 = vand.u32 %v785, 2147483648
  %v1309 = vor.u32 1.1754944e-38, %v1308
  %v1310 = vsel %vm1307, %v1309, %v1305
  %v1311 = vmul.f32 1.0, %v1310
  %v1312 = vrcp.pop %v786
  %v1313 = vmul.f32 %v786, %v1312
  %v1314 = vsub.f32 1.0, %v1313
  %v1315 = vmul.f32 %v1312, %v1314
  %v1316 = vadd.f32 %v1312, %v1315
  %vm1317 = vweird.f32 %v786
  %vm1318 = vweird.f32 %v1312
  %vm1319 = vmor %vm1317, %vm1318
  %v1320 = vsel %vm1319, %v1312, %v1316
  %v1321 = vand.u32 2147483647, %v786
  %vm1322 = vcmp.eq.f32.partialorder %v1321, 8.507059e+37
  %v1323 = vand.u32 %v786, 2147483648
  %v1324 = vor.u32 1.1754944e-38, %v1323
  %v1325 = vsel %vm1322, %v1324, %v1320
  %v1326 = vmul.f32 1.0, %v1325
  %v1327 = vrcp.pop %v787
  %v1328 = vmul.f32 %v787, %v1327
  %v1329 = vsub.f32 1.0, %v1328
  %v1330 = vmul.f32 %v1327, %v1329
  %v1331 = vadd.f32 %v1327, %v1330
  %vm1332 = vweird.f32 %v787
  %vm1333 = vweird.f32 %v1327
  %vm1334 = vmor %vm1332, %vm1333
  %v1335 = vsel %vm1334, %v1327, %v1331
  %v1336 = vand.u32 2147483647, %v787
  %vm1337 = vcmp.eq.f32.partialorder %v1336, 8.507059e+37
  %v1338 = vand.u32 %v787, 2147483648
  %v1339 = vor.u32 1.1754944e-38, %v1338
  %v1340 = vsel %vm1337, %v1339, %v1335
  %v1341 = vmul.f32 1.0, %v1340
  %v1342 = vrcp.pop %v788
  %v1343 = vmul.f32 %v788, %v1342
  %v1344 = vsub.f32 1.0, %v1343
  %v1345 = vmul.f32 %v1342, %v1344
  %v1346 = vadd.f32 %v1342, %v1345
  %vm1347 = vweird.f32 %v788
  %vm1348 = vweird.f32 %v1342
  %vm1349 = vmor %vm1347, %vm1348
  %v1350 = vsel %vm1349, %v1342, %v1346
  %v1351 = vand.u32 2147483647, %v788
  %vm1352 = vcmp.eq.f32.partialorder %v1351, 8.507059e+37
  %v1353 = vand.u32 %v788, 2147483648
  %v1354 = vor.u32 1.1754944e-38, %v1353
  %v1355 = vsel %vm1352, %v1354, %v1350
  %v1356 = vmul.f32 1.0, %v1355
  %v1357 = vrcp.pop %v789
  %v1358 = vmul.f32 %v789, %v1357
  %v1359 = vsub.f32 1.0, %v1358
  %v1360 = vmul.f32 %v1357, %v1359
  %v1361 = vadd.f32 %v1357, %v1360
  %vm1362 = vweird.f32 %v789
  %vm1363 = vweird.f32 %v1357
  %vm1364 = vmor %vm1362, %vm1363
  %v1365 = vsel %vm1364, %v1357, %v1361
  %v1366 = vand.u32 2147483647, %v789
  %vm1367 = vcmp.eq.f32.partialorder %v1366, 8.507059e+37
  %v1368 = vand.u32 %v789, 2147483648
  %v1369 = vor.u32 1.1754944e-38, %v1368
  %v1370 = vsel %vm1367, %v1369, %v1365
  %v1371 = vmul.f32 1.0, %v1370
  %v1372 = vrcp.pop %v790
  %v1373 = vmul.f32 %v790, %v1372
  %v1374 = vsub.f32 1.0, %v1373
  %v1375 = vmul.f32 %v1372, %v1374
  %v1376 = vadd.f32 %v1372, %v1375
  %vm1377 = vweird.f32 %v790
  %vm1378 = vweird.f32 %v1372
  %vm1379 = vmor %vm1377, %vm1378
  %v1380 = vsel %vm1379, %v1372, %v1376
  %v1381 = vand.u32 2147483647, %v790
  %vm1382 = vcmp.eq.f32.partialorder %v1381, 8.507059e+37
  %v1383 = vand.u32 %v790, 2147483648
  %v1384 = vor.u32 1.1754944e-38, %v1383
  %v1385 = vsel %vm1382, %v1384, %v1380
  %v1386 = vmul.f32 1.0, %v1385
  %v1387 = vrcp.pop %v791
  %v1388 = vmul.f32 %v791, %v1387
  %v1389 = vsub.f32 1.0, %v1388
  %v1390 = vmul.f32 %v1387, %v1389
  %v1391 = vadd.f32 %v1387, %v1390
  %vm1392 = vweird.f32 %v791
  %vm1393 = vweird.f32 %v1387
  %vm1394 = vmor %vm1392, %vm1393
  %v1395 = vsel %vm1394, %v1387, %v1391
  %v1396 = vand.u32 2147483647, %v791
  %vm1397 = vcmp.eq.f32.partialorder %v1396, 8.507059e+37
  %v1398 = vand.u32 %v791, 2147483648
  %v1399 = vor.u32 1.1754944e-38, %v1398
  %v1400 = vsel %vm1397, %v1399, %v1395
  %v1401 = vmul.f32 1.0, %v1400
  %v1402 = vrcp.pop %v792
  %v1403 = vmul.f32 %v792, %v1402
  %v1404 = vsub.f32 1.0, %v1403
  %v1405 = vmul.f32 %v1402, %v1404
  %v1406 = vadd.f32 %v1402, %v1405
  %vm1407 = vweird.f32 %v792
  %vm1408 = vweird.f32 %v1402
  %vm1409 = vmor %vm1407, %vm1408
  %v1410 = vsel %vm1409, %v1402, %v1406
  %v1411 = vand.u32 2147483647, %v792
  %vm1412 = vcmp.eq.f32.partialorder %v1411, 8.507059e+37
  %v1413 = vand.u32 %v792, 2147483648
  %v1414 = vor.u32 1.1754944e-38, %v1413
  %v1415 = vsel %vm1412, %v1414, %v1410
  %v1416 = vmul.f32 1.0, %v1415
  %v1417 = vrcp.pop %v793
  %v1418 = vmul.f32 %v793, %v1417
  %v1419 = vsub.f32 1.0, %v1418
  %v1420 = vmul.f32 %v1417, %v1419
  %v1421 = vadd.f32 %v1417, %v1420
  %vm1422 = vweird.f32 %v793
  %vm1423 = vweird.f32 %v1417
  %vm1424 = vmor %vm1422, %vm1423
  %v1425 = vsel %vm1424, %v1417, %v1421
  %v1426 = vand.u32 2147483647, %v793
  %vm1427 = vcmp.eq.f32.partialorder %v1426, 8.507059e+37
  %v1428 = vand.u32 %v793, 2147483648
  %v1429 = vor.u32 1.1754944e-38, %v1428
  %v1430 = vsel %vm1427, %v1429, %v1425
  %v1431 = vmul.f32 1.0, %v1430
  %v1432 = vrcp.pop %v794
  %v1433 = vmul.f32 %v794, %v1432
  %v1434 = vsub.f32 1.0, %v1433
  %v1435 = vmul.f32 %v1432, %v1434
  %v1436 = vadd.f32 %v1432, %v1435
  %vm1437 = vweird.f32 %v794
  %vm1438 = vweird.f32 %v1432
  %vm1439 = vmor %vm1437, %vm1438
  %v1440 = vsel %vm1439, %v1432, %v1436
  %v1441 = vand.u32 2147483647, %v794
  %vm1442 = vcmp.eq.f32.partialorder %v1441, 8.507059e+37
  %v1443 = vand.u32 %v794, 2147483648
  %v1444 = vor.u32 1.1754944e-38, %v1443
  %v1445 = vsel %vm1442, %v1444, %v1440
  %v1446 = vmul.f32 1.0, %v1445
  %v1447 = vrcp.pop %v795
  %v1448 = vmul.f32 %v795, %v1447
  %v1449 = vsub.f32 1.0, %v1448
  %v1450 = vmul.f32 %v1447, %v1449
  %v1451 = vadd.f32 %v1447, %v1450
  %vm1452 = vweird.f32 %v795
  %vm1453 = vweird.f32 %v1447
  %vm1454 = vmor %vm1452, %vm1453
  %v1455 = vsel %vm1454, %v1447, %v1451
  %v1456 = vand.u32 2147483647, %v795
  %vm1457 = vcmp.eq.f32.partialorder %v1456, 8.507059e+37
  %v1458 = vand.u32 %v795, 2147483648
  %v1459 = vor.u32 1.1754944e-38, %v1458
  %v1460 = vsel %vm1457, %v1459, %v1455
  %v1461 = vmul.f32 1.0, %v1460
  %v1462 = vrcp.pop %v796
  %v1463 = vmul.f32 %v796, %v1462
  %v1464 = vsub.f32 1.0, %v1463
  %v1465 = vmul.f32 %v1462, %v1464
  %v1466 = vadd.f32 %v1462, %v1465
  %vm1467 = vweird.f32 %v796
  %vm1468 = vweird.f32 %v1462
  %vm1469 = vmor %vm1467, %vm1468
  %v1470 = vsel %vm1469, %v1462, %v1466
  %v1471 = vand.u32 2147483647, %v796
  %vm1472 = vcmp.eq.f32.partialorder %v1471, 8.507059e+37
  %v1473 = vand.u32 %v796, 2147483648
  %v1474 = vor.u32 1.1754944e-38, %v1473
  %v1475 = vsel %vm1472, %v1474, %v1470
  %v1476 = vmul.f32 1.0, %v1475
  %v1477 = vrcp.pop %v797
  %v1478 = vmul.f32 %v797, %v1477
  %v1479 = vsub.f32 1.0, %v1478
  %v1480 = vmul.f32 %v1477, %v1479
  %v1481 = vadd.f32 %v1477, %v1480
  %vm1482 = vweird.f32 %v797
  %vm1483 = vweird.f32 %v1477
  %vm1484 = vmor %vm1482, %vm1483
  %v1485 = vsel %vm1484, %v1477, %v1481
  %v1486 = vand.u32 2147483647, %v797
  %vm1487 = vcmp.eq.f32.partialorder %v1486, 8.507059e+37
  %v1488 = vand.u32 %v797, 2147483648
  %v1489 = vor.u32 1.1754944e-38, %v1488
  %v1490 = vsel %vm1487, %v1489, %v1485
  %v1491 = vmul.f32 1.0, %v1490
  %v1492 = vrcp.pop %v798
  %v1493 = vmul.f32 %v798, %v1492
  %v1494 = vsub.f32 1.0, %v1493
  %v1495 = vmul.f32 %v1492, %v1494
  %v1496 = vadd.f32 %v1492, %v1495
  %vm1497 = vweird.f32 %v798
  %vm1498 = vweird.f32 %v1492
  %vm1499 = vmor %vm1497, %vm1498
  %v1500 = vsel %vm1499, %v1492, %v1496
  %v1501 = vand.u32 2147483647, %v798
  %vm1502 = vcmp.eq.f32.partialorder %v1501, 8.507059e+37
  %v1503 = vand.u32 %v798, 2147483648
  %v1504 = vor.u32 1.1754944e-38, %v1503
  %v1505 = vsel %vm1502, %v1504, %v1500
  %v1506 = vmul.f32 1.0, %v1505
  %v1507 = vrcp.pop %v799
  %v1508 = vmul.f32 %v799, %v1507
  %v1509 = vsub.f32 1.0, %v1508
  %v1510 = vmul.f32 %v1507, %v1509
  %v1511 = vadd.f32 %v1507, %v1510
  %vm1512 = vweird.f32 %v799
  %vm1513 = vweird.f32 %v1507
  %vm1514 = vmor %vm1512, %vm1513
  %v1515 = vsel %vm1514, %v1507, %v1511
  %v1516 = vand.u32 2147483647, %v799
  %vm1517 = vcmp.eq.f32.partialorder %v1516, 8.507059e+37
  %v1518 = vand.u32 %v799, 2147483648
  %v1519 = vor.u32 1.1754944e-38, %v1518
  %v1520 = vsel %vm1517, %v1519, %v1515
  %v1521 = vmul.f32 1.0, %v1520
  %v1522 = vrcp.pop %v800
  %v1523 = vmul.f32 %v800, %v1522
  %v1524 = vsub.f32 1.0, %v1523
  %v1525 = vmul.f32 %v1522, %v1524
  %v1526 = vadd.f32 %v1522, %v1525
  %vm1527 = vweird.f32 %v800
  %vm1528 = vweird.f32 %v1522
  %vm1529 = vmor %vm1527, %vm1528
  %v1530 = vsel %vm1529, %v1522, %v1526
  %v1531 = vand.u32 2147483647, %v800
  %vm1532 = vcmp.eq.f32.partialorder %v1531, 8.507059e+37
  %v1533 = vand.u32 %v800, 2147483648
  %v1534 = vor.u32 1.1754944e-38, %v1533
  %v1535 = vsel %vm1532, %v1534, %v1530
  %v1536 = vmul.f32 1.0, %v1535
  %v1537 = vrcp.pop %v801
  %v1538 = vmul.f32 %v801, %v1537
  %v1539 = vsub.f32 1.0, %v1538
  %v1540 = vmul.f32 %v1537, %v1539
  %v1541 = vadd.f32 %v1537, %v1540
  %vm1542 = vweird.f32 %v801
  %vm1543 = vweird.f32 %v1537
  %vm1544 = vmor %vm1542, %vm1543
  %v1545 = vsel %vm1544, %v1537, %v1541
  %v1546 = vand.u32 2147483647, %v801
  %vm1547 = vcmp.eq.f32.partialorder %v1546, 8.507059e+37
  %v1548 = vand.u32 %v801, 2147483648
  %v1549 = vor.u32 1.1754944e-38, %v1548
  %v1550 = vsel %vm1547, %v1549, %v1545
  %v1551 = vmul.f32 1.0, %v1550
  %v1552 = vrcp.pop %v802
  %v1553 = vmul.f32 %v802, %v1552
  %v1554 = vsub.f32 1.0, %v1553
  %v1555 = vmul.f32 %v1552, %v1554
  %v1556 = vadd.f32 %v1552, %v1555
  %vm1557 = vweird.f32 %v802
  %vm1558 = vweird.f32 %v1552
  %vm1559 = vmor %vm1557, %vm1558
  %v1560 = vsel %vm1559, %v1552, %v1556
  %v1561 = vand.u32 2147483647, %v802
  %vm1562 = vcmp.eq.f32.partialorder %v1561, 8.507059e+37
  %v1563 = vand.u32 %v802, 2147483648
  %v1564 = vor.u32 1.1754944e-38, %v1563
  %v1565 = vsel %vm1562, %v1564, %v1560
  %v1566 = vmul.f32 1.0, %v1565
  %v1567 = vrcp.pop %v803
  %v1568 = vmul.f32 %v803, %v1567
  %v1569 = vsub.f32 1.0, %v1568
  %v1570 = vmul.f32 %v1567, %v1569
  %v1571 = vadd.f32 %v1567, %v1570
  %vm1572 = vweird.f32 %v803
  %vm1573 = vweird.f32 %v1567
  %vm1574 = vmor %vm1572, %vm1573
  %v1575 = vsel %vm1574, %v1567, %v1571
  %v1576 = vand.u32 2147483647, %v803
  %vm1577 = vcmp.eq.f32.partialorder %v1576, 8.507059e+37
  %v1578 = vand.u32 %v803, 2147483648
  %v1579 = vor.u32 1.1754944e-38, %v1578
  %v1580 = vsel %vm1577, %v1579, %v1575
  %v1581 = vmul.f32 1.0, %v1580
  %v1582 = vrcp.pop %v804
  %v1583 = vmul.f32 %v804, %v1582
  %v1584 = vsub.f32 1.0, %v1583
  %v1585 = vmul.f32 %v1582, %v1584
  %v1586 = vadd.f32 %v1582, %v1585
  %vm1587 = vweird.f32 %v804
  %vm1588 = vweird.f32 %v1582
  %vm1589 = vmor %vm1587, %vm1588
  %v1590 = vsel %vm1589, %v1582, %v1586
  %v1591 = vand.u32 2147483647, %v804
  %vm1592 = vcmp.eq.f32.partialorder %v1591, 8.507059e+37
  %v1593 = vand.u32 %v804, 2147483648
  %v1594 = vor.u32 1.1754944e-38, %v1593
  %v1595 = vsel %vm1592, %v1594, %v1590
  %v1596 = vmul.f32 1.0, %v1595
  %v1597 = vrcp.pop %v805
  %v1598 = vmul.f32 %v805, %v1597
  %v1599 = vsub.f32 1.0, %v1598
  %v1600 = vmul.f32 %v1597, %v1599
  %v1601 = vadd.f32 %v1597, %v1600
  %vm1602 = vweird.f32 %v805
  %vm1603 = vweird.f32 %v1597
  %vm1604 = vmor %vm1602, %vm1603
  %v1605 = vsel %vm1604, %v1597, %v1601
  %v1606 = vand.u32 2147483647, %v805
  %vm1607 = vcmp.eq.f32.partialorder %v1606, 8.507059e+37
  %v1608 = vand.u32 %v805, 2147483648
  %v1609 = vor.u32 1.1754944e-38, %v1608
  %v1610 = vsel %vm1607, %v1609, %v1605
  %v1611 = vmul.f32 1.0, %v1610
  %v1612 = vrcp.pop %v806
  %v1613 = vmul.f32 %v806, %v1612
  %v1614 = vsub.f32 1.0, %v1613
  %v1615 = vmul.f32 %v1612, %v1614
  %v1616 = vadd.f32 %v1612, %v1615
  %vm1617 = vweird.f32 %v806
  %vm1618 = vweird.f32 %v1612
  %vm1619 = vmor %vm1617, %vm1618
  %v1620 = vsel %vm1619, %v1612, %v1616
  %v1621 = vand.u32 2147483647, %v806
  %vm1622 = vcmp.eq.f32.partialorder %v1621, 8.507059e+37
  %v1623 = vand.u32 %v806, 2147483648
  %v1624 = vor.u32 1.1754944e-38, %v1623
  %v1625 = vsel %vm1622, %v1624, %v1620
  %v1626 = vmul.f32 1.0, %v1625
  %v1627 = vrcp.pop %v807
  %v1628 = vmul.f32 %v807, %v1627
  %v1629 = vsub.f32 1.0, %v1628
  %v1630 = vmul.f32 %v1627, %v1629
  %v1631 = vadd.f32 %v1627, %v1630
  %vm1632 = vweird.f32 %v807
  %vm1633 = vweird.f32 %v1627
  %vm1634 = vmor %vm1632, %vm1633
  %v1635 = vsel %vm1634, %v1627, %v1631
  %v1636 = vand.u32 2147483647, %v807
  %vm1637 = vcmp.eq.f32.partialorder %v1636, 8.507059e+37
  %v1638 = vand.u32 %v807, 2147483648
  %v1639 = vor.u32 1.1754944e-38, %v1638
  %v1640 = vsel %vm1637, %v1639, %v1635
  %v1641 = vmul.f32 1.0, %v1640
  %v1642 = vrcp.pop %v808
  %v1643 = vmul.f32 %v808, %v1642
  %v1644 = vsub.f32 1.0, %v1643
  %v1645 = vmul.f32 %v1642, %v1644
  %v1646 = vadd.f32 %v1642, %v1645
  %vm1647 = vweird.f32 %v808
  %vm1648 = vweird.f32 %v1642
  %vm1649 = vmor %vm1647, %vm1648
  %v1650 = vsel %vm1649, %v1642, %v1646
  %v1651 = vand.u32 2147483647, %v808
  %vm1652 = vcmp.eq.f32.partialorder %v1651, 8.507059e+37
  %v1653 = vand.u32 %v808, 2147483648
  %v1654 = vor.u32 1.1754944e-38, %v1653
  %v1655 = vsel %vm1652, %v1654, %v1650
  %v1656 = vmul.f32 1.0, %v1655
  %v1657 = vrcp.pop %v809
  %v1658 = vmul.f32 %v809, %v1657
  %v1659 = vsub.f32 1.0, %v1658
  %v1660 = vmul.f32 %v1657, %v1659
  %v1661 = vadd.f32 %v1657, %v1660
  %vm1662 = vweird.f32 %v809
  %vm1663 = vweird.f32 %v1657
  %vm1664 = vmor %vm1662, %vm1663
  %v1665 = vsel %vm1664, %v1657, %v1661
  %v1666 = vand.u32 2147483647, %v809
  %vm1667 = vcmp.eq.f32.partialorder %v1666, 8.507059e+37
  %v1668 = vand.u32 %v809, 2147483648
  %v1669 = vor.u32 1.1754944e-38, %v1668
  %v1670 = vsel %vm1667, %v1669, %v1665
  %v1671 = vmul.f32 1.0, %v1670
  %v1672 = vrcp.pop %v810
  %v1673 = vmul.f32 %v810, %v1672
  %v1674 = vsub.f32 1.0, %v1673
  %v1675 = vmul.f32 %v1672, %v1674
  %v1676 = vadd.f32 %v1672, %v1675
  %vm1677 = vweird.f32 %v810
  %vm1678 = vweird.f32 %v1672
  %vm1679 = vmor %vm1677, %vm1678
  %v1680 = vsel %vm1679, %v1672, %v1676
  %v1681 = vand.u32 2147483647, %v810
  %vm1682 = vcmp.eq.f32.partialorder %v1681, 8.507059e+37
  %v1683 = vand.u32 %v810, 2147483648
  %v1684 = vor.u32 1.1754944e-38, %v1683
  %v1685 = vsel %vm1682, %v1684, %v1680
  %v1686 = vmul.f32 1.0, %v1685
  %v1687 = vrcp.pop %v811
  %v1688 = vmul.f32 %v811, %v1687
  %v1689 = vsub.f32 1.0, %v1688
  %v1690 = vmul.f32 %v1687, %v1689
  %v1691 = vadd.f32 %v1687, %v1690
  %vm1692 = vweird.f32 %v811
  %vm1693 = vweird.f32 %v1687
  %vm1694 = vmor %vm1692, %vm1693
  %v1695 = vsel %vm1694, %v1687, %v1691
  %v1696 = vand.u32 2147483647, %v811
  %vm1697 = vcmp.eq.f32.partialorder %v1696, 8.507059e+37
  %v1698 = vand.u32 %v811, 2147483648
  %v1699 = vor.u32 1.1754944e-38, %v1698
  %v1700 = vsel %vm1697, %v1699, %v1695
  %v1701 = vmul.f32 1.0, %v1700
  %v1702 = vrcp.pop %v812
  %v1703 = vmul.f32 %v812, %v1702
  %v1704 = vsub.f32 1.0, %v1703
  %v1705 = vmul.f32 %v1702, %v1704
  %v1706 = vadd.f32 %v1702, %v1705
  %vm1707 = vweird.f32 %v812
  %vm1708 = vweird.f32 %v1702
  %vm1709 = vmor %vm1707, %vm1708
  %v1710 = vsel %vm1709, %v1702, %v1706
  %v1711 = vand.u32 2147483647, %v812
  %vm1712 = vcmp.eq.f32.partialorder %v1711, 8.507059e+37
  %v1713 = vand.u32 %v812, 2147483648
  %v1714 = vor.u32 1.1754944e-38, %v1713
  %v1715 = vsel %vm1712, %v1714, %v1710
  %v1716 = vmul.f32 1.0, %v1715
  %v1717 = vrcp.pop %v813
  %v1718 = vmul.f32 %v813, %v1717
  %v1719 = vsub.f32 1.0, %v1718
  %v1720 = vmul.f32 %v1717, %v1719
  %v1721 = vadd.f32 %v1717, %v1720
  %vm1722 = vweird.f32 %v813
  %vm1723 = vweird.f32 %v1717
  %vm1724 = vmor %vm1722, %vm1723
  %v1725 = vsel %vm1724, %v1717, %v1721
  %v1726 = vand.u32 2147483647, %v813
  %vm1727 = vcmp.eq.f32.partialorder %v1726, 8.507059e+37
  %v1728 = vand.u32 %v813, 2147483648
  %v1729 = vor.u32 1.1754944e-38, %v1728
  %v1730 = vsel %vm1727, %v1729, %v1725
  %v1731 = vmul.f32 1.0, %v1730
  %v1732 = vrcp.pop %v814
  %v1733 = vmul.f32 %v814, %v1732
  %v1734 = vsub.f32 1.0, %v1733
  %v1735 = vmul.f32 %v1732, %v1734
  %v1736 = vadd.f32 %v1732, %v1735
  %vm1737 = vweird.f32 %v814
  %vm1738 = vweird.f32 %v1732
  %vm1739 = vmor %vm1737, %vm1738
  %v1740 = vsel %vm1739, %v1732, %v1736
  %v1741 = vand.u32 2147483647, %v814
  %vm1742 = vcmp.eq.f32.partialorder %v1741, 8.507059e+37
  %v1743 = vand.u32 %v814, 2147483648
  %v1744 = vor.u32 1.1754944e-38, %v1743
  %v1745 = vsel %vm1742, %v1744, %v1740
  %v1746 = vmul.f32 1.0, %v1745
  %v1747 = vrcp.pop %v815
  %v1748 = vmul.f32 %v815, %v1747
  %v1749 = vsub.f32 1.0, %v1748
  %v1750 = vmul.f32 %v1747, %v1749
  %v1751 = vadd.f32 %v1747, %v1750
  %vm1752 = vweird.f32 %v815
  %vm1753 = vweird.f32 %v1747
  %vm1754 = vmor %vm1752, %vm1753
  %v1755 = vsel %vm1754, %v1747, %v1751
  %v1756 = vand.u32 2147483647, %v815
  %vm1757 = vcmp.eq.f32.partialorder %v1756, 8.507059e+37
  %v1758 = vand.u32 %v815, 2147483648
  %v1759 = vor.u32 1.1754944e-38, %v1758
  %v1760 = vsel %vm1757, %v1759, %v1755
  %v1761 = vmul.f32 1.0, %v1760
  %v1762 = vrcp.pop %v816
  %v1763 = vmul.f32 %v816, %v1762
  %v1764 = vsub.f32 1.0, %v1763
  %v1765 = vmul.f32 %v1762, %v1764
  %v1766 = vadd.f32 %v1762, %v1765
  %vm1767 = vweird.f32 %v816
  %vm1768 = vweird.f32 %v1762
  %vm1769 = vmor %vm1767, %vm1768
  %v1770 = vsel %vm1769, %v1762, %v1766
  %v1771 = vand.u32 2147483647, %v816
  %vm1772 = vcmp.eq.f32.partialorder %v1771, 8.507059e+37
  %v1773 = vand.u32 %v816, 2147483648
  %v1774 = vor.u32 1.1754944e-38, %v1773
  %v1775 = vsel %vm1772, %v1774, %v1770
  %v1776 = vmul.f32 1.0, %v1775
  %v1777 = vmul.f32 %v831, 1.0614054
  %v1778 = vmul.f32 %v846, 1.0614054
  %v1779 = vmul.f32 %v861, 1.0614054
  %v1780 = vmul.f32 %v876, 1.0614054
  %v1781 = vmul.f32 %v891, 1.0614054
  %v1782 = vmul.f32 %v906, 1.0614054
  %v1783 = vmul.f32 %v921, 1.0614054
  %v1784 = vmul.f32 %v936, 1.0614054
  %v1785 = vmul.f32 %v951, 1.0614054
  %v1786 = vmul.f32 %v966, 1.0614054
  %v1787 = vmul.f32 %v981, 1.0614054
  %v1788 = vmul.f32 %v996, 1.0614054
  %v1789 = vmul.f32 %v1011, 1.0614054
  %v1790 = vmul.f32 %v1026, 1.0614054
  %v1791 = vmul.f32 %v1041, 1.0614054
  %v1792 = vmul.f32 %v1056, 1.0614054
  %v1793 = vmul.f32 %v1071, 1.0614054
  %v1794 = vmul.f32 %v1086, 1.0614054
  %v1795 = vmul.f32 %v1101, 1.0614054
  %v1796 = vmul.f32 %v1116, 1.0614054
  %v1797 = vmul.f32 %v1131, 1.0614054
  %v1798 = vmul.f32 %v1146, 1.0614054
  %v1799 = vmul.f32 %v1161, 1.0614054
  %v1800 = vmul.f32 %v1176, 1.0614054
  %v1801 = vmul.f32 %v1191, 1.0614054
  %v1802 = vmul.f32 %v1206, 1.0614054
  %v1803 = vmul.f32 %v1221, 1.0614054
  %v1804 = vmul.f32 %v1236, 1.0614054
  %v1805 = vmul.f32 %v1251, 1.0614054
  %v1806 = vmul.f32 %v1266, 1.0614054
  %v1807 = vmul.f32 %v1281, 1.0614054
  %v1808 = vmul.f32 %v1296, 1.0614054
  %v1809 = vmul.f32 %v1311, 1.0614054
  %v1810 = vmul.f32 %v1326, 1.0614054
  %v1811 = vmul.f32 %v1341, 1.0614054
  %v1812 = vmul.f32 %v1356, 1.0614054
  %v1813 = vmul.f32 %v1371, 1.0614054
  %v1814 = vmul.f32 %v1386, 1.0614054
  %v1815 = vmul.f32 %v1401, 1.0614054
  %v1816 = vmul.f32 %v1416, 1.0614054
  %v1817 = vmul.f32 %v1431, 1.0614054
  %v1818 = vmul.f32 %v1446, 1.0614054
  %v1819 = vmul.f32 %v1461, 1.0614054
  %v1820 = vmul.f32 %v1476, 1.0614054
  %v1821 = vmul.f32 %v1491, 1.0614054
  %v1822 = vmul.f32 %v1506, 1.0614054
  %v1823 = vmul.f32 %v1521, 1.0614054
  %v1824 = vmul.f32 %v1536, 1.0614054
  %v1825 = vmul.f32 %v1551, 1.0614054
  %v1826 = vmul.f32 %v1566, 1.0614054
  %v1827 = vmul.f32 %v1581, 1.0614054
  %v1828 = vmul.f32 %v1596, 1.0614054
  %v1829 = vmul.f32 %v1611, 1.0614054
  %v1830 = vmul.f32 %v1626, 1.0614054
  %v1831 = vmul.f32 %v1641, 1.0614054
  %v1832 = vmul.f32 %v1656, 1.0614054
  %v1833 = vmul.f32 %v1671, 1.0614054
  %v1834 = vmul.f32 %v1686, 1.0614054
  %v1835 = vmul.f32 %v1701, 1.0614054
  %v1836 = vmul.f32 %v1716, 1.0614054
  %v1837 = vmul.f32 %v1731, 1.0614054
  %v1838 = vmul.f32 %v1746, 1.0614054
  %v1839 = vmul.f32 %v1761, 1.0614054
  %v1840 = vmul.f32 %v1776, 1.0614054
  %v1841 = vsub.f32 %v1777, 1.4531521
  %v1842 = vsub.f32 %v1778, 1.4531521
  %v1843 = vsub.f32 %v1779, 1.4531521
  %v1844 = vsub.f32 %v1780, 1.4531521
  %v1845 = vsub.f32 %v1781, 1.4531521
  %v1846 = vsub.f32 %v1782, 1.4531521
  %v1847 = vsub.f32 %v1783, 1.4531521
  %v1848 = vsub.f32 %v1784, 1.4531521
  %v1849 = vsub.f32 %v1785, 1.4531521
  %v1850 = vsub.f32 %v1786, 1.4531521
  %v1851 = vsub.f32 %v1787, 1.4531521
  %v1852 = vsub.f32 %v1788, 1.4531521
  %v1853 = vsub.f32 %v1789, 1.4531521
  %v1854 = vsub.f32 %v1790, 1.4531521
  %v1855 = vsub.f32 %v1791, 1.4531521
  %v1856 = vsub.f32 %v1792, 1.4531521
  %v1857 = vsub.f32 %v1793, 1.4531521
  %v1858 = vsub.f32 %v1794, 1.4531521
  %v1859 = vsub.f32 %v1795, 1.4531521
  %v1860 = vsub.f32 %v1796, 1.4531521
  %v1861 = vsub.f32 %v1797, 1.4531521
  %v1862 = vsub.f32 %v1798, 1.4531521
  %v1863 = vsub.f32 %v1799, 1.4531521
  %v1864 = vsub.f32 %v1800, 1.4531521
  %v1865 = vsub.f32 %v1801, 1.4531521
  %v1866 = vsub.f32 %v1802, 1.4531521
  %v1867 = vsub.f32 %v1803, 1.4531521
  %v1868 = vsub.f32 %v1804, 1.4531521
  %v1869 = vsub.f32 %v1805, 1.4531521
  %v1870 = vsub.f32 %v1806, 1.4531521
  %v1871 = vsub.f32 %v1807, 1.4531521
  %v1872 = vsub.f32 %v1808, 1.4531521
  %v1873 = vsub.f32 %v1809, 1.4531521
  %v1874 = vsub.f32 %v1810, 1.4531521
  %v1875 = vsub.f32 %v1811, 1.4531521
  %v1876 = vsub.f32 %v1812, 1.4531521
  %v1877 = vsub.f32 %v1813, 1.4531521
  %v1878 = vsub.f32 %v1814, 1.4531521
  %v1879 = vsub.f32 %v1815, 1.4531521
  %v1880 = vsub.f32 %v1816, 1.4531521
  %v1881 = vsub.f32 %v1817, 1.4531521
  %v1882 = vsub.f32 %v1818, 1.4531521
  %v1883 = vsub.f32 %v1819, 1.4531521
  %v1884 = vsub.f32 %v1820, 1.4531521
  %v1885 = vsub.f32 %v1821, 1.4531521
  %v1886 = vsub.f32 %v1822, 1.4531521
  %v1887 = vsub.f32 %v1823, 1.4531521
  %v1888 = vsub.f32 %v1824, 1.4531521
  %v1889 = vsub.f32 %v1825, 1.4531521
  %v1890 = vsub.f32 %v1826, 1.4531521
  %v1891 = vsub.f32 %v1827, 1.4531521
  %v1892 = vsub.f32 %v1828, 1.4531521
  %v1893 = vsub.f32 %v1829, 1.4531521
  %v1894 = vsub.f32 %v1830, 1.4531521
  %v1895 = vsub.f32 %v1831, 1.4531521
  %v1896 = vsub.f32 %v1832, 1.4531521
  %v1897 = vsub.f32 %v1833, 1.4531521
  %v1898 = vsub.f32 %v1834, 1.4531521
  %v1899 = vsub.f32 %v1835, 1.4531521
  %v1900 = vsub.f32 %v1836, 1.4531521
  %v1901 = vsub.f32 %v1837, 1.4531521
  %v1902 = vsub.f32 %v1838, 1.4531521
  %v1903 = vsub.f32 %v1839, 1.4531521
  %v1904 = vsub.f32 %v1840, 1.4531521
  %v1905 = vmul.f32 %v1841, %v831
  %v1906 = vmul.f32 %v1842, %v846
  %v1907 = vmul.f32 %v1843, %v861
  %v1908 = vmul.f32 %v1844, %v876
  %v1909 = vmul.f32 %v1845, %v891
  %v1910 = vmul.f32 %v1846, %v906
  %v1911 = vmul.f32 %v1847, %v921
  %v1912 = vmul.f32 %v1848, %v936
  %v1913 = vmul.f32 %v1849, %v951
  %v1914 = vmul.f32 %v1850, %v966
  %v1915 = vmul.f32 %v1851, %v981
  %v1916 = vmul.f32 %v1852, %v996
  %v1917 = vmul.f32 %v1853, %v1011
  %v1918 = vmul.f32 %v1854, %v1026
  %v1919 = vmul.f32 %v1855, %v1041
  %v1920 = vmul.f32 %v1856, %v1056
  %v1921 = vmul.f32 %v1857, %v1071
  %v1922 = vmul.f32 %v1858, %v1086
  %v1923 = vmul.f32 %v1859, %v1101
  %v1924 = vmul.f32 %v1860, %v1116
  %v1925 = vmul.f32 %v1861, %v1131
  %v1926 = vmul.f32 %v1862, %v1146
  %v1927 = vmul.f32 %v1863, %v1161
  %v1928 = vmul.f32 %v1864, %v1176
  %v1929 = vmul.f32 %v1865, %v1191
  %v1930 = vmul.f32 %v1866, %v1206
  %v1931 = vmul.f32 %v1867, %v1221
  %v1932 = vmul.f32 %v1868, %v1236
  %v1933 = vmul.f32 %v1869, %v1251
  %v1934 = vmul.f32 %v1870, %v1266
  %v1935 = vmul.f32 %v1871, %v1281
  %v1936 = vmul.f32 %v1872, %v1296
  %v1937 = vmul.f32 %v1873, %v1311
  %v1938 = vmul.f32 %v1874, %v1326
  %v1939 = vmul.f32 %v1875, %v1341
  %v1940 = vmul.f32 %v1876, %v1356
  %v1941 = vmul.f32 %v1877, %v1371
  %v1942 = vmul.f32 %v1878, %v1386
  %v1943 = vmul.f32 %v1879, %v1401
  %v1944 = vmul.f32 %v1880, %v1416
  %v1945 = vmul.f32 %v1881, %v1431
  %v1946 = vmul.f32 %v1882, %v1446
  %v1947 = vmul.f32 %v1883, %v1461
  %v1948 = vmul.f32 %v1884, %v1476
  %v1949 = vmul.f32 %v1885, %v1491
  %v1950 = vmul.f32 %v1886, %v1506
  %v1951 = vmul.f32 %v1887, %v1521
  %v1952 = vmul.f32 %v1888, %v1536
  %v1953 = vmul.f32 %v1889, %v1551
  %v1954 = vmul.f32 %v1890, %v1566
  %v1955 = vmul.f32 %v1891, %v1581
  %v1956 = vmul.f32 %v1892, %v1596
  %v1957 = vmul.f32 %v1893, %v1611
  %v1958 = vmul.f32 %v1894, %v1626
  %v1959 = vmul.f32 %v1895, %v1641
  %v1960 = vmul.f32 %v1896, %v1656
  %v1961 = vmul.f32 %v1897, %v1671
  %v1962 = vmul.f32 %v1898, %v1686
  %v1963 = vmul.f32 %v1899, %v1701
  %v1964 = vmul.f32 %v1900, %v1716
  %v1965 = vmul.f32 %v1901, %v1731
  %v1966 = vmul.f32 %v1902, %v1746
  %v1967 = vmul.f32 %v1903, %v1761
  %v1968 = vmul.f32 %v1904, %v1776
  %v1969 = vadd.f32 %v1905, 1.4214138
  %v1970 = vadd.f32 %v1906, 1.4214138
  %v1971 = vadd.f32 %v1907, 1.4214138
  %v1972 = vadd.f32 %v1908, 1.4214138
  %v1973 = vadd.f32 %v1909, 1.4214138
  %v1974 = vadd.f32 %v1910, 1.4214138
  %v1975 = vadd.f32 %v1911, 1.4214138
  %v1976 = vadd.f32 %v1912, 1.4214138
  %v1977 = vadd.f32 %v1913, 1.4214138
  %v1978 = vadd.f32 %v1914, 1.4214138
  %v1979 = vadd.f32 %v1915, 1.4214138
  %v1980 = vadd.f32 %v1916, 1.4214138
  %v1981 = vadd.f32 %v1917, 1.4214138
  %v1982 = vadd.f32 %v1918, 1.4214138
  %v1983 = vadd.f32 %v1919, 1.4214138
  %v1984 = vadd.f32 %v1920, 1.4214138
  %v1985 = vadd.f32 %v1921, 1.4214138
  %v1986 = vadd.f32 %v1922, 1.4214138
  %v1987 = vadd.f32 %v1923, 1.4214138
  %v1988 = vadd.f32 %v1924, 1.4214138
  %v1989 = vadd.f32 %v1925, 1.4214138
  %v1990 = vadd.f32 %v1926, 1.4214138
  %v1991 = vadd.f32 %v1927, 1.4214138
  %v1992 = vadd.f32 %v1928, 1.4214138
  %v1993 = vadd.f32 %v1929, 1.4214138
  %v1994 = vadd.f32 %v1930, 1.4214138
  %v1995 = vadd.f32 %v1931, 1.4214138
  %v1996 = vadd.f32 %v1932, 1.4214138
  %v1997 = vadd.f32 %v1933, 1.4214138
  %v1998 = vadd.f32 %v1934, 1.4214138
  %v1999 = vadd.f32 %v1935, 1.4214138
  %v2000 = vadd.f32 %v1936, 1.4214138
  %v2001 = vadd.f32 %v1937, 1.4214138
  %v2002 = vadd.f32 %v1938, 1.4214138
  %v2003 = vadd.f32 %v1939, 1.4214138
  %v2004 = vadd.f32 %v1940, 1.4214138
  %v2005 = vadd.f32 %v1941, 1.4214138
  %v2006 = vadd.f32 %v1942, 1.4214138
  %v2007 = vadd.f32 %v1943, 1.4214138
  %v2008 = vadd.f32 %v1944, 1.4214138
  %v2009 = vadd.f32 %v1945, 1.4214138
  %v2010 = vadd.f32 %v1946, 1.4214138
  %v2011 = vadd.f32 %v1947, 1.4214138
  %v2012 = vadd.f32 %v1948, 1.4214138
  %v2013 = vadd.f32 %v1949, 1.4214138
  %v2014 = vadd.f32 %v1950, 1.4214138
  %v2015 = vadd.f32 %v1951, 1.4214138
  %v2016 = vadd.f32 %v1952, 1.4214138
  %v2017 = vadd.f32 %v1953, 1.4214138
  %v2018 = vadd.f32 %v1954, 1.4214138
  %v2019 = vadd.f32 %v1955, 1.4214138
  %v2020 = vadd.f32 %v1956, 1.4214138
  %v2021 = vadd.f32 %v1957, 1.4214138
  %v2022 = vadd.f32 %v1958, 1.4214138
  %v2023 = vadd.f32 %v1959, 1.4214138
  %v2024 = vadd.f32 %v1960, 1.4214138
  %v2025 = vadd.f32 %v1961, 1.4214138
  %v2026 = vadd.f32 %v1962, 1.4214138
  %v2027 = vadd.f32 %v1963, 1.4214138
  %v2028 = vadd.f32 %v1964, 1.4214138
  %v2029 = vadd.f32 %v1965, 1.4214138
  %v2030 = vadd.f32 %v1966, 1.4214138
  %v2031 = vadd.f32 %v1967, 1.4214138
  %v2032 = vadd.f32 %v1968, 1.4214138
  %v2033 = vmul.f32 %v1969, %v831
  %v2034 = vmul.f32 %v1970, %v846
  %v2035 = vmul.f32 %v1971, %v861
  %v2036 = vmul.f32 %v1972, %v876
  %v2037 = vmul.f32 %v1973, %v891
  %v2038 = vmul.f32 %v1974, %v906
  %v2039 = vmul.f32 %v1975, %v921
  %v2040 = vmul.f32 %v1976, %v936
  %v2041 = vmul.f32 %v1977, %v951
  %v2042 = vmul.f32 %v1978, %v966
  %v2043 = vmul.f32 %v1979, %v981
  %v2044 = vmul.f32 %v1980, %v996
  %v2045 = vmul.f32 %v1981, %v1011
  %v2046 = vmul.f32 %v1982, %v1026
  %v2047 = vmul.f32 %v1983, %v1041
  %v2048 = vmul.f32 %v1984, %v1056
  %v2049 = vmul.f32 %v1985, %v1071
  %v2050 = vmul.f32 %v1986, %v1086
  %v2051 = vmul.f32 %v1987, %v1101
  %v2052 = vmul.f32 %v1988, %v1116
  %v2053 = vmul.f32 %v1989, %v1131
  %v2054 = vmul.f32 %v1990, %v1146
  %v2055 = vmul.f32 %v1991, %v1161
  %v2056 = vmul.f32 %v1992, %v1176
  %v2057 = vmul.f32 %v1993, %v1191
  %v2058 = vmul.f32 %v1994, %v1206
  %v2059 = vmul.f32 %v1995, %v1221
  %v2060 = vmul.f32 %v1996, %v1236
  %v2061 = vmul.f32 %v1997, %v1251
  %v2062 = vmul.f32 %v1998, %v1266
  %v2063 = vmul.f32 %v1999, %v1281
  %v2064 = vmul.f32 %v2000, %v1296
  %v2065 = vmul.f32 %v2001, %v1311
  %v2066 = vmul.f32 %v2002, %v1326
  %v2067 = vmul.f32 %v2003, %v1341
  %v2068 = vmul.f32 %v2004, %v1356
  %v2069 = vmul.f32 %v2005, %v1371
  %v2070 = vmul.f32 %v2006, %v1386
  %v2071 = vmul.f32 %v2007, %v1401
  %v2072 = vmul.f32 %v2008, %v1416
  %v2073 = vmul.f32 %v2009, %v1431
  %v2074 = vmul.f32 %v2010, %v1446
  %v2075 = vmul.f32 %v2011, %v1461
  %v2076 = vmul.f32 %v2012, %v1476
  %v2077 = vmul.f32 %v2013, %v1491
  %v2078 = vmul.f32 %v2014, %v1506
  %v2079 = vmul.f32 %v2015, %v1521
  %v2080 = vmul.f32 %v2016, %v1536
  %v2081 = vmul.f32 %v2017, %v1551
  %v2082 = vmul.f32 %v2018, %v1566
  %v2083 = vmul.f32 %v2019, %v1581
  %v2084 = vmul.f32 %v2020, %v1596
  %v2085 = vmul.f32 %v2021, %v1611
  %v2086 = vmul.f32 %v2022, %v1626
  %v2087 = vmul.f32 %v2023, %v1641
  %v2088 = vmul.f32 %v2024, %v1656
  %v2089 = vmul.f32 %v2025, %v1671
  %v2090 = vmul.f32 %v2026, %v1686
  %v2091 = vmul.f32 %v2027, %v1701
  %v2092 = vmul.f32 %v2028, %v1716
  %v2093 = vmul.f32 %v2029, %v1731
  %v2094 = vmul.f32 %v2030, %v1746
  %v2095 = vmul.f32 %v2031, %v1761
  %v2096 = vmul.f32 %v2032, %v1776
  %v2097 = vsub.f32 %v2033, 0.28449672
  %v2098 = vsub.f32 %v2034, 0.28449672
  %v2099 = vsub.f32 %v2035, 0.28449672
  %v2100 = vsub.f32 %v2036, 0.28449672
  %v2101 = vsub.f32 %v2037, 0.28449672
  %v2102 = vsub.f32 %v2038, 0.28449672
  %v2103 = vsub.f32 %v2039, 0.28449672
  %v2104 = vsub.f32 %v2040, 0.28449672
  %v2105 = vsub.f32 %v2041, 0.28449672
  %v2106 = vsub.f32 %v2042, 0.28449672
  %v2107 = vsub.f32 %v2043, 0.28449672
  %v2108 = vsub.f32 %v2044, 0.28449672
  %v2109 = vsub.f32 %v2045, 0.28449672
  %v2110 = vsub.f32 %v2046, 0.28449672
  %v2111 = vsub.f32 %v2047, 0.28449672
  %v2112 = vsub.f32 %v2048, 0.28449672
  %v2113 = vsub.f32 %v2049, 0.28449672
  %v2114 = vsub.f32 %v2050, 0.28449672
  %v2115 = vsub.f32 %v2051, 0.28449672
  %v2116 = vsub.f32 %v2052, 0.28449672
  %v2117 = vsub.f32 %v2053, 0.28449672
  %v2118 = vsub.f32 %v2054, 0.28449672
  %v2119 = vsub.f32 %v2055, 0.28449672
  %v2120 = vsub.f32 %v2056, 0.28449672
  %v2121 = vsub.f32 %v2057, 0.28449672
  %v2122 = vsub.f32 %v2058, 0.28449672
  %v2123 = vsub.f32 %v2059, 0.28449672
  %v2124 = vsub.f32 %v2060, 0.28449672
  %v2125 = vsub.f32 %v2061, 0.28449672
  %v2126 = vsub.f32 %v2062, 0.28449672
  %v2127 = vsub.f32 %v2063, 0.28449672
  %v2128 = vsub.f32 %v2064, 0.28449672
  %v2129 = vsub.f32 %v2065, 0.28449672
  %v2130 = vsub.f32 %v2066, 0.28449672
  %v2131 = vsub.f32 %v2067, 0.28449672
  %v2132 = vsub.f32 %v2068, 0.28449672
  %v2133 = vsub.f32 %v2069, 0.28449672
  %v2134 = vsub.f32 %v2070, 0.28449672
  %v2135 = vsub.f32 %v2071, 0.28449672
  %v2136 = vsub.f32 %v2072, 0.28449672
  %v2137 = vsub.f32 %v2073, 0.28449672
  %v2138 = vsub.f32 %v2074, 0.28449672
  %v2139 = vsub.f32 %v2075, 0.28449672
  %v2140 = vsub.f32 %v2076, 0.28449672
  %v2141 = vsub.f32 %v2077, 0.28449672
  %v2142 = vsub.f32 %v2078, 0.28449672
  %v2143 = vsub.f32 %v2079, 0.28449672
  %v2144 = vsub.f32 %v2080, 0.28449672
  %v2145 = vsub.f32 %v2081, 0.28449672
  %v2146 = vsub.f32 %v2082, 0.28449672
  %v2147 = vsub.f32 %v2083, 0.28449672
  %v2148 = vsub.f32 %v2084, 0.28449672
  %v2149 = vsub.f32 %v2085, 0.28449672
  %v2150 = vsub.f32 %v2086, 0.28449672
  %v2151 = vsub.f32 %v2087, 0.28449672
  %v2152 = vsub.f32 %v2088, 0.28449672
  %v2153 = vsub.f32 %v2089, 0.28449672
  %v2154 = vsub.f32 %v2090, 0.28449672
  %v2155 = vsub.f32 %v2091, 0.28449672
  %v2156 = vsub.f32 %v2092, 0.28449672
  %v2157 = vsub.f32 %v2093, 0.28449672
  %v2158 = vsub.f32 %v2094, 0.28449672
  %v2159 = vsub.f32 %v2095, 0.28449672
  %v2160 = vsub.f32 %v2096, 0.28449672
  %v2161 = vmul.f32 %v2097, %v831
  %v2162 = vmul.f32 %v2098, %v846
  %v2163 = vmul.f32 %v2099, %v861
  %v2164 = vmul.f32 %v2100, %v876
  %v2165 = vmul.f32 %v2101, %v891
  %v2166 = vmul.f32 %v2102, %v906
  %v2167 = vmul.f32 %v2103, %v921
  %v2168 = vmul.f32 %v2104, %v936
  %v2169 = vmul.f32 %v2105, %v951
  %v2170 = vmul.f32 %v2106, %v966
  %v2171 = vmul.f32 %v2107, %v981
  %v2172 = vmul.f32 %v2108, %v996
  %v2173 = vmul.f32 %v2109, %v1011
  %v2174 = vmul.f32 %v2110, %v1026
  %v2175 = vmul.f32 %v2111, %v1041
  %v2176 = vmul.f32 %v2112, %v1056
  %v2177 = vmul.f32 %v2113, %v1071
  %v2178 = vmul.f32 %v2114, %v1086
  %v2179 = vmul.f32 %v2115, %v1101
  %v2180 = vmul.f32 %v2116, %v1116
  %v2181 = vmul.f32 %v2117, %v1131
  %v2182 = vmul.f32 %v2118, %v1146
  %v2183 = vmul.f32 %v2119, %v1161
  %v2184 = vmul.f32 %v2120, %v1176
  %v2185 = vmul.f32 %v2121, %v1191
  %v2186 = vmul.f32 %v2122, %v1206
  %v2187 = vmul.f32 %v2123, %v1221
  %v2188 = vmul.f32 %v2124, %v1236
  %v2189 = vmul.f32 %v2125, %v1251
  %v2190 = vmul.f32 %v2126, %v1266
  %v2191 = vmul.f32 %v2127, %v1281
  %v2192 = vmul.f32 %v2128, %v1296
  %v2193 = vmul.f32 %v2129, %v1311
  %v2194 = vmul.f32 %v2130, %v1326
  %v2195 = vmul.f32 %v2131, %v1341
  %v2196 = vmul.f32 %v2132, %v1356
  %v2197 = vmul.f32 %v2133, %v1371
  %v2198 = vmul.f32 %v2134, %v1386
  %v2199 = vmul.f32 %v2135, %v1401
  %v2200 = vmul.f32 %v2136, %v1416
  %v2201 = vmul.f32 %v2137, %v1431
  %v2202 = vmul.f32 %v2138, %v1446
  %v2203 = vmul.f32 %v2139, %v1461
  %v2204 = vmul.f32 %v2140, %v1476
  %v2205 = vmul.f32 %v2141, %v1491
  %v2206 = vmul.f32 %v2142, %v1506
  %v2207 = vmul.f32 %v2143, %v1521
  %v2208 = vmul.f32 %v2144, %v1536
  %v2209 = vmul.f32 %v2145, %v1551
  %v2210 = vmul.f32 %v2146, %v1566
  %v2211 = vmul.f32 %v2147, %v1581
  %v2212 = vmul.f32 %v2148, %v1596
  %v2213 = vmul.f32 %v2149, %v1611
  %v2214 = vmul.f32 %v2150, %v1626
  %v2215 = vmul.f32 %v2151, %v1641
  %v2216 = vmul.f32 %v2152, %v1656
  %v2217 = vmul.f32 %v2153, %v1671
  %v2218 = vmul.f32 %v2154, %v1686
  %v2219 = vmul.f32 %v2155, %v1701
  %v2220 = vmul.f32 %v2156, %v1716
  %v2221 = vmul.f32 %v2157, %v1731
  %v2222 = vmul.f32 %v2158, %v1746
  %v2223 = vmul.f32 %v2159, %v1761
  %v2224 = vmul.f32 %v2160, %v1776
  %v2225 = vadd.f32 %v2161, 0.2548296
  %v2226 = vadd.f32 %v2162, 0.2548296
  %v2227 = vadd.f32 %v2163, 0.2548296
  %v2228 = vadd.f32 %v2164, 0.2548296
  %v2229 = vadd.f32 %v2165, 0.2548296
  %v2230 = vadd.f32 %v2166, 0.2548296
  %v2231 = vadd.f32 %v2167, 0.2548296
  %v2232 = vadd.f32 %v2168, 0.2548296
  %v2233 = vadd.f32 %v2169, 0.2548296
  %v2234 = vadd.f32 %v2170, 0.2548296
  %v2235 = vadd.f32 %v2171, 0.2548296
  %v2236 = vadd.f32 %v2172, 0.2548296
  %v2237 = vadd.f32 %v2173, 0.2548296
  %v2238 = vadd.f32 %v2174, 0.2548296
  %v2239 = vadd.f32 %v2175, 0.2548296
  %v2240 = vadd.f32 %v2176, 0.2548296
  %v2241 = vadd.f32 %v2177, 0.2548296
  %v2242 = vadd.f32 %v2178, 0.2548296
  %v2243 = vadd.f32 %v2179, 0.2548296
  %v2244 = vadd.f32 %v2180, 0.2548296
  %v2245 = vadd.f32 %v2181, 0.2548296
  %v2246 = vadd.f32 %v2182, 0.2548296
  %v2247 = vadd.f32 %v2183, 0.2548296
  %v2248 = vadd.f32 %v2184, 0.2548296
  %v2249 = vadd.f32 %v2185, 0.2548296
  %v2250 = vadd.f32 %v2186, 0.2548296
  %v2251 = vadd.f32 %v2187, 0.2548296
  %v2252 = vadd.f32 %v2188, 0.2548296
  %v2253 = vadd.f32 %v2189, 0.2548296
  %v2254 = vadd.f32 %v2190, 0.2548296
  %v2255 = vadd.f32 %v2191, 0.2548296
  %v2256 = vadd.f32 %v2192, 0.2548296
  %v2257 = vadd.f32 %v2193, 0.2548296
  %v2258 = vadd.f32 %v2194, 0.2548296
  %v2259 = vadd.f32 %v2195, 0.2548296
  %v2260 = vadd.f32 %v2196, 0.2548296
  %v2261 = vadd.f32 %v2197, 0.2548296
  %v2262 = vadd.f32 %v2198, 0.2548296
  %v2263 = vadd.f32 %v2199, 0.2548296
  %v2264 = vadd.f32 %v2200, 0.2548296
  %v2265 = vadd.f32 %v2201, 0.2548296
  %v2266 = vadd.f32 %v2202, 0.2548296
  %v2267 = vadd.f32 %v2203, 0.2548296
  %v2268 = vadd.f32 %v2204, 0.2548296
  %v2269 = vadd.f32 %v2205, 0.2548296
  %v2270 = vadd.f32 %v2206, 0.2548296
  %v2271 = vadd.f32 %v2207, 0.2548296
  %v2272 = vadd.f32 %v2208, 0.2548296
  %v2273 = vadd.f32 %v2209, 0.2548296
  %v2274 = vadd.f32 %v2210, 0.2548296
  %v2275 = vadd.f32 %v2211, 0.2548296
  %v2276 = vadd.f32 %v2212, 0.2548296
  %v2277 = vadd.f32 %v2213, 0.2548296
  %v2278 = vadd.f32 %v2214, 0.2548296
  %v2279 = vadd.f32 %v2215, 0.2548296
  %v2280 = vadd.f32 %v2216, 0.2548296
  %v2281 = vadd.f32 %v2217, 0.2548296
  %v2282 = vadd.f32 %v2218, 0.2548296
  %v2283 = vadd.f32 %v2219, 0.2548296
  %v2284 = vadd.f32 %v2220, 0.2548296
  %v2285 = vadd.f32 %v2221, 0.2548296
  %v2286 = vadd.f32 %v2222, 0.2548296
  %v2287 = vadd.f32 %v2223, 0.2548296
  %v2288 = vadd.f32 %v2224, 0.2548296
  %v2289 = vmul.f32 %v2225, %v831
  %v2290 = vmul.f32 %v2226, %v846
  %v2291 = vmul.f32 %v2227, %v861
  %v2292 = vmul.f32 %v2228, %v876
  %v2293 = vmul.f32 %v2229, %v891
  %v2294 = vmul.f32 %v2230, %v906
  %v2295 = vmul.f32 %v2231, %v921
  %v2296 = vmul.f32 %v2232, %v936
  %v2297 = vmul.f32 %v2233, %v951
  %v2298 = vmul.f32 %v2234, %v966
  %v2299 = vmul.f32 %v2235, %v981
  %v2300 = vmul.f32 %v2236, %v996
  %v2301 = vmul.f32 %v2237, %v1011
  %v2302 = vmul.f32 %v2238, %v1026
  %v2303 = vmul.f32 %v2239, %v1041
  %v2304 = vmul.f32 %v2240, %v1056
  %v2305 = vmul.f32 %v2241, %v1071
  %v2306 = vmul.f32 %v2242, %v1086
  %v2307 = vmul.f32 %v2243, %v1101
  %v2308 = vmul.f32 %v2244, %v1116
  %v2309 = vmul.f32 %v2245, %v1131
  %v2310 = vmul.f32 %v2246, %v1146
  %v2311 = vmul.f32 %v2247, %v1161
  %v2312 = vmul.f32 %v2248, %v1176
  %v2313 = vmul.f32 %v2249, %v1191
  %v2314 = vmul.f32 %v2250, %v1206
  %v2315 = vmul.f32 %v2251, %v1221
  %v2316 = vmul.f32 %v2252, %v1236
  %v2317 = vmul.f32 %v2253, %v1251
  %v2318 = vmul.f32 %v2254, %v1266
  %v2319 = vmul.f32 %v2255, %v1281
  %v2320 = vmul.f32 %v2256, %v1296
  %v2321 = vmul.f32 %v2257, %v1311
  %v2322 = vmul.f32 %v2258, %v1326
  %v2323 = vmul.f32 %v2259, %v1341
  %v2324 = vmul.f32 %v2260, %v1356
  %v2325 = vmul.f32 %v2261, %v1371
  %v2326 = vmul.f32 %v2262, %v1386
  %v2327 = vmul.f32 %v2263, %v1401
  %v2328 = vmul.f32 %v2264, %v1416
  %v2329 = vmul.f32 %v2265, %v1431
  %v2330 = vmul.f32 %v2266, %v1446
  %v2331 = vmul.f32 %v2267, %v1461
  %v2332 = vmul.f32 %v2268, %v1476
  %v2333 = vmul.f32 %v2269, %v1491
  %v2334 = vmul.f32 %v2270, %v1506
  %v2335 = vmul.f32 %v2271, %v1521
  %v2336 = vmul.f32 %v2272, %v1536
  %v2337 = vmul.f32 %v2273, %v1551
  %v2338 = vmul.f32 %v2274, %v1566
  %v2339 = vmul.f32 %v2275, %v1581
  %v2340 = vmul.f32 %v2276, %v1596
  %v2341 = vmul.f32 %v2277, %v1611
  %v2342 = vmul.f32 %v2278, %v1626
  %v2343 = vmul.f32 %v2279, %v1641
  %v2344 = vmul.f32 %v2280, %v1656
  %v2345 = vmul.f32 %v2281, %v1671
  %v2346 = vmul.f32 %v2282, %v1686
  %v2347 = vmul.f32 %v2283, %v1701
  %v2348 = vmul.f32 %v2284, %v1716
  %v2349 = vmul.f32 %v2285, %v1731
  %v2350 = vmul.f32 %v2286, %v1746
  %v2351 = vmul.f32 %v2287, %v1761
  %v2352 = vmul.f32 %v2288, %v1776
  %v2353 = vmul.f32 %v625, %v625
  %v2354 = vmul.f32 %v626, %v626
  %v2355 = vmul.f32 %v627, %v627
  %v2356 = vmul.f32 %v628, %v628
  %v2357 = vmul.f32 %v629, %v629
  %v2358 = vmul.f32 %v630, %v630
  %v2359 = vmul.f32 %v631, %v631
  %v2360 = vmul.f32 %v632, %v632
  %v2361 = vmul.f32 %v633, %v633
  %v2362 = vmul.f32 %v634, %v634
  %v2363 = vmul.f32 %v635, %v635
  %v2364 = vmul.f32 %v636, %v636
  %v2365 = vmul.f32 %v637, %v637
  %v2366 = vmul.f32 %v638, %v638
  %v2367 = vmul.f32 %v639, %v639
  %v2368 = vmul.f32 %v640, %v640
  %v2369 = vmul.f32 %v641, %v641
  %v2370 = vmul.f32 %v642, %v642
  %v2371 = vmul.f32 %v643, %v643
  %v2372 = vmul.f32 %v644, %v644
  %v2373 = vmul.f32 %v645, %v645
  %v2374 = vmul.f32 %v646, %v646
  %v2375 = vmul.f32 %v647, %v647
  %v2376 = vmul.f32 %v648, %v648
  %v2377 = vmul.f32 %v649, %v649
  %v2378 = vmul.f32 %v650, %v650
  %v2379 = vmul.f32 %v651, %v651
  %v2380 = vmul.f32 %v652, %v652
  %v2381 = vmul.f32 %v653, %v653
  %v2382 = vmul.f32 %v654, %v654
  %v2383 = vmul.f32 %v655, %v655
  %v2384 = vmul.f32 %v656, %v656
  %v2385 = vmul.f32 %v657, %v657
  %v2386 = vmul.f32 %v658, %v658
  %v2387 = vmul.f32 %v659, %v659
  %v2388 = vmul.f32 %v660, %v660
  %v2389 = vmul.f32 %v661, %v661
  %v2390 = vmul.f32 %v662, %v662
  %v2391 = vmul.f32 %v663, %v663
  %v2392 = vmul.f32 %v664, %v664
  %v2393 = vmul.f32 %v665, %v665
  %v2394 = vmul.f32 %v666, %v666
  %v2395 = vmul.f32 %v667, %v667
  %v2396 = vmul.f32 %v668, %v668
  %v2397 = vmul.f32 %v669, %v669
  %v2398 = vmul.f32 %v670, %v670
  %v2399 = vmul.f32 %v671, %v671
  %v2400 = vmul.f32 %v672, %v672
  %v2401 = vmul.f32 %v673, %v673
  %v2402 = vmul.f32 %v674, %v674
  %v2403 = vmul.f32 %v675, %v675
  %v2404 = vmul.f32 %v676, %v676
  %v2405 = vmul.f32 %v677, %v677
  %v2406 = vmul.f32 %v678, %v678
  %v2407 = vmul.f32 %v679, %v679
  %v2408 = vmul.f32 %v680, %v680
  %v2409 = vmul.f32 %v681, %v681
  %v2410 = vmul.f32 %v682, %v682
  %v2411 = vmul.f32 %v683, %v683
  %v2412 = vmul.f32 %v684, %v684
  %v2413 = vmul.f32 %v685, %v685
  %v2414 = vmul.f32 %v686, %v686
  %v2415 = vmul.f32 %v687, %v687
  %v2416 = vmul.f32 %v688, %v688
  %v2417 = vsub.f32 0.0, %v2353
  %v2418 = vsub.f32 0.0, %v2354
  %v2419 = vsub.f32 0.0, %v2355
  %v2420 = vsub.f32 0.0, %v2356
  %v2421 = vsub.f32 0.0, %v2357
  %v2422 = vsub.f32 0.0, %v2358
  %v2423 = vsub.f32 0.0, %v2359
  %v2424 = vsub.f32 0.0, %v2360
  %v2425 = vsub.f32 0.0, %v2361
  %v2426 = vsub.f32 0.0, %v2362
  %v2427 = vsub.f32 0.0, %v2363
  %v2428 = vsub.f32 0.0, %v2364
  %v2429 = vsub.f32 0.0, %v2365
  %v2430 = vsub.f32 0.0, %v2366
  %v2431 = vsub.f32 0.0, %v2367
  %v2432 = vsub.f32 0.0, %v2368
  %v2433 = vsub.f32 0.0, %v2369
  %v2434 = vsub.f32 0.0, %v2370
  %v2435 = vsub.f32 0.0, %v2371
  %v2436 = vsub.f32 0.0, %v2372
  %v2437 = vsub.f32 0.0, %v2373
  %v2438 = vsub.f32 0.0, %v2374
  %v2439 = vsub.f32 0.0, %v2375
  %v2440 = vsub.f32 0.0, %v2376
  %v2441 = vsub.f32 0.0, %v2377
  %v2442 = vsub.f32 0.0, %v2378
  %v2443 = vsub.f32 0.0, %v2379
  %v2444 = vsub.f32 0.0, %v2380
  %v2445 = vsub.f32 0.0, %v2381
  %v2446 = vsub.f32 0.0, %v2382
  %v2447 = vsub.f32 0.0, %v2383
  %v2448 = vsub.f32 0.0, %v2384
  %v2449 = vsub.f32 0.0, %v2385
  %v2450 = vsub.f32 0.0, %v2386
  %v2451 = vsub.f32 0.0, %v2387
  %v2452 = vsub.f32 0.0, %v2388
  %v2453 = vsub.f32 0.0, %v2389
  %v2454 = vsub.f32 0.0, %v2390
  %v2455 = vsub.f32 0.0, %v2391
  %v2456 = vsub.f32 0.0, %v2392
  %v2457 = vsub.f32 0.0, %v2393
  %v2458 = vsub.f32 0.0, %v2394
  %v2459 = vsub.f32 0.0, %v2395
  %v2460 = vsub.f32 0.0, %v2396
  %v2461 = vsub.f32 0.0, %v2397
  %v2462 = vsub.f32 0.0, %v2398
  %v2463 = vsub.f32 0.0, %v2399
  %v2464 = vsub.f32 0.0, %v2400
  %v2465 = vsub.f32 0.0, %v2401
  %v2466 = vsub.f32 0.0, %v2402
  %v2467 = vsub.f32 0.0, %v2403
  %v2468 = vsub.f32 0.0, %v2404
  %v2469 = vsub.f32 0.0, %v2405
  %v2470 = vsub.f32 0.0, %v2406
  %v2471 = vsub.f32 0.0, %v2407
  %v2472 = vsub.f32 0.0, %v2408
  %v2473 = vsub.f32 0.0, %v2409
  %v2474 = vsub.f32 0.0, %v2410
  %v2475 = vsub.f32 0.0, %v2411
  %v2476 = vsub.f32 0.0, %v2412
  %v2477 = vsub.f32 0.0, %v2413
  %v2478 = vsub.f32 0.0, %v2414
  %v2479 = vsub.f32 0.0, %v2415
  %v2480 = vsub.f32 0.0, %v2416
  %v2481 = vmul.f32 %v2417, 1.442695
  %v2482 = vpow.pop %v2481
  %v2483 = vmul.f32 %v2418, 1.442695
  %v2484 = vpow.pop %v2483
  %v2485 = vmul.f32 %v2419, 1.442695
  %v2486 = vpow.pop %v2485
  %v2487 = vmul.f32 %v2420, 1.442695
  %v2488 = vpow.pop %v2487
  %v2489 = vmul.f32 %v2421, 1.442695
  %v2490 = vpow.pop %v2489
  %v2491 = vmul.f32 %v2422, 1.442695
  %v2492 = vpow.pop %v2491
  %v2493 = vmul.f32 %v2423, 1.442695
  %v2494 = vpow.pop %v2493
  %v2495 = vmul.f32 %v2424, 1.442695
  %v2496 = vpow.pop %v2495
  %v2497 = vmul.f32 %v2425, 1.442695
  %v2498 = vpow.pop %v2497
  %v2499 = vmul.f32 %v2426, 1.442695
  %v2500 = vpow.pop %v2499
  %v2501 = vmul.f32 %v2427, 1.442695
  %v2502 = vpow.pop %v2501
  %v2503 = vmul.f32 %v2428, 1.442695
  %v2504 = vpow.pop %v2503
  %v2505 = vmul.f32 %v2429, 1.442695
  %v2506 = vpow.pop %v2505
  %v2507 = vmul.f32 %v2430, 1.442695
  %v2508 = vpow.pop %v2507
  %v2509 = vmul.f32 %v2431, 1.442695
  %v2510 = vpow.pop %v2509
  %v2511 = vmul.f32 %v2432, 1.442695
  %v2512 = vpow.pop %v2511
  %v2513 = vmul.f32 %v2433, 1.442695
  %v2514 = vpow.pop %v2513
  %v2515 = vmul.f32 %v2434, 1.442695
  %v2516 = vpow.pop %v2515
  %v2517 = vmul.f32 %v2435, 1.442695
  %v2518 = vpow.pop %v2517
  %v2519 = vmul.f32 %v2436, 1.442695
  %v2520 = vpow.pop %v2519
  %v2521 = vmul.f32 %v2437, 1.442695
  %v2522 = vpow.pop %v2521
  %v2523 = vmul.f32 %v2438, 1.442695
  %v2524 = vpow.pop %v2523
  %v2525 = vmul.f32 %v2439, 1.442695
  %v2526 = vpow.pop %v2525
  %v2527 = vmul.f32 %v2440, 1.442695
  %v2528 = vpow.pop %v2527
  %v2529 = vmul.f32 %v2441, 1.442695
  %v2530 = vpow.pop %v2529
  %v2531 = vmul.f32 %v2442, 1.442695
  %v2532 = vpow.pop %v2531
  %v2533 = vmul.f32 %v2443, 1.442695
  %v2534 = vpow.pop %v2533
  %v2535 = vmul.f32 %v2444, 1.442695
  %v2536 = vpow.pop %v2535
  %v2537 = vmul.f32 %v2445, 1.442695
  %v2538 = vpow.pop %v2537
  %v2539 = vmul.f32 %v2446, 1.442695
  %v2540 = vpow.pop %v2539
  %v2541 = vmul.f32 %v2447, 1.442695
  %v2542 = vpow.pop %v2541
  %v2543 = vmul.f32 %v2448, 1.442695
  %v2544 = vpow.pop %v2543
  %v2545 = vmul.f32 %v2449, 1.442695
  %v2546 = vpow.pop %v2545
  %v2547 = vmul.f32 %v2450, 1.442695
  %v2548 = vpow.pop %v2547
  %v2549 = vmul.f32 %v2451, 1.442695
  %v2550 = vpow.pop %v2549
  %v2551 = vmul.f32 %v2452, 1.442695
  %v2552 = vpow.pop %v2551
  %v2553 = vmul.f32 %v2453, 1.442695
  %v2554 = vpow.pop %v2553
  %v2555 = vmul.f32 %v2454, 1.442695
  %v2556 = vpow.pop %v2555
  %v2557 = vmul.f32 %v2455, 1.442695
  %v2558 = vpow.pop %v2557
  %v2559 = vmul.f32 %v2456, 1.442695
  %v2560 = vpow.pop %v2559
  %v2561 = vmul.f32 %v2457, 1.442695
  %v2562 = vpow.pop %v2561
  %v2563 = vmul.f32 %v2458, 1.442695
  %v2564 = vpow.pop %v2563
  %v2565 = vmul.f32 %v2459, 1.442695
  %v2566 = vpow.pop %v2565
  %v2567 = vmul.f32 %v2460, 1.442695
  %v2568 = vpow.pop %v2567
  %v2569 = vmul.f32 %v2461, 1.442695
  %v2570 = vpow.pop %v2569
  %v2571 = vmul.f32 %v2462, 1.442695
  %v2572 = vpow.pop %v2571
  %v2573 = vmul.f32 %v2463, 1.442695
  %v2574 = vpow.pop %v2573
  %v2575 = vmul.f32 %v2464, 1.442695
  %v2576 = vpow.pop %v2575
  %v2577 = vmul.f32 %v2465, 1.442695
  %v2578 = vpow.pop %v2577
  %v2579 = vmul.f32 %v2466, 1.442695
  %v2580 = vpow.pop %v2579
  %v2581 = vmul.f32 %v2467, 1.442695
  %v2582 = vpow.pop %v2581
  %v2583 = vmul.f32 %v2468, 1.442695
  %v2584 = vpow.pop %v2583
  %v2585 = vmul.f32 %v2469, 1.442695
  %v2586 = vpow.pop %v2585
  %v2587 = vmul.f32 %v2470, 1.442695
  %v2588 = vpow.pop %v2587
  %v2589 = vmul.f32 %v2471, 1.442695
  %v2590 = vpow.pop %v2589
  %v2591 = vmul.f32 %v2472, 1.442695
  %v2592 = vpow.pop %v2591
  %v2593 = vmul.f32 %v2473, 1.442695
  %v2594 = vpow.pop %v2593
  %v2595 = vmul.f32 %v2474, 1.442695
  %v2596 = vpow.pop %v2595
  %v2597 = vmul.f32 %v2475, 1.442695
  %v2598 = vpow.pop %v2597
  %v2599 = vmul.f32 %v2476, 1.442695
  %v2600 = vpow.pop %v2599
  %v2601 = vmul.f32 %v2477, 1.442695
  %v2602 = vpow.pop %v2601
  %v2603 = vmul.f32 %v2478, 1.442695
  %v2604 = vpow.pop %v2603
  %v2605 = vmul.f32 %v2479, 1.442695
  %v2606 = vpow.pop %v2605
  %v2607 = vmul.f32 %v2480, 1.442695
  %v2608 = vpow.pop %v2607
  %v2609 = vmul.f32 %v2289, %v2482
  %v2610 = vmul.f32 %v2290, %v2484
  %v2611 = vmul.f32 %v2291, %v2486
  %v2612 = vmul.f32 %v2292, %v2488
  %v2613 = vmul.f32 %v2293, %v2490
  %v2614 = vmul.f32 %v2294, %v2492
  %v2615 = vmul.f32 %v2295, %v2494
  %v2616 = vmul.f32 %v2296, %v2496
  %v2617 = vmul.f32 %v2297, %v2498
  %v2618 = vmul.f32 %v2298, %v2500
  %v2619 = vmul.f32 %v2299, %v2502
  %v2620 = vmul.f32 %v2300, %v2504
  %v2621 = vmul.f32 %v2301, %v2506
  %v2622 = vmul.f32 %v2302, %v2508
  %v2623 = vmul.f32 %v2303, %v2510
  %v2624 = vmul.f32 %v2304, %v2512
  %v2625 = vmul.f32 %v2305, %v2514
  %v2626 = vmul.f32 %v2306, %v2516
  %v2627 = vmul.f32 %v2307, %v2518
  %v2628 = vmul.f32 %v2308, %v2520
  %v2629 = vmul.f32 %v2309, %v2522
  %v2630 = vmul.f32 %v2310, %v2524
  %v2631 = vmul.f32 %v2311, %v2526
  %v2632 = vmul.f32 %v2312, %v2528
  %v2633 = vmul.f32 %v2313, %v2530
  %v2634 = vmul.f32 %v2314, %v2532
  %v2635 = vmul.f32 %v2315, %v2534
  %v2636 = vmul.f32 %v2316, %v2536
  %v2637 = vmul.f32 %v2317, %v2538
  %v2638 = vmul.f32 %v2318, %v2540
  %v2639 = vmul.f32 %v2319, %v2542
  %v2640 = vmul.f32 %v2320, %v2544
  %v2641 = vmul.f32 %v2321, %v2546
  %v2642 = vmul.f32 %v2322, %v2548
  %v2643 = vmul.f32 %v2323, %v2550
  %v2644 = vmul.f32 %v2324, %v2552
  %v2645 = vmul.f32 %v2325, %v2554
  %v2646 = vmul.f32 %v2326, %v2556
  %v2647 = vmul.f32 %v2327, %v2558
  %v2648 = vmul.f32 %v2328, %v2560
  %v2649 = vmul.f32 %v2329, %v2562
  %v2650 = vmul.f32 %v2330, %v2564
  %v2651 = vmul.f32 %v2331, %v2566
  %v2652 = vmul.f32 %v2332, %v2568
  %v2653 = vmul.f32 %v2333, %v2570
  %v2654 = vmul.f32 %v2334, %v2572
  %v2655 = vmul.f32 %v2335, %v2574
  %v2656 = vmul.f32 %v2336, %v2576
  %v2657 = vmul.f32 %v2337, %v2578
  %v2658 = vmul.f32 %v2338, %v2580
  %v2659 = vmul.f32 %v2339, %v2582
  %v2660 = vmul.f32 %v2340, %v2584
  %v2661 = vmul.f32 %v2341, %v2586
  %v2662 = vmul.f32 %v2342, %v2588
  %v2663 = vmul.f32 %v2343, %v2590
  %v2664 = vmul.f32 %v2344, %v2592
  %v2665 = vmul.f32 %v2345, %v2594
  %v2666 = vmul.f32 %v2346, %v2596
  %v2667 = vmul.f32 %v2347, %v2598
  %v2668 = vmul.f32 %v2348, %v2600
  %v2669 = vmul.f32 %v2349, %v2602
  %v2670 = vmul.f32 %v2350, %v2604
  %v2671 = vmul.f32 %v2351, %v2606
  %v2672 = vmul.f32 %v2352, %v2608
  %v2673 = vsub.f32 1.0, %v2609
  %v2674 = vsub.f32 1.0, %v2610
  %v2675 = vsub.f32 1.0, %v2611
  %v2676 = vsub.f32 1.0, %v2612
  %v2677 = vsub.f32 1.0, %v2613
  %v2678 = vsub.f32 1.0, %v2614
  %v2679 = vsub.f32 1.0, %v2615
  %v2680 = vsub.f32 1.0, %v2616
  %v2681 = vsub.f32 1.0, %v2617
  %v2682 = vsub.f32 1.0, %v2618
  %v2683 = vsub.f32 1.0, %v2619
  %v2684 = vsub.f32 1.0, %v2620
  %v2685 = vsub.f32 1.0, %v2621
  %v2686 = vsub.f32 1.0, %v2622
  %v2687 = vsub.f32 1.0, %v2623
  %v2688 = vsub.f32 1.0, %v2624
  %v2689 = vsub.f32 1.0, %v2625
  %v2690 = vsub.f32 1.0, %v2626
  %v2691 = vsub.f32 1.0, %v2627
  %v2692 = vsub.f32 1.0, %v2628
  %v2693 = vsub.f32 1.0, %v2629
  %v2694 = vsub.f32 1.0, %v2630
  %v2695 = vsub.f32 1.0, %v2631
  %v2696 = vsub.f32 1.0, %v2632
  %v2697 = vsub.f32 1.0, %v2633
  %v2698 = vsub.f32 1.0, %v2634
  %v2699 = vsub.f32 1.0, %v2635
  %v2700 = vsub.f32 1.0, %v2636
  %v2701 = vsub.f32 1.0, %v2637
  %v2702 = vsub.f32 1.0, %v2638
  %v2703 = vsub.f32 1.0, %v2639
  %v2704 = vsub.f32 1.0, %v2640
  %v2705 = vsub.f32 1.0, %v2641
  %v2706 = vsub.f32 1.0, %v2642
  %v2707 = vsub.f32 1.0, %v2643
  %v2708 = vsub.f32 1.0, %v2644
  %v2709 = vsub.f32 1.0, %v2645
  %v2710 = vsub.f32 1.0, %v2646
  %v2711 = vsub.f32 1.0, %v2647
  %v2712 = vsub.f32 1.0, %v2648
  %v2713 = vsub.f32 1.0, %v2649
  %v2714 = vsub.f32 1.0, %v2650
  %v2715 = vsub.f32 1.0, %v2651
  %v2716 = vsub.f32 1.0, %v2652
  %v2717 = vsub.f32 1.0, %v2653
  %v2718 = vsub.f32 1.0, %v2654
  %v2719 = vsub.f32 1.0, %v2655
  %v2720 = vsub.f32 1.0, %v2656
  %v2721 = vsub.f32 1.0, %v2657
  %v2722 = vsub.f32 1.0, %v2658
  %v2723 = vsub.f32 1.0, %v2659
  %v2724 = vsub.f32 1.0, %v2660
  %v2725 = vsub.f32 1.0, %v2661
  %v2726 = vsub.f32 1.0, %v2662
  %v2727 = vsub.f32 1.0, %v2663
  %v2728 = vsub.f32 1.0, %v2664
  %v2729 = vsub.f32 1.0, %v2665
  %v2730 = vsub.f32 1.0, %v2666
  %v2731 = vsub.f32 1.0, %v2667
  %v2732 = vsub.f32 1.0, %v2668
  %v2733 = vsub.f32 1.0, %v2669
  %v2734 = vsub.f32 1.0, %v2670
  %v2735 = vsub.f32 1.0, %v2671
  %v2736 = vsub.f32 1.0, %v2672
  %vm2737 = vcmp.ge.f32.partialorder %v561, 0.0
  %vm2738 = vcmp.ge.f32.partialorder %v562, 0.0
  %vm2739 = vcmp.ge.f32.partialorder %v563, 0.0
  %vm2740 = vcmp.ge.f32.partialorder %v564, 0.0
  %vm2741 = vcmp.ge.f32.partialorder %v565, 0.0
  %vm2742 = vcmp.ge.f32.partialorder %v566, 0.0
  %vm2743 = vcmp.ge.f32.partialorder %v567, 0.0
  %vm2744 = vcmp.ge.f32.partialorder %v568, 0.0
  %vm2745 = vcmp.ge.f32.partialorder %v569, 0.0
  %vm2746 = vcmp.ge.f32.partialorder %v570, 0.0
  %vm2747 = vcmp.ge.f32.partialorder %v571, 0.0
  %vm2748 = vcmp.ge.f32.partialorder %v572, 0.0
  %vm2749 = vcmp.ge.f32.partialorder %v573, 0.0
  %vm2750 = vcmp.ge.f32.partialorder %v574, 0.0
  %vm2751 = vcmp.ge.f32.partialorder %v575, 0.0
  %vm2752 = vcmp.ge.f32.partialorder %v576, 0.0
  %vm2753 = vcmp.ge.f32.partialorder %v577, 0.0
  %vm2754 = vcmp.ge.f32.partialorder %v578, 0.0
  %vm2755 = vcmp.ge.f32.partialorder %v579, 0.0
  %vm2756 = vcmp.ge.f32.partialorder %v580, 0.0
  %vm2757 = vcmp.ge.f32.partialorder %v581, 0.0
  %vm2758 = vcmp.ge.f32.partialorder %v582, 0.0
  %vm2759 = vcmp.ge.f32.partialorder %v583, 0.0
  %vm2760 = vcmp.ge.f32.partialorder %v584, 0.0
  %vm2761 = vcmp.ge.f32.partialorder %v585, 0.0
  %vm2762 = vcmp.ge.f32.partialorder %v586, 0.0
  %vm2763 = vcmp.ge.f32.partialorder %v587, 0.0
  %vm2764 = vcmp.ge.f32.partialorder %v588, 0.0
  %vm2765 = vcmp.ge.f32.partialorder %v589, 0.0
  %vm2766 = vcmp.ge.f32.partialorder %v590, 0.0
  %vm2767 = vcmp.ge.f32.partialorder %v591, 0.0
  %vm2768 = vcmp.ge.f32.partialorder %v592, 0.0
  %vm2769 = vcmp.ge.f32.partialorder %v593, 0.0
  %vm2770 = vcmp.ge.f32.partialorder %v594, 0.0
  %vm2771 = vcmp.ge.f32.partialorder %v595, 0.0
  %vm2772 = vcmp.ge.f32.partialorder %v596, 0.0
  %vm2773 = vcmp.ge.f32.partialorder %v597, 0.0
  %vm2774 = vcmp.ge.f32.partialorder %v598, 0.0
  %vm2775 = vcmp.ge.f32.partialorder %v599, 0.0
  %vm2776 = vcmp.ge.f32.partialorder %v600, 0.0
  %vm2777 = vcmp.ge.f32.partialorder %v601, 0.0
  %vm2778 = vcmp.ge.f32.partialorder %v602, 0.0
  %vm2779 = vcmp.ge.f32.partialorder %v603, 0.0
  %vm2780 = vcmp.ge.f32.partialorder %v604, 0.0
  %vm2781 = vcmp.ge.f32.partialorder %v605, 0.0
  %vm2782 = vcmp.ge.f32.partialorder %v606, 0.0
  %vm2783 = vcmp.ge.f32.partialorder %v607, 0.0
  %vm2784 = vcmp.ge.f32.partialorder %v608, 0.0
  %vm2785 = vcmp.ge.f32.partialorder %v609, 0.0
  %vm2786 = vcmp.ge.f32.partialorder %v610, 0.0
  %vm2787 = vcmp.ge.f32.partialorder %v611, 0.0
  %vm2788 = vcmp.ge.f32.partialorder %v612, 0.0
  %vm2789 = vcmp.ge.f32.partialorder %v613, 0.0
  %vm2790 = vcmp.ge.f32.partialorder %v614, 0.0
  %vm2791 = vcmp.ge.f32.partialorder %v615, 0.0
  %vm2792 = vcmp.ge.f32.partialorder %v616, 0.0
  %vm2793 = vcmp.ge.f32.partialorder %v617, 0.0
  %vm2794 = vcmp.ge.f32.partialorder %v618, 0.0
  %vm2795 = vcmp.ge.f32.partialorder %v619, 0.0
  %vm2796 = vcmp.ge.f32.partialorder %v620, 0.0
  %vm2797 = vcmp.ge.f32.partialorder %v621, 0.0
  %vm2798 = vcmp.ge.f32.partialorder %v622, 0.0
  %vm2799 = vcmp.ge.f32.partialorder %v623, 0.0
  %vm2800 = vcmp.ge.f32.partialorder %v624, 0.0
  %v2801 = vsub.f32 0.0, %v2673
  %v2802 = vsub.f32 0.0, %v2674
  %v2803 = vsub.f32 0.0, %v2675
  %v2804 = vsub.f32 0.0, %v2676
  %v2805 = vsub.f32 0.0, %v2677
  %v2806 = vsub.f32 0.0, %v2678
  %v2807 = vsub.f32 0.0, %v2679
  %v2808 = vsub.f32 0.0, %v2680
  %v2809 = vsub.f32 0.0, %v2681
  %v2810 = vsub.f32 0.0, %v2682
  %v2811 = vsub.f32 0.0, %v2683
  %v2812 = vsub.f32 0.0, %v2684
  %v2813 = vsub.f32 0.0, %v2685
  %v2814 = vsub.f32 0.0, %v2686
  %v2815 = vsub.f32 0.0, %v2687
  %v2816 = vsub.f32 0.0, %v2688
  %v2817 = vsub.f32 0.0, %v2689
  %v2818 = vsub.f32 0.0, %v2690
  %v2819 = vsub.f32 0.0, %v2691
  %v2820 = vsub.f32 0.0, %v2692
  %v2821 = vsub.f32 0.0, %v2693
  %v2822 = vsub.f32 0.0, %v2694
  %v2823 = vsub.f32 0.0, %v2695
  %v2824 = vsub.f32 0.0, %v2696
  %v2825 = vsub.f32 0.0, %v2697
  %v2826 = vsub.f32 0.0, %v2698
  %v2827 = vsub.f32 0.0, %v2699
  %v2828 = vsub.f32 0.0, %v2700
  %v2829 = vsub.f32 0.0, %v2701
  %v2830 = vsub.f32 0.0, %v2702
  %v2831 = vsub.f32 0.0, %v2703
  %v2832 = vsub.f32 0.0, %v2704
  %v2833 = vsub.f32 0.0, %v2705
  %v2834 = vsub.f32 0.0, %v2706
  %v2835 = vsub.f32 0.0, %v2707
  %v2836 = vsub.f32 0.0, %v2708
  %v2837 = vsub.f32 0.0, %v2709
  %v2838 = vsub.f32 0.0, %v2710
  %v2839 = vsub.f32 0.0, %v2711
  %v2840 = vsub.f32 0.0, %v2712
  %v2841 = vsub.f32 0.0, %v2713
  %v2842 = vsub.f32 0.0, %v2714
  %v2843 = vsub.f32 0.0, %v2715
  %v2844 = vsub.f32 0.0, %v2716
  %v2845 = vsub.f32 0.0, %v2717
  %v2846 = vsub.f32 0.0, %v2718
  %v2847 = vsub.f32 0.0, %v2719
  %v2848 = vsub.f32 0.0, %v2720
  %v2849 = vsub.f32 0.0, %v2721
  %v2850 = vsub.f32 0.0, %v2722
  %v2851 = vsub.f32 0.0, %v2723
  %v2852 = vsub.f32 0.0, %v2724
  %v2853 = vsub.f32 0.0, %v2725
  %v2854 = vsub.f32 0.0, %v2726
  %v2855 = vsub.f32 0.0, %v2727
  %v2856 = vsub.f32 0.0, %v2728
  %v2857 = vsub.f32 0.0, %v2729
  %v2858 = vsub.f32 0.0, %v2730
  %v2859 = vsub.f32 0.0, %v2731
  %v2860 = vsub.f32 0.0, %v2732
  %v2861 = vsub.f32 0.0, %v2733
  %v2862 = vsub.f32 0.0, %v2734
  %v2863 = vsub.f32 0.0, %v2735
  %v2864 = vsub.f32 0.0, %v2736
  %v2865 = vsel %vm2737, %v2673, %v2801
  %v2866 = vsel %vm2738, %v2674, %v2802
  %v2867 = vsel %vm2739, %v2675, %v2803
  %v2868 = vsel %vm2740, %v2676, %v2804
  %v2869 = vsel %vm2741, %v2677, %v2805
  %v2870 = vsel %vm2742, %v2678, %v2806
  %v2871 = vsel %vm2743, %v2679, %v2807
  %v2872 = vsel %vm2744, %v2680, %v2808
  %v2873 = vsel %vm2745, %v2681, %v2809
  %v2874 = vsel %vm2746, %v2682, %v2810
  %v2875 = vsel %vm2747, %v2683, %v2811
  %v2876 = vsel %vm2748, %v2684, %v2812
  %v2877 = vsel %vm2749, %v2685, %v2813
  %v2878 = vsel %vm2750, %v2686, %v2814
  %v2879 = vsel %vm2751, %v2687, %v2815
  %v2880 = vsel %vm2752, %v2688, %v2816
  %v2881 = vsel %vm2753, %v2689, %v2817
  %v2882 = vsel %vm2754, %v2690, %v2818
  %v2883 = vsel %vm2755, %v2691, %v2819
  %v2884 = vsel %vm2756, %v2692, %v2820
  %v2885 = vsel %vm2757, %v2693, %v2821
  %v2886 = vsel %vm2758, %v2694, %v2822
  %v2887 = vsel %vm2759, %v2695, %v2823
  %v2888 = vsel %vm2760, %v2696, %v2824
  %v2889 = vsel %vm2761, %v2697, %v2825
  %v2890 = vsel %vm2762, %v2698, %v2826
  %v2891 = vsel %vm2763, %v2699, %v2827
  %v2892 = vsel %vm2764, %v2700, %v2828
  %v2893 = vsel %vm2765, %v2701, %v2829
  %v2894 = vsel %vm2766, %v2702, %v2830
  %v2895 = vsel %vm2767, %v2703, %v2831
  %v2896 = vsel %vm2768, %v2704, %v2832
  %v2897 = vsel %vm2769, %v2705, %v2833
  %v2898 = vsel %vm2770, %v2706, %v2834
  %v2899 = vsel %vm2771, %v2707, %v2835
  %v2900 = vsel %vm2772, %v2708, %v2836
  %v2901 = vsel %vm2773, %v2709, %v2837
  %v2902 = vsel %vm2774, %v2710, %v2838
  %v2903 = vsel %vm2775, %v2711, %v2839
  %v2904 = vsel %vm2776, %v2712, %v2840
  %v2905 = vsel %vm2777, %v2713, %v2841
  %v2906 = vsel %vm2778, %v2714, %v2842
  %v2907 = vsel %vm2779, %v2715, %v2843
  %v2908 = vsel %vm2780, %v2716, %v2844
  %v2909 = vsel %vm2781, %v2717, %v2845
  %v2910 = vsel %vm2782, %v2718, %v2846
  %v2911 = vsel %vm2783, %v2719, %v2847
  %v2912 = vsel %vm2784, %v2720, %v2848
  %v2913 = vsel %vm2785, %v2721, %v2849
  %v2914 = vsel %vm2786, %v2722, %v2850
  %v2915 = vsel %vm2787, %v2723, %v2851
  %v2916 = vsel %vm2788, %v2724, %v2852
  %v2917 = vsel %vm2789, %v2725, %v2853
  %v2918 = vsel %vm2790, %v2726, %v2854
  %v2919 = vsel %vm2791, %v2727, %v2855
  %v2920 = vsel %vm2792, %v2728, %v2856
  %v2921 = vsel %vm2793, %v2729, %v2857
  %v2922 = vsel %vm2794, %v2730, %v2858
  %v2923 = vsel %vm2795, %v2731, %v2859
  %v2924 = vsel %vm2796, %v2732, %v2860
  %v2925 = vsel %vm2797, %v2733, %v2861
  %v2926 = vsel %vm2798, %v2734, %v2862
  %v2927 = vsel %vm2799, %v2735, %v2863
  %v2928 = vsel %vm2800, %v2736, %v2864
  %v2929 = vmul.f32 %v370, 0.5
  %v2930 = vmul.f32 %v373, 0.5
  %v2931 = vmul.f32 %v376, 0.5
  %v2932 = vmul.f32 %v379, 0.5
  %v2933 = vmul.f32 %v382, 0.5
  %v2934 = vmul.f32 %v385, 0.5
  %v2935 = vmul.f32 %v388, 0.5
  %v2936 = vmul.f32 %v391, 0.5
  %v2937 = vmul.f32 %v394, 0.5
  %v2938 = vmul.f32 %v397, 0.5
  %v2939 = vmul.f32 %v400, 0.5
  %v2940 = vmul.f32 %v403, 0.5
  %v2941 = vmul.f32 %v406, 0.5
  %v2942 = vmul.f32 %v409, 0.5
  %v2943 = vmul.f32 %v412, 0.5
  %v2944 = vmul.f32 %v415, 0.5
  %v2945 = vmul.f32 %v418, 0.5
  %v2946 = vmul.f32 %v421, 0.5
  %v2947 = vmul.f32 %v424, 0.5
  %v2948 = vmul.f32 %v427, 0.5
  %v2949 = vmul.f32 %v430, 0.5
  %v2950 = vmul.f32 %v433, 0.5
  %v2951 = vmul.f32 %v436, 0.5
  %v2952 = vmul.f32 %v439, 0.5
  %v2953 = vmul.f32 %v442, 0.5
  %v2954 = vmul.f32 %v445, 0.5
  %v2955 = vmul.f32 %v448, 0.5
  %v2956 = vmul.f32 %v451, 0.5
  %v2957 = vmul.f32 %v454, 0.5
  %v2958 = vmul.f32 %v457, 0.5
  %v2959 = vmul.f32 %v460, 0.5
  %v2960 = vmul.f32 %v463, 0.5
  %v2961 = vmul.f32 %v466, 0.5
  %v2962 = vmul.f32 %v469, 0.5
  %v2963 = vmul.f32 %v472, 0.5
  %v2964 = vmul.f32 %v475, 0.5
  %v2965 = vmul.f32 %v478, 0.5
  %v2966 = vmul.f32 %v481, 0.5
  %v2967 = vmul.f32 %v484, 0.5
  %v2968 = vmul.f32 %v487, 0.5
  %v2969 = vmul.f32 %v490, 0.5
  %v2970 = vmul.f32 %v493, 0.5
  %v2971 = vmul.f32 %v496, 0.5
  %v2972 = vmul.f32 %v499, 0.5
  %v2973 = vmul.f32 %v502, 0.5
  %v2974 = vmul.f32 %v505, 0.5
  %v2975 = vmul.f32 %v508, 0.5
  %v2976 = vmul.f32 %v511, 0.5
  %v2977 = vmul.f32 %v514, 0.5
  %v2978 = vmul.f32 %v517, 0.5
  %v2979 = vmul.f32 %v520, 0.5
  %v2980 = vmul.f32 %v523, 0.5
  %v2981 = vmul.f32 %v526, 0.5
  %v2982 = vmul.f32 %v529, 0.5
  %v2983 = vmul.f32 %v532, 0.5
  %v2984 = vmul.f32 %v535, 0.5
  %v2985 = vmul.f32 %v538, 0.5
  %v2986 = vmul.f32 %v541, 0.5
  %v2987 = vmul.f32 %v544, 0.5
  %v2988 = vmul.f32 %v547, 0.5
  %v2989 = vmul.f32 %v550, 0.5
  %v2990 = vmul.f32 %v553, 0.5
  %v2991 = vmul.f32 %v556, 0.5
  %v2992 = vmul.f32 %v559, 0.5
  %v2993 = vadd.f32 %v2865, 1.0
  %v2994 = vadd.f32 %v2866, 1.0
  %v2995 = vadd.f32 %v2867, 1.0
  %v2996 = vadd.f32 %v2868, 1.0
  %v2997 = vadd.f32 %v2869, 1.0
  %v2998 = vadd.f32 %v2870, 1.0
  %v2999 = vadd.f32 %v2871, 1.0
  %v3000 = vadd.f32 %v2872, 1.0
  %v3001 = vadd.f32 %v2873, 1.0
  %v3002 = vadd.f32 %v2874, 1.0
  %v3003 = vadd.f32 %v2875, 1.0
  %v3004 = vadd.f32 %v2876, 1.0
  %v3005 = vadd.f32 %v2877, 1.0
  %v3006 = vadd.f32 %v2878, 1.0
  %v3007 = vadd.f32 %v2879, 1.0
  %v3008 = vadd.f32 %v2880, 1.0
  %v3009 = vadd.f32 %v2881, 1.0
  %v3010 = vadd.f32 %v2882, 1.0
  %v3011 = vadd.f32 %v2883, 1.0
  %v3012 = vadd.f32 %v2884, 1.0
  %v3013 = vadd.f32 %v2885, 1.0
  %v3014 = vadd.f32 %v2886, 1.0
  %v3015 = vadd.f32 %v2887, 1.0
  %v3016 = vadd.f32 %v2888, 1.0
  %v3017 = vadd.f32 %v2889, 1.0
  %v3018 = vadd.f32 %v2890, 1.0
  %v3019 = vadd.f32 %v2891, 1.0
  %v3020 = vadd.f32 %v2892, 1.0
  %v3021 = vadd.f32 %v2893, 1.0
  %v3022 = vadd.f32 %v2894, 1.0
  %v3023 = vadd.f32 %v2895, 1.0
  %v3024 = vadd.f32 %v2896, 1.0
  %v3025 = vadd.f32 %v2897, 1.0
  %v3026 = vadd.f32 %v2898, 1.0
  %v3027 = vadd.f32 %v2899, 1.0
  %v3028 = vadd.f32 %v2900, 1.0
  %v3029 = vadd.f32 %v2901, 1.0
  %v3030 = vadd.f32 %v2902, 1.0
  %v3031 = vadd.f32 %v2903, 1.0
  %v3032 = vadd.f32 %v2904, 1.0
  %v3033 = vadd.f32 %v2905, 1.0
  %v3034 = vadd.f32 %v2906, 1.0
  %v3035 = vadd.f32 %v2907, 1.0
  %v3036 = vadd.f32 %v2908, 1.0
  %v3037 = vadd.f32 %v2909, 1.0
  %v3038 = vadd.f32 %v2910, 1.0
  %v3039 = vadd.f32 %v2911, 1.0
  %v3040 = vadd.f32 %v2912, 1.0
  %v3041 = vadd.f32 %v2913, 1.0
  %v3042 = vadd.f32 %v2914, 1.0
  %v3043 = vadd.f32 %v2915, 1.0
  %v3044 = vadd.f32 %v2916, 1.0
  %v3045 = vadd.f32 %v2917, 1.0
  %v3046 = vadd.f32 %v2918, 1.0
  %v3047 = vadd.f32 %v2919, 1.0
  %v3048 = vadd.f32 %v2920, 1.0
  %v3049 = vadd.f32 %v2921, 1.0
  %v3050 = vadd.f32 %v2922, 1.0
  %v3051 = vadd.f32 %v2923, 1.0
  %v3052 = vadd.f32 %v2924, 1.0
  %v3053 = vadd.f32 %v2925, 1.0
  %v3054 = vadd.f32 %v2926, 1.0
  %v3055 = vadd.f32 %v2927, 1.0
  %v3056 = vadd.f32 %v2928, 1.0
  %v3057 = vmul.f32 %v2929, %v2993
  %v3058 = vmul.f32 %v2930, %v2994
  %v3059 = vmul.f32 %v2931, %v2995
  %v3060 = vmul.f32 %v2932, %v2996
  %v3061 = vmul.f32 %v2933, %v2997
  %v3062 = vmul.f32 %v2934, %v2998
  %v3063 = vmul.f32 %v2935, %v2999
  %v3064 = vmul.f32 %v2936, %v3000
  %v3065 = vmul.f32 %v2937, %v3001
  %v3066 = vmul.f32 %v2938, %v3002
  %v3067 = vmul.f32 %v2939, %v3003
  %v3068 = vmul.f32 %v2940, %v3004
  %v3069 = vmul.f32 %v2941, %v3005
  %v3070 = vmul.f32 %v2942, %v3006
  %v3071 = vmul.f32 %v2943, %v3007
  %v3072 = vmul.f32 %v2944, %v3008
  %v3073 = vmul.f32 %v2945, %v3009
  %v3074 = vmul.f32 %v2946, %v3010
  %v3075 = vmul.f32 %v2947, %v3011
  %v3076 = vmul.f32 %v2948, %v3012
  %v3077 = vmul.f32 %v2949, %v3013
  %v3078 = vmul.f32 %v2950, %v3014
  %v3079 = vmul.f32 %v2951, %v3015
  %v3080 = vmul.f32 %v2952, %v3016
  %v3081 = vmul.f32 %v2953, %v3017
  %v3082 = vmul.f32 %v2954, %v3018
  %v3083 = vmul.f32 %v2955, %v3019
  %v3084 = vmul.f32 %v2956, %v3020
  %v3085 = vmul.f32 %v2957, %v3021
  %v3086 = vmul.f32 %v2958, %v3022
  %v3087 = vmul.f32 %v2959, %v3023
  %v3088 = vmul.f32 %v2960, %v3024
  %v3089 = vmul.f32 %v2961, %v3025
  %v3090 = vmul.f32 %v2962, %v3026
  %v3091 = vmul.f32 %v2963, %v3027
  %v3092 = vmul.f32 %v2964, %v3028
  %v3093 = vmul.f32 %v2965, %v3029
  %v3094 = vmul.f32 %v2966, %v3030
  %v3095 = vmul.f32 %v2967, %v3031
  %v3096 = vmul.f32 %v2968, %v3032
  %v3097 = vmul.f32 %v2969, %v3033
  %v3098 = vmul.f32 %v2970, %v3034
  %v3099 = vmul.f32 %v2971, %v3035
  %v3100 = vmul.f32 %v2972, %v3036
  %v3101 = vmul.f32 %v2973, %v3037
  %v3102 = vmul.f32 %v2974, %v3038
  %v3103 = vmul.f32 %v2975, %v3039
  %v3104 = vmul.f32 %v2976, %v3040
  %v3105 = vmul.f32 %v2977, %v3041
  %v3106 = vmul.f32 %v2978, %v3042
  %v3107 = vmul.f32 %v2979, %v3043
  %v3108 = vmul.f32 %v2980, %v3044
  %v3109 = vmul.f32 %v2981, %v3045
  %v3110 = vmul.f32 %v2982, %v3046
  %v3111 = vmul.f32 %v2983, %v3047
  %v3112 = vmul.f32 %v2984, %v3048
  %v3113 = vmul.f32 %v2985, %v3049
  %v3114 = vmul.f32 %v2986, %v3050
  %v3115 = vmul.f32 %v2987, %v3051
  %v3116 = vmul.f32 %v2988, %v3052
  %v3117 = vmul.f32 %v2989, %v3053
  %v3118 = vmul.f32 %v2990, %v3054
  %v3119 = vmul.f32 %v2991, %v3055
  %v3120 = vmul.f32 %v2992, %v3056
  %v3121 = vld [vmem:[#allocation2] sm:$0xff]
  %v3122 = vld [vmem:[#allocation2 + $0x8] sm:$0xff]
  %v3123 = vld [vmem:[#allocation2 + $0x10] sm:$0xff]
  %v3124 = vld [vmem:[#allocation2 + $0x18] sm:$0xff]
  %v3125 = vld [vmem:[#allocation2 + $0x20] sm:$0xff]
  %v3126 = vld [vmem:[#allocation2 + $0x28] sm:$0xff]
  %v3127 = vld [vmem:[#allocation2 + $0x30] sm:$0xff]
  %v3128 = vld [vmem:[#allocation2 + $0x38] sm:$0xff]
  %v3129 = vld [vmem:[#allocation2 + $0x40] sm:$0xff]
  %v3130 = vld [vmem:[#allocation2 + $0x48] sm:$0xff]
  %v3131 = vld [vmem:[#allocation2 + $0x50] sm:$0xff]
  %v3132 = vld [vmem:[#allocation2 + $0x58] sm:$0xff]
  %v3133 = vld [vmem:[#allocation2 + $0x60] sm:$0xff]
  %v3134 = vld [vmem:[#allocation2 + $0x68] sm:$0xff]
  %v3135 = vld [vmem:[#allocation2 + $0x70] sm:$0xff]
  %v3136 = vld [vmem:[#allocation2 + $0x78] sm:$0xff]
  %v3137 = vld [vmem:[#allocation2 + $0x80] sm:$0xff]
  %v3138 = vld [vmem:[#allocation2 + $0x88] sm:$0xff]
  %v3139 = vld [vmem:[#allocation2 + $0x90] sm:$0xff]
  %v3140 = vld [vmem:[#allocation2 + $0x98] sm:$0xff]
  %v3141 = vld [vmem:[#allocation2 + $0xa0] sm:$0xff]
  %v3142 = vld [vmem:[#allocation2 + $0xa8] sm:$0xff]
  %v3143 = vld [vmem:[#allocation2 + $0xb0] sm:$0xff]
  %v3144 = vld [vmem:[#allocation2 + $0xb8] sm:$0xff]
  %v3145 = vld [vmem:[#allocation2 + $0xc0] sm:$0xff]
  %v3146 = vld [vmem:[#allocation2 + $0xc8] sm:$0xff]
  %v3147 = vld [vmem:[#allocation2 + $0xd0] sm:$0xff]
  %v3148 = vld [vmem:[#allocation2 + $0xd8] sm:$0xff]
  %v3149 = vld [vmem:[#allocation2 + $0xe0] sm:$0xff]
  %v3150 = vld [vmem:[#allocation2 + $0xe8] sm:$0xff]
  %v3151 = vld [vmem:[#allocation2 + $0xf0] sm:$0xff]
  %v3152 = vld [vmem:[#allocation2 + $0xf8] sm:$0xff]
  %v3153 = vld [vmem:[#allocation2 + $0x100] sm:$0xff]
  %v3154 = vld [vmem:[#allocation2 + $0x108] sm:$0xff]
  %v3155 = vld [vmem:[#allocation2 + $0x110] sm:$0xff]
  %v3156 = vld [vmem:[#allocation2 + $0x118] sm:$0xff]
  %v3157 = vld [vmem:[#allocation2 + $0x120] sm:$0xff]
  %v3158 = vld [vmem:[#allocation2 + $0x128] sm:$0xff]
  %v3159 = vld [vmem:[#allocation2 + $0x130] sm:$0xff]
  %v3160 = vld [vmem:[#allocation2 + $0x138] sm:$0xff]
  %v3161 = vld [vmem:[#allocation2 + $0x140] sm:$0xff]
  %v3162 = vld [vmem:[#allocation2 + $0x148] sm:$0xff]
  %v3163 = vld [vmem:[#allocation2 + $0x150] sm:$0xff]
  %v3164 = vld [vmem:[#allocation2 + $0x158] sm:$0xff]
  %v3165 = vld [vmem:[#allocation2 + $0x160] sm:$0xff]
  %v3166 = vld [vmem:[#allocation2 + $0x168] sm:$0xff]
  %v3167 = vld [vmem:[#allocation2 + $0x170] sm:$0xff]
  %v3168 = vld [vmem:[#allocation2 + $0x178] sm:$0xff]
  %v3169 = vld [vmem:[#allocation2 + $0x180] sm:$0xff]
  %v3170 = vld [vmem:[#allocation2 + $0x188] sm:$0xff]
  %v3171 = vld [vmem:[#allocation2 + $0x190] sm:$0xff]
  %v3172 = vld [vmem:[#allocation2 + $0x198] sm:$0xff]
  %v3173 = vld [vmem:[#allocation2 + $0x1a0] sm:$0xff]
  %v3174 = vld [vmem:[#allocation2 + $0x1a8] sm:$0xff]
  %v3175 = vld [vmem:[#allocation2 + $0x1b0] sm:$0xff]
  %v3176 = vld [vmem:[#allocation2 + $0x1b8] sm:$0xff]
  %v3177 = vld [vmem:[#allocation2 + $0x1c0] sm:$0xff]
  %v3178 = vld [vmem:[#allocation2 + $0x1c8] sm:$0xff]
  %v3179 = vld [vmem:[#allocation2 + $0x1d0] sm:$0xff]
  %v3180 = vld [vmem:[#allocation2 + $0x1d8] sm:$0xff]
  %v3181 = vld [vmem:[#allocation2 + $0x1e0] sm:$0xff]
  %v3182 = vld [vmem:[#allocation2 + $0x1e8] sm:$0xff]
  %v3183 = vld [vmem:[#allocation2 + $0x1f0] sm:$0xff]
  %v3184 = vld [vmem:[#allocation2 + $0x1f8] sm:$0xff]
  %v3185 = vld [vmem:[%s3] sm:$0xff]
  %v3186 = vld [vmem:[%s3 + $0x8] sm:$0xff]
  %v3187 = vld [vmem:[%s3 + $0x10] sm:$0xff]
  %v3188 = vld [vmem:[%s3 + $0x18] sm:$0xff]
  %vm3189 = vcmask 261120
  %v3191 = vsel %vm3189, %v3057, 0
  %v3194 = vsel %vm3189, %v3058, 0
  %v3197 = vsel %vm3189, %v3059, 0
  %v3200 = vsel %vm3189, %v3060, 0
  %v3203 = vsel %vm3189, %v3061, 0
  %v3206 = vsel %vm3189, %v3062, 0
  %v3209 = vsel %vm3189, %v3063, 0
  %v3212 = vsel %vm3189, %v3064, 0
  %v3215 = vsel %vm3189, %v3065, 0
  %v3218 = vsel %vm3189, %v3066, 0
  %v3221 = vsel %vm3189, %v3067, 0
  %v3224 = vsel %vm3189, %v3068, 0
  %v3227 = vsel %vm3189, %v3069, 0
  %v3230 = vsel %vm3189, %v3070, 0
  %v3233 = vsel %vm3189, %v3071, 0
  %v3236 = vsel %vm3189, %v3072, 0
  %v3239 = vsel %vm3189, %v3073, 0
  %v3242 = vsel %vm3189, %v3074, 0
  %v3245 = vsel %vm3189, %v3075, 0
  %v3248 = vsel %vm3189, %v3076, 0
  %v3251 = vsel %vm3189, %v3077, 0
  %v3254 = vsel %vm3189, %v3078, 0
  %v3257 = vsel %vm3189, %v3079, 0
  %v3260 = vsel %vm3189, %v3080, 0
  %v3263 = vsel %vm3189, %v3081, 0
  %v3266 = vsel %vm3189, %v3082, 0
  %v3269 = vsel %vm3189, %v3083, 0
  %v3272 = vsel %vm3189, %v3084, 0
  %v3275 = vsel %vm3189, %v3085, 0
  %v3278 = vsel %vm3189, %v3086, 0
  %v3281 = vsel %vm3189, %v3087, 0
  %v3284 = vsel %vm3189, %v3088, 0
  %v3287 = vsel %vm3189, %v3089, 0
  %v3290 = vsel %vm3189, %v3090, 0
  %v3293 = vsel %vm3189, %v3091, 0
  %v3296 = vsel %vm3189, %v3092, 0
  %v3299 = vsel %vm3189, %v3093, 0
  %v3302 = vsel %vm3189, %v3094, 0
  %v3305 = vsel %vm3189, %v3095, 0
  %v3308 = vsel %vm3189, %v3096, 0
  %v3311 = vsel %vm3189, %v3097, 0
  %v3314 = vsel %vm3189, %v3098, 0
  %v3317 = vsel %vm3189, %v3099, 0
  %v3320 = vsel %vm3189, %v3100, 0
  %v3323 = vsel %vm3189, %v3101, 0
  %v3326 = vsel %vm3189, %v3102, 0
  %v3329 = vsel %vm3189, %v3103, 0
  %v3332 = vsel %vm3189, %v3104, 0
  %v3335 = vsel %vm3189, %v3105, 0
  %v3338 = vsel %vm3189, %v3106, 0
  %v3341 = vsel %vm3189, %v3107, 0
  %v3344 = vsel %vm3189, %v3108, 0
  %v3347 = vsel %vm3189, %v3109, 0
  %v3350 = vsel %vm3189, %v3110, 0
  %v3353 = vsel %vm3189, %v3111, 0
  %v3356 = vsel %vm3189, %v3112, 0
  %v3359 = vsel %vm3189, %v3113, 0
  %v3362 = vsel %vm3189, %v3114, 0
  %v3365 = vsel %vm3189, %v3115, 0
  %v3368 = vsel %vm3189, %v3116, 0
  %v3371 = vsel %vm3189, %v3117, 0
  %v3374 = vsel %vm3189, %v3118, 0
  %v3377 = vsel %vm3189, %v3119, 0
  %v3380 = vsel %vm3189, %v3120, 0
  %3382 = vmatpush.msra.mxu0 0.0
  %3383 = vmatpush.msra.mxu0 0.0
  %3384 = vmatpush.msra.mxu0 0.0
  %3385 = vmatpush.msra.mxu0 0.0
  %3386 = vmatpush.msra.mxu0 0.0
  %3387 = vmatpush.msra.mxu0 0.0
  %3388 = vmatpush.msra.mxu0 0.0
  %3389 = vmatpush.msra.mxu0 0.0
  %3390 = vmatpush.msra.mxu0 0.0
  %3391 = vmatpush.msra.mxu0 0.0
  %3392 = vmatpush.msra.mxu0 0.0
  %3393 = vmatpush.msra.mxu0 0.0
  %3394 = vmatpush.msra.mxu0 %v3188
  %3395 = vmatpush.msra.mxu0 %v3187
  %3396 = vmatpush.msra.mxu0 %v3186
  %3397 = vmatpush.msra.mxu0 %v3185
  %3398 = vmatmul.f32.gmra.mxu0 %v3191
  %v3399 = vpop.f32.mrf.mxu0
  %v3400 = vadd.f32 0.0, %v3399
  %3401 = vmatmul.f32.gmra.mxu0 %v3194
  %v3402 = vpop.f32.mrf.mxu0
  %v3403 = vadd.f32 0.0, %v3402
  %3404 = vmatmul.f32.gmra.mxu0 %v3197
  %v3405 = vpop.f32.mrf.mxu0
  %v3406 = vadd.f32 0.0, %v3405
  %3407 = vmatmul.f32.gmra.mxu0 %v3200
  %v3408 = vpop.f32.mrf.mxu0
  %v3409 = vadd.f32 0.0, %v3408
  %3410 = vmatmul.f32.gmra.mxu0 %v3203
  %v3411 = vpop.f32.mrf.mxu0
  %v3412 = vadd.f32 0.0, %v3411
  %3413 = vmatmul.f32.gmra.mxu0 %v3206
  %v3414 = vpop.f32.mrf.mxu0
  %v3415 = vadd.f32 0.0, %v3414
  %3416 = vmatmul.f32.gmra.mxu0 %v3209
  %v3417 = vpop.f32.mrf.mxu0
  %v3418 = vadd.f32 0.0, %v3417
  %3419 = vmatmul.f32.gmra.mxu0 %v3212
  %v3420 = vpop.f32.mrf.mxu0
  %v3421 = vadd.f32 0.0, %v3420
  %3422 = vmatmul.f32.gmra.mxu0 %v3215
  %v3423 = vpop.f32.mrf.mxu0
  %v3424 = vadd.f32 0.0, %v3423
  %3425 = vmatmul.f32.gmra.mxu0 %v3218
  %v3426 = vpop.f32.mrf.mxu0
  %v3427 = vadd.f32 0.0, %v3426
  %3428 = vmatmul.f32.gmra.mxu0 %v3221
  %v3429 = vpop.f32.mrf.mxu0
  %v3430 = vadd.f32 0.0, %v3429
  %3431 = vmatmul.f32.gmra.mxu0 %v3224
  %v3432 = vpop.f32.mrf.mxu0
  %v3433 = vadd.f32 0.0, %v3432
  %3434 = vmatmul.f32.gmra.mxu0 %v3227
  %v3435 = vpop.f32.mrf.mxu0
  %v3436 = vadd.f32 0.0, %v3435
  %3437 = vmatmul.f32.gmra.mxu0 %v3230
  %v3438 = vpop.f32.mrf.mxu0
  %v3439 = vadd.f32 0.0, %v3438
  %3440 = vmatmul.f32.gmra.mxu0 %v3233
  %v3441 = vpop.f32.mrf.mxu0
  %v3442 = vadd.f32 0.0, %v3441
  %3443 = vmatmul.f32.gmra.mxu0 %v3236
  %v3444 = vpop.f32.mrf.mxu0
  %v3445 = vadd.f32 0.0, %v3444
  %3446 = vmatmul.f32.gmra.mxu0 %v3239
  %v3447 = vpop.f32.mrf.mxu0
  %v3448 = vadd.f32 0.0, %v3447
  %3449 = vmatmul.f32.gmra.mxu0 %v3242
  %v3450 = vpop.f32.mrf.mxu0
  %v3451 = vadd.f32 0.0, %v3450
  %3452 = vmatmul.f32.gmra.mxu0 %v3245
  %v3453 = vpop.f32.mrf.mxu0
  %v3454 = vadd.f32 0.0, %v3453
  %3455 = vmatmul.f32.gmra.mxu0 %v3248
  %v3456 = vpop.f32.mrf.mxu0
  %v3457 = vadd.f32 0.0, %v3456
  %3458 = vmatmul.f32.gmra.mxu0 %v3251
  %v3459 = vpop.f32.mrf.mxu0
  %v3460 = vadd.f32 0.0, %v3459
  %3461 = vmatmul.f32.gmra.mxu0 %v3254
  %v3462 = vpop.f32.mrf.mxu0
  %v3463 = vadd.f32 0.0, %v3462
  %3464 = vmatmul.f32.gmra.mxu0 %v3257
  %v3465 = vpop.f32.mrf.mxu0
  %v3466 = vadd.f32 0.0, %v3465
  %3467 = vmatmul.f32.gmra.mxu0 %v3260
  %v3468 = vpop.f32.mrf.mxu0
  %v3469 = vadd.f32 0.0, %v3468
  %3470 = vmatmul.f32.gmra.mxu0 %v3263
  %v3471 = vpop.f32.mrf.mxu0
  %v3472 = vadd.f32 0.0, %v3471
  %3473 = vmatmul.f32.gmra.mxu0 %v3266
  %v3474 = vpop.f32.mrf.mxu0
  %v3475 = vadd.f32 0.0, %v3474
  %3476 = vmatmul.f32.gmra.mxu0 %v3269
  %v3477 = vpop.f32.mrf.mxu0
  %v3478 = vadd.f32 0.0, %v3477
  %3479 = vmatmul.f32.gmra.mxu0 %v3272
  %v3480 = vpop.f32.mrf.mxu0
  %v3481 = vadd.f32 0.0, %v3480
  %3482 = vmatmul.f32.gmra.mxu0 %v3275
  %v3483 = vpop.f32.mrf.mxu0
  %v3484 = vadd.f32 0.0, %v3483
  %3485 = vmatmul.f32.gmra.mxu0 %v3278
  %v3486 = vpop.f32.mrf.mxu0
  %v3487 = vadd.f32 0.0, %v3486
  %3488 = vmatmul.f32.gmra.mxu0 %v3281
  %v3489 = vpop.f32.mrf.mxu0
  %v3490 = vadd.f32 0.0, %v3489
  %3491 = vmatmul.f32.gmra.mxu0 %v3284
  %v3492 = vpop.f32.mrf.mxu0
  %v3493 = vadd.f32 0.0, %v3492
  %3494 = vmatmul.f32.gmra.mxu0 %v3287
  %v3495 = vpop.f32.mrf.mxu0
  %v3496 = vadd.f32 0.0, %v3495
  %3497 = vmatmul.f32.gmra.mxu0 %v3290
  %v3498 = vpop.f32.mrf.mxu0
  %v3499 = vadd.f32 0.0, %v3498
  %3500 = vmatmul.f32.gmra.mxu0 %v3293
  %v3501 = vpop.f32.mrf.mxu0
  %v3502 = vadd.f32 0.0, %v3501
  %3503 = vmatmul.f32.gmra.mxu0 %v3296
  %v3504 = vpop.f32.mrf.mxu0
  %v3505 = vadd.f32 0.0, %v3504
  %3506 = vmatmul.f32.gmra.mxu0 %v3299
  %v3507 = vpop.f32.mrf.mxu0
  %v3508 = vadd.f32 0.0, %v3507
  %3509 = vmatmul.f32.gmra.mxu0 %v3302
  %v3510 = vpop.f32.mrf.mxu0
  %v3511 = vadd.f32 0.0, %v3510
  %3512 = vmatmul.f32.gmra.mxu0 %v3305
  %v3513 = vpop.f32.mrf.mxu0
  %v3514 = vadd.f32 0.0, %v3513
  %3515 = vmatmul.f32.gmra.mxu0 %v3308
  %v3516 = vpop.f32.mrf.mxu0
  %v3517 = vadd.f32 0.0, %v3516
  %3518 = vmatmul.f32.gmra.mxu0 %v3311
  %v3519 = vpop.f32.mrf.mxu0
  %v3520 = vadd.f32 0.0, %v3519
  %3521 = vmatmul.f32.gmra.mxu0 %v3314
  %v3522 = vpop.f32.mrf.mxu0
  %v3523 = vadd.f32 0.0, %v3522
  %3524 = vmatmul.f32.gmra.mxu0 %v3317
  %v3525 = vpop.f32.mrf.mxu0
  %v3526 = vadd.f32 0.0, %v3525
  %3527 = vmatmul.f32.gmra.mxu0 %v3320
  %v3528 = vpop.f32.mrf.mxu0
  %v3529 = vadd.f32 0.0, %v3528
  %3530 = vmatmul.f32.gmra.mxu0 %v3323
  %v3531 = vpop.f32.mrf.mxu0
  %v3532 = vadd.f32 0.0, %v3531
  %3533 = vmatmul.f32.gmra.mxu0 %v3326
  %v3534 = vpop.f32.mrf.mxu0
  %v3535 = vadd.f32 0.0, %v3534
  %3536 = vmatmul.f32.gmra.mxu0 %v3329
  %v3537 = vpop.f32.mrf.mxu0
  %v3538 = vadd.f32 0.0, %v3537
  %3539 = vmatmul.f32.gmra.mxu0 %v3332
  %v3540 = vpop.f32.mrf.mxu0
  %v3541 = vadd.f32 0.0, %v3540
  %3542 = vmatmul.f32.gmra.mxu0 %v3335
  %v3543 = vpop.f32.mrf.mxu0
  %v3544 = vadd.f32 0.0, %v3543
  %3545 = vmatmul.f32.gmra.mxu0 %v3338
  %v3546 = vpop.f32.mrf.mxu0
  %v3547 = vadd.f32 0.0, %v3546
  %3548 = vmatmul.f32.gmra.mxu0 %v3341
  %v3549 = vpop.f32.mrf.mxu0
  %v3550 = vadd.f32 0.0, %v3549
  %3551 = vmatmul.f32.gmra.mxu0 %v3344
  %v3552 = vpop.f32.mrf.mxu0
  %v3553 = vadd.f32 0.0, %v3552
  %3554 = vmatmul.f32.gmra.mxu0 %v3347
  %v3555 = vpop.f32.mrf.mxu0
  %v3556 = vadd.f32 0.0, %v3555
  %3557 = vmatmul.f32.gmra.mxu0 %v3350
  %v3558 = vpop.f32.mrf.mxu0
  %v3559 = vadd.f32 0.0, %v3558
  %3560 = vmatmul.f32.gmra.mxu0 %v3353
  %v3561 = vpop.f32.mrf.mxu0
  %v3562 = vadd.f32 0.0, %v3561
  %3563 = vmatmul.f32.gmra.mxu0 %v3356
  %v3564 = vpop.f32.mrf.mxu0
  %v3565 = vadd.f32 0.0, %v3564
  %3566 = vmatmul.f32.gmra.mxu0 %v3359
  %v3567 = vpop.f32.mrf.mxu0
  %v3568 = vadd.f32 0.0, %v3567
  %3569 = vmatmul.f32.gmra.mxu0 %v3362
  %v3570 = vpop.f32.mrf.mxu0
  %v3571 = vadd.f32 0.0, %v3570
  %3572 = vmatmul.f32.gmra.mxu0 %v3365
  %v3573 = vpop.f32.mrf.mxu0
  %v3574 = vadd.f32 0.0, %v3573
  %3575 = vmatmul.f32.gmra.mxu0 %v3368
  %v3576 = vpop.f32.mrf.mxu0
  %v3577 = vadd.f32 0.0, %v3576
  %3578 = vmatmul.f32.gmra.mxu0 %v3371
  %v3579 = vpop.f32.mrf.mxu0
  %v3580 = vadd.f32 0.0, %v3579
  %3581 = vmatmul.f32.gmra.mxu0 %v3374
  %v3582 = vpop.f32.mrf.mxu0
  %v3583 = vadd.f32 0.0, %v3582
  %3584 = vmatmul.f32.gmra.mxu0 %v3377
  %v3585 = vpop.f32.mrf.mxu0
  %v3586 = vadd.f32 0.0, %v3585
  %3587 = vmatmul.f32.gmra.mxu0 %v3380
  %v3588 = vpop.f32.mrf.mxu0
  %v3589 = vadd.f32 0.0, %v3588
  %3590 = vdwg.mxu0
  %v3591 = vadd.f32 %v3121, %v3400
  %v3592 = vadd.f32 %v3122, %v3403
  %v3593 = vadd.f32 %v3123, %v3406
  %v3594 = vadd.f32 %v3124, %v3409
  %v3595 = vadd.f32 %v3125, %v3412
  %v3596 = vadd.f32 %v3126, %v3415
  %v3597 = vadd.f32 %v3127, %v3418
  %v3598 = vadd.f32 %v3128, %v3421
  %v3599 = vadd.f32 %v3129, %v3424
  %v3600 = vadd.f32 %v3130, %v3427
  %v3601 = vadd.f32 %v3131, %v3430
  %v3602 = vadd.f32 %v3132, %v3433
  %v3603 = vadd.f32 %v3133, %v3436
  %v3604 = vadd.f32 %v3134, %v3439
  %v3605 = vadd.f32 %v3135, %v3442
  %v3606 = vadd.f32 %v3136, %v3445
  %v3607 = vadd.f32 %v3137, %v3448
  %v3608 = vadd.f32 %v3138, %v3451
  %v3609 = vadd.f32 %v3139, %v3454
  %v3610 = vadd.f32 %v3140, %v3457
  %v3611 = vadd.f32 %v3141, %v3460
  %v3612 = vadd.f32 %v3142, %v3463
  %v3613 = vadd.f32 %v3143, %v3466
  %v3614 = vadd.f32 %v3144, %v3469
  %v3615 = vadd.f32 %v3145, %v3472
  %v3616 = vadd.f32 %v3146, %v3475
  %v3617 = vadd.f32 %v3147, %v3478
  %v3618 = vadd.f32 %v3148, %v3481
  %v3619 = vadd.f32 %v3149, %v3484
  %v3620 = vadd.f32 %v3150, %v3487
  %v3621 = vadd.f32 %v3151, %v3490
  %v3622 = vadd.f32 %v3152, %v3493
  %v3623 = vadd.f32 %v3153, %v3496
  %v3624 = vadd.f32 %v3154, %v3499
  %v3625 = vadd.f32 %v3155, %v3502
  %v3626 = vadd.f32 %v3156, %v3505
  %v3627 = vadd.f32 %v3157, %v3508
  %v3628 = vadd.f32 %v3158, %v3511
  %v3629 = vadd.f32 %v3159, %v3514
  %v3630 = vadd.f32 %v3160, %v3517
  %v3631 = vadd.f32 %v3161, %v3520
  %v3632 = vadd.f32 %v3162, %v3523
  %v3633 = vadd.f32 %v3163, %v3526
  %v3634 = vadd.f32 %v3164, %v3529
  %v3635 = vadd.f32 %v3165, %v3532
  %v3636 = vadd.f32 %v3166, %v3535
  %v3637 = vadd.f32 %v3167, %v3538
  %v3638 = vadd.f32 %v3168, %v3541
  %v3639 = vadd.f32 %v3169, %v3544
  %v3640 = vadd.f32 %v3170, %v3547
  %v3641 = vadd.f32 %v3171, %v3550
  %v3642 = vadd.f32 %v3172, %v3553
  %v3643 = vadd.f32 %v3173, %v3556
  %v3644 = vadd.f32 %v3174, %v3559
  %v3645 = vadd.f32 %v3175, %v3562
  %v3646 = vadd.f32 %v3176, %v3565
  %v3647 = vadd.f32 %v3177, %v3568
  %v3648 = vadd.f32 %v3178, %v3571
  %v3649 = vadd.f32 %v3179, %v3574
  %v3650 = vadd.f32 %v3180, %v3577
  %v3651 = vadd.f32 %v3181, %v3580
  %v3652 = vadd.f32 %v3182, %v3583
  %v3653 = vadd.f32 %v3183, %v3586
  %v3654 = vadd.f32 %v3184, %v3589
  %3655 = vst.msk [vmem:[#allocation2] sm:$0xff] %vm159, %v3591
  %3656 = vst.msk [vmem:[#allocation2 + $0x8] sm:$0xff] %vm159, %v3592
  %3657 = vst.msk [vmem:[#allocation2 + $0x10] sm:$0xff] %vm159, %v3593
  %3658 = vst.msk [vmem:[#allocation2 + $0x18] sm:$0xff] %vm159, %v3594
  %3659 = vst.msk [vmem:[#allocation2 + $0x20] sm:$0xff] %vm159, %v3595
  %3660 = vst.msk [vmem:[#allocation2 + $0x28] sm:$0xff] %vm159, %v3596
  %3661 = vst.msk [vmem:[#allocation2 + $0x30] sm:$0xff] %vm159, %v3597
  %3662 = vst.msk [vmem:[#allocation2 + $0x38] sm:$0xff] %vm159, %v3598
  %3663 = vst.msk [vmem:[#allocation2 + $0x40] sm:$0xff] %vm159, %v3599
  %3664 = vst.msk [vmem:[#allocation2 + $0x48] sm:$0xff] %vm159, %v3600
  %3665 = vst.msk [vmem:[#allocation2 + $0x50] sm:$0xff] %vm159, %v3601
  %3666 = vst.msk [vmem:[#allocation2 + $0x58] sm:$0xff] %vm159, %v3602
  %3667 = vst.msk [vmem:[#allocation2 + $0x60] sm:$0xff] %vm159, %v3603
  %3668 = vst.msk [vmem:[#allocation2 + $0x68] sm:$0xff] %vm159, %v3604
  %3669 = vst.msk [vmem:[#allocation2 + $0x70] sm:$0xff] %vm159, %v3605
  %3670 = vst.msk [vmem:[#allocation2 + $0x78] sm:$0xff] %vm159, %v3606
  %3671 = vst.msk [vmem:[#allocation2 + $0x80] sm:$0xff] %vm159, %v3607
  %3672 = vst.msk [vmem:[#allocation2 + $0x88] sm:$0xff] %vm159, %v3608
  %3673 = vst.msk [vmem:[#allocation2 + $0x90] sm:$0xff] %vm159, %v3609
  %3674 = vst.msk [vmem:[#allocation2 + $0x98] sm:$0xff] %vm159, %v3610
  %3675 = vst.msk [vmem:[#allocation2 + $0xa0] sm:$0xff] %vm159, %v3611
  %3676 = vst.msk [vmem:[#allocation2 + $0xa8] sm:$0xff] %vm159, %v3612
  %3677 = vst.msk [vmem:[#allocation2 + $0xb0] sm:$0xff] %vm159, %v3613
  %3678 = vst.msk [vmem:[#allocation2 + $0xb8] sm:$0xff] %vm159, %v3614
  %3679 = vst.msk [vmem:[#allocation2 + $0xc0] sm:$0xff] %vm159, %v3615
  %3680 = vst.msk [vmem:[#allocation2 + $0xc8] sm:$0xff] %vm159, %v3616
  %3681 = vst.msk [vmem:[#allocation2 + $0xd0] sm:$0xff] %vm159, %v3617
  %3682 = vst.msk [vmem:[#allocation2 + $0xd8] sm:$0xff] %vm159, %v3618
  %3683 = vst.msk [vmem:[#allocation2 + $0xe0] sm:$0xff] %vm159, %v3619
  %3684 = vst.msk [vmem:[#allocation2 + $0xe8] sm:$0xff] %vm159, %v3620
  %3685 = vst.msk [vmem:[#allocation2 + $0xf0] sm:$0xff] %vm159, %v3621
  %3686 = vst.msk [vmem:[#allocation2 + $0xf8] sm:$0xff] %vm159, %v3622
  %3687 = vst.msk [vmem:[#allocation2 + $0x100] sm:$0xff] %vm159, %v3623
  %3688 = vst.msk [vmem:[#allocation2 + $0x108] sm:$0xff] %vm159, %v3624
  %3689 = vst.msk [vmem:[#allocation2 + $0x110] sm:$0xff] %vm159, %v3625
  %3690 = vst.msk [vmem:[#allocation2 + $0x118] sm:$0xff] %vm159, %v3626
  %3691 = vst.msk [vmem:[#allocation2 + $0x120] sm:$0xff] %vm159, %v3627
  %3692 = vst.msk [vmem:[#allocation2 + $0x128] sm:$0xff] %vm159, %v3628
  %3693 = vst.msk [vmem:[#allocation2 + $0x130] sm:$0xff] %vm159, %v3629
  %3694 = vst.msk [vmem:[#allocation2 + $0x138] sm:$0xff] %vm159, %v3630
  %3695 = vst.msk [vmem:[#allocation2 + $0x140] sm:$0xff] %vm159, %v3631
  %3696 = vst.msk [vmem:[#allocation2 + $0x148] sm:$0xff] %vm159, %v3632
  %3697 = vst.msk [vmem:[#allocation2 + $0x150] sm:$0xff] %vm159, %v3633
  %3698 = vst.msk [vmem:[#allocation2 + $0x158] sm:$0xff] %vm159, %v3634
  %3699 = vst.msk [vmem:[#allocation2 + $0x160] sm:$0xff] %vm159, %v3635
  %3700 = vst.msk [vmem:[#allocation2 + $0x168] sm:$0xff] %vm159, %v3636
  %3701 = vst.msk [vmem:[#allocation2 + $0x170] sm:$0xff] %vm159, %v3637
  %3702 = vst.msk [vmem:[#allocation2 + $0x178] sm:$0xff] %vm159, %v3638
  %3703 = vst.msk [vmem:[#allocation2 + $0x180] sm:$0xff] %vm159, %v3639
  %3704 = vst.msk [vmem:[#allocation2 + $0x188] sm:$0xff] %vm159, %v3640
  %3705 = vst.msk [vmem:[#allocation2 + $0x190] sm:$0xff] %vm159, %v3641
  %3706 = vst.msk [vmem:[#allocation2 + $0x198] sm:$0xff] %vm159, %v3642
  %3707 = vst.msk [vmem:[#allocation2 + $0x1a0] sm:$0xff] %vm159, %v3643
  %3708 = vst.msk [vmem:[#allocation2 + $0x1a8] sm:$0xff] %vm159, %v3644
  %3709 = vst.msk [vmem:[#allocation2 + $0x1b0] sm:$0xff] %vm159, %v3645
  %3710 = vst.msk [vmem:[#allocation2 + $0x1b8] sm:$0xff] %vm159, %v3646
  %3711 = vst.msk [vmem:[#allocation2 + $0x1c0] sm:$0xff] %vm159, %v3647
  %3712 = vst.msk [vmem:[#allocation2 + $0x1c8] sm:$0xff] %vm159, %v3648
  %3713 = vst.msk [vmem:[#allocation2 + $0x1d0] sm:$0xff] %vm159, %v3649
  %3714 = vst.msk [vmem:[#allocation2 + $0x1d8] sm:$0xff] %vm159, %v3650
  %3715 = vst.msk [vmem:[#allocation2 + $0x1e0] sm:$0xff] %vm159, %v3651
  %3716 = vst.msk [vmem:[#allocation2 + $0x1e8] sm:$0xff] %vm159, %v3652
  %3717 = vst.msk [vmem:[#allocation2 + $0x1f0] sm:$0xff] %vm159, %v3653
  %3718 = vst.msk [vmem:[#allocation2 + $0x1f8] sm:$0xff] %vm159, %v3654
  // Predicated region
  $region26: #{tpu_custom_call.1} parent=0 // pred_check
    %p3719 = pneg %p20
  $region27: #{tpu_custom_call.1} parent=0 // pred_check_branch
    %3721 = sbr.rel (%p3719) target = $region29
  $region28: #{tpu_custom_call.1} parent=0 // pred_region
    %v3722 = vld [vmem:[#allocation2] sm:$0xff]
    %v3723 = vld [vmem:[#allocation2 + $0x8] sm:$0xff]
    %v3724 = vld [vmem:[#allocation2 + $0x10] sm:$0xff]
    %v3725 = vld [vmem:[#allocation2 + $0x18] sm:$0xff]
    %v3726 = vld [vmem:[#allocation2 + $0x20] sm:$0xff]
    %v3727 = vld [vmem:[#allocation2 + $0x28] sm:$0xff]
    %v3728 = vld [vmem:[#allocation2 + $0x30] sm:$0xff]
    %v3729 = vld [vmem:[#allocation2 + $0x38] sm:$0xff]
    %v3730 = vld [vmem:[#allocation2 + $0x40] sm:$0xff]
    %v3731 = vld [vmem:[#allocation2 + $0x48] sm:$0xff]
    %v3732 = vld [vmem:[#allocation2 + $0x50] sm:$0xff]
    %v3733 = vld [vmem:[#allocation2 + $0x58] sm:$0xff]
    %v3734 = vld [vmem:[#allocation2 + $0x60] sm:$0xff]
    %v3735 = vld [vmem:[#allocation2 + $0x68] sm:$0xff]
    %v3736 = vld [vmem:[#allocation2 + $0x70] sm:$0xff]
    %v3737 = vld [vmem:[#allocation2 + $0x78] sm:$0xff]
    %v3738 = vld [vmem:[#allocation2 + $0x80] sm:$0xff]
    %v3739 = vld [vmem:[#allocation2 + $0x88] sm:$0xff]
    %v3740 = vld [vmem:[#allocation2 + $0x90] sm:$0xff]
    %v3741 = vld [vmem:[#allocation2 + $0x98] sm:$0xff]
    %v3742 = vld [vmem:[#allocation2 + $0xa0] sm:$0xff]
    %v3743 = vld [vmem:[#allocation2 + $0xa8] sm:$0xff]
    %v3744 = vld [vmem:[#allocation2 + $0xb0] sm:$0xff]
    %v3745 = vld [vmem:[#allocation2 + $0xb8] sm:$0xff]
    %v3746 = vld [vmem:[#allocation2 + $0xc0] sm:$0xff]
    %v3747 = vld [vmem:[#allocation2 + $0xc8] sm:$0xff]
    %v3748 = vld [vmem:[#allocation2 + $0xd0] sm:$0xff]
    %v3749 = vld [vmem:[#allocation2 + $0xd8] sm:$0xff]
    %v3750 = vld [vmem:[#allocation2 + $0xe0] sm:$0xff]
    %v3751 = vld [vmem:[#allocation2 + $0xe8] sm:$0xff]
    %v3752 = vld [vmem:[#allocation2 + $0xf0] sm:$0xff]
    %v3753 = vld [vmem:[#allocation2 + $0xf8] sm:$0xff]
    %v3754 = vld [vmem:[#allocation2 + $0x100] sm:$0xff]
    %v3755 = vld [vmem:[#allocation2 + $0x108] sm:$0xff]
    %v3756 = vld [vmem:[#allocation2 + $0x110] sm:$0xff]
    %v3757 = vld [vmem:[#allocation2 + $0x118] sm:$0xff]
    %v3758 = vld [vmem:[#allocation2 + $0x120] sm:$0xff]
    %v3759 = vld [vmem:[#allocation2 + $0x128] sm:$0xff]
    %v3760 = vld [vmem:[#allocation2 + $0x130] sm:$0xff]
    %v3761 = vld [vmem:[#allocation2 + $0x138] sm:$0xff]
    %v3762 = vld [vmem:[#allocation2 + $0x140] sm:$0xff]
    %v3763 = vld [vmem:[#allocation2 + $0x148] sm:$0xff]
    %v3764 = vld [vmem:[#allocation2 + $0x150] sm:$0xff]
    %v3765 = vld [vmem:[#allocation2 + $0x158] sm:$0xff]
    %v3766 = vld [vmem:[#allocation2 + $0x160] sm:$0xff]
    %v3767 = vld [vmem:[#allocation2 + $0x168] sm:$0xff]
    %v3768 = vld [vmem:[#allocation2 + $0x170] sm:$0xff]
    %v3769 = vld [vmem:[#allocation2 + $0x178] sm:$0xff]
    %v3770 = vld [vmem:[#allocation2 + $0x180] sm:$0xff]
    %v3771 = vld [vmem:[#allocation2 + $0x188] sm:$0xff]
    %v3772 = vld [vmem:[#allocation2 + $0x190] sm:$0xff]
    %v3773 = vld [vmem:[#allocation2 + $0x198] sm:$0xff]
    %v3774 = vld [vmem:[#allocation2 + $0x1a0] sm:$0xff]
    %v3775 = vld [vmem:[#allocation2 + $0x1a8] sm:$0xff]
    %v3776 = vld [vmem:[#allocation2 + $0x1b0] sm:$0xff]
    %v3777 = vld [vmem:[#allocation2 + $0x1b8] sm:$0xff]
    %v3778 = vld [vmem:[#allocation2 + $0x1c0] sm:$0xff]
    %v3779 = vld [vmem:[#allocation2 + $0x1c8] sm:$0xff]
    %v3780 = vld [vmem:[#allocation2 + $0x1d0] sm:$0xff]
    %v3781 = vld [vmem:[#allocation2 + $0x1d8] sm:$0xff]
    %v3782 = vld [vmem:[#allocation2 + $0x1e0] sm:$0xff]
    %v3783 = vld [vmem:[#allocation2 + $0x1e8] sm:$0xff]
    %v3784 = vld [vmem:[#allocation2 + $0x1f0] sm:$0xff]
    %v3785 = vld [vmem:[#allocation2 + $0x1f8] sm:$0xff]
    %v3786 = vld [vmem:[%s4] sm:$0x1]
    %v3788 = vperm.slane %v3786, 0
    %v3790 = vadd.f32 %v3722, %v3788
    %v3791 = vadd.f32 %v3723, %v3788
    %v3792 = vadd.f32 %v3724, %v3788
    %v3793 = vadd.f32 %v3725, %v3788
    %v3794 = vadd.f32 %v3726, %v3788
    %v3795 = vadd.f32 %v3727, %v3788
    %v3796 = vadd.f32 %v3728, %v3788
    %v3797 = vadd.f32 %v3729, %v3788
    %v3798 = vadd.f32 %v3730, %v3788
    %v3799 = vadd.f32 %v3731, %v3788
    %v3800 = vadd.f32 %v3732, %v3788
    %v3801 = vadd.f32 %v3733, %v3788
    %v3802 = vadd.f32 %v3734, %v3788
    %v3803 = vadd.f32 %v3735, %v3788
    %v3804 = vadd.f32 %v3736, %v3788
    %v3805 = vadd.f32 %v3737, %v3788
    %v3806 = vadd.f32 %v3738, %v3788
    %v3807 = vadd.f32 %v3739, %v3788
    %v3808 = vadd.f32 %v3740, %v3788
    %v3809 = vadd.f32 %v3741, %v3788
    %v3810 = vadd.f32 %v3742, %v3788
    %v3811 = vadd.f32 %v3743, %v3788
    %v3812 = vadd.f32 %v3744, %v3788
    %v3813 = vadd.f32 %v3745, %v3788
    %v3814 = vadd.f32 %v3746, %v3788
    %v3815 = vadd.f32 %v3747, %v3788
    %v3816 = vadd.f32 %v3748, %v3788
    %v3817 = vadd.f32 %v3749, %v3788
    %v3818 = vadd.f32 %v3750, %v3788
    %v3819 = vadd.f32 %v3751, %v3788
    %v3820 = vadd.f32 %v3752, %v3788
    %v3821 = vadd.f32 %v3753, %v3788
    %v3822 = vadd.f32 %v3754, %v3788
    %v3823 = vadd.f32 %v3755, %v3788
    %v3824 = vadd.f32 %v3756, %v3788
    %v3825 = vadd.f32 %v3757, %v3788
    %v3826 = vadd.f32 %v3758, %v3788
    %v3827 = vadd.f32 %v3759, %v3788
    %v3828 = vadd.f32 %v3760, %v3788
    %v3829 = vadd.f32 %v3761, %v3788
    %v3830 = vadd.f32 %v3762, %v3788
    %v3831 = vadd.f32 %v3763, %v3788
    %v3832 = vadd.f32 %v3764, %v3788
    %v3833 = vadd.f32 %v3765, %v3788
    %v3834 = vadd.f32 %v3766, %v3788
    %v3835 = vadd.f32 %v3767, %v3788
    %v3836 = vadd.f32 %v3768, %v3788
    %v3837 = vadd.f32 %v3769, %v3788
    %v3838 = vadd.f32 %v3770, %v3788
    %v3839 = vadd.f32 %v3771, %v3788
    %v3840 = vadd.f32 %v3772, %v3788
    %v3841 = vadd.f32 %v3773, %v3788
    %v3842 = vadd.f32 %v3774, %v3788
    %v3843 = vadd.f32 %v3775, %v3788
    %v3844 = vadd.f32 %v3776, %v3788
    %v3845 = vadd.f32 %v3777, %v3788
    %v3846 = vadd.f32 %v3778, %v3788
    %v3847 = vadd.f32 %v3779, %v3788
    %v3848 = vadd.f32 %v3780, %v3788
    %v3849 = vadd.f32 %v3781, %v3788
    %v3850 = vadd.f32 %v3782, %v3788
    %v3851 = vadd.f32 %v3783, %v3788
    %v3852 = vadd.f32 %v3784, %v3788
    %v3853 = vadd.f32 %v3785, %v3788
    %3854 = vst.msk [vmem:[%s5] sm:$0xff] %vm159, %v3790
    %3855 = vst.msk [vmem:[%s5 + $0x8] sm:$0xff] %vm159, %v3791
    %3856 = vst.msk [vmem:[%s5 + $0x10] sm:$0xff] %vm159, %v3792
    %3857 = vst.msk [vmem:[%s5 + $0x18] sm:$0xff] %vm159, %v3793
    %3858 = vst.msk [vmem:[%s5 + $0x20] sm:$0xff] %vm159, %v3794
    %3859 = vst.msk [vmem:[%s5 + $0x28] sm:$0xff] %vm159, %v3795
    %3860 = vst.msk [vmem:[%s5 + $0x30] sm:$0xff] %vm159, %v3796
    %3861 = vst.msk [vmem:[%s5 + $0x38] sm:$0xff] %vm159, %v3797
    %3862 = vst.msk [vmem:[%s5 + $0x40] sm:$0xff] %vm159, %v3798
    %3863 = vst.msk [vmem:[%s5 + $0x48] sm:$0xff] %vm159, %v3799
    %3864 = vst.msk [vmem:[%s5 + $0x50] sm:$0xff] %vm159, %v3800
    %3865 = vst.msk [vmem:[%s5 + $0x58] sm:$0xff] %vm159, %v3801
    %3866 = vst.msk [vmem:[%s5 + $0x60] sm:$0xff] %vm159, %v3802
    %3867 = vst.msk [vmem:[%s5 + $0x68] sm:$0xff] %vm159, %v3803
    %3868 = vst.msk [vmem:[%s5 + $0x70] sm:$0xff] %vm159, %v3804
    %3869 = vst.msk [vmem:[%s5 + $0x78] sm:$0xff] %vm159, %v3805
    %3870 = vst.msk [vmem:[%s5 + $0x80] sm:$0xff] %vm159, %v3806
    %3871 = vst.msk [vmem:[%s5 + $0x88] sm:$0xff] %vm159, %v3807
    %3872 = vst.msk [vmem:[%s5 + $0x90] sm:$0xff] %vm159, %v3808
    %3873 = vst.msk [vmem:[%s5 + $0x98] sm:$0xff] %vm159, %v3809
    %3874 = vst.msk [vmem:[%s5 + $0xa0] sm:$0xff] %vm159, %v3810
    %3875 = vst.msk [vmem:[%s5 + $0xa8] sm:$0xff] %vm159, %v3811
    %3876 = vst.msk [vmem:[%s5 + $0xb0] sm:$0xff] %vm159, %v3812
    %3877 = vst.msk [vmem:[%s5 + $0xb8] sm:$0xff] %vm159, %v3813
    %3878 = vst.msk [vmem:[%s5 + $0xc0] sm:$0xff] %vm159, %v3814
    %3879 = vst.msk [vmem:[%s5 + $0xc8] sm:$0xff] %vm159, %v3815
    %3880 = vst.msk [vmem:[%s5 + $0xd0] sm:$0xff] %vm159, %v3816
    %3881 = vst.msk [vmem:[%s5 + $0xd8] sm:$0xff] %vm159, %v3817
    %3882 = vst.msk [vmem:[%s5 + $0xe0] sm:$0xff] %vm159, %v3818
    %3883 = vst.msk [vmem:[%s5 + $0xe8] sm:$0xff] %vm159, %v3819
    %3884 = vst.msk [vmem:[%s5 + $0xf0] sm:$0xff] %vm159, %v3820
    %3885 = vst.msk [vmem:[%s5 + $0xf8] sm:$0xff] %vm159, %v3821
    %3886 = vst.msk [vmem:[%s5 + $0x100] sm:$0xff] %vm159, %v3822
    %3887 = vst.msk [vmem:[%s5 + $0x108] sm:$0xff] %vm159, %v3823
    %3888 = vst.msk [vmem:[%s5 + $0x110] sm:$0xff] %vm159, %v3824
    %3889 = vst.msk [vmem:[%s5 + $0x118] sm:$0xff] %vm159, %v3825
    %3890 = vst.msk [vmem:[%s5 + $0x120] sm:$0xff] %vm159, %v3826
    %3891 = vst.msk [vmem:[%s5 + $0x128] sm:$0xff] %vm159, %v3827
    %3892 = vst.msk [vmem:[%s5 + $0x130] sm:$0xff] %vm159, %v3828
    %3893 = vst.msk [vmem:[%s5 + $0x138] sm:$0xff] %vm159, %v3829
    %3894 = vst.msk [vmem:[%s5 + $0x140] sm:$0xff] %vm159, %v3830
    %3895 = vst.msk [vmem:[%s5 + $0x148] sm:$0xff] %vm159, %v3831
    %3896 = vst.msk [vmem:[%s5 + $0x150] sm:$0xff] %vm159, %v3832
    %3897 = vst.msk [vmem:[%s5 + $0x158] sm:$0xff] %vm159, %v3833
    %3898 = vst.msk [vmem:[%s5 + $0x160] sm:$0xff] %vm159, %v3834
    %3899 = vst.msk [vmem:[%s5 + $0x168] sm:$0xff] %vm159, %v3835
    %3900 = vst.msk [vmem:[%s5 + $0x170] sm:$0xff] %vm159, %v3836
    %3901 = vst.msk [vmem:[%s5 + $0x178] sm:$0xff] %vm159, %v3837
    %3902 = vst.msk [vmem:[%s5 + $0x180] sm:$0xff] %vm159, %v3838
    %3903 = vst.msk [vmem:[%s5 + $0x188] sm:$0xff] %vm159, %v3839
    %3904 = vst.msk [vmem:[%s5 + $0x190] sm:$0xff] %vm159, %v3840
    %3905 = vst.msk [vmem:[%s5 + $0x198] sm:$0xff] %vm159, %v3841
    %3906 = vst.msk [vmem:[%s5 + $0x1a0] sm:$0xff] %vm159, %v3842
    %3907 = vst.msk [vmem:[%s5 + $0x1a8] sm:$0xff] %vm159, %v3843
    %3908 = vst.msk [vmem:[%s5 + $0x1b0] sm:$0xff] %vm159, %v3844
    %3909 = vst.msk [vmem:[%s5 + $0x1b8] sm:$0xff] %vm159, %v3845
    %3910 = vst.msk [vmem:[%s5 + $0x1c0] sm:$0xff] %vm159, %v3846
    %3911 = vst.msk [vmem:[%s5 + $0x1c8] sm:$0xff] %vm159, %v3847
    %3912 = vst.msk [vmem:[%s5 + $0x1d0] sm:$0xff] %vm159, %v3848
    %3913 = vst.msk [vmem:[%s5 + $0x1d8] sm:$0xff] %vm159, %v3849
    %3914 = vst.msk [vmem:[%s5 + $0x1e0] sm:$0xff] %vm159, %v3850
    %3915 = vst.msk [vmem:[%s5 + $0x1e8] sm:$0xff] %vm159, %v3851
    %3916 = vst.msk [vmem:[%s5 + $0x1f0] sm:$0xff] %vm159, %v3852
    %3917 = vst.msk [vmem:[%s5 + $0x1f8] sm:$0xff] %vm159, %v3853
  $region29: #{tpu_custom_call.1} parent=0 // pred_fallthru
    _
  // Predicated region
  $region30: #{tpu_custom_call.1} parent=0 // pred_check
    _
  $region31: #{tpu_custom_call.1} parent=0 // pred_check_branch
    %3919 = sbr.rel (0) target = $region33
  $region32: #{tpu_custom_call.1} parent=0 // pred_region
    _
  $region33: #{tpu_custom_call.1} parent=0 // pred_fallthru
    _
  // Predicated region
  $region34: #{tpu_custom_call.1} parent=0 // pred_check
    _
  $region35: #{tpu_custom_call.1} parent=0 // pred_check_branch
    %3921 = sbr.rel (0) target = $region37
  $region36: #{tpu_custom_call.1} parent=0 // pred_region
    _
  $region37: #{tpu_custom_call.1} parent=0 // pred_fallthru
    _

</llo_original>
